<compile_context>
chip_gen: v6e
topology: v6e:2x2x1
jax: 0.10.0
libtpu: 0.0.40
codegen_flags: <defaults>
</compile_context>

<pallas_src>
import functools

import jax
import jax.numpy as jnp
from jax.experimental import pallas as pl
from jax.experimental.pallas import tpu as pltpu


# ----------------------------------------------------------------------------
# Head split / merge helpers (single relayout; slice/stack fallback).
# ----------------------------------------------------------------------------
def _split_heads(t, num_heads, head_dim, use_einshape):
    """(S, H*Dh) -> (H, S, Dh)."""
    s = t.shape[0]
    if use_einshape and hasattr(pltpu, "einshape"):
        return pltpu.einshape("shd->hsd", t.reshape(s, num_heads, head_dim))
    return jnp.stack(
        [t[:, h * head_dim:(h + 1) * head_dim] for h in range(num_heads)], axis=0)


def _merge_heads(t, use_einshape):
    """(H, S, Dh) -> (S, H*Dh)."""
    h, s, d = t.shape
    if use_einshape and hasattr(pltpu, "einshape"):
        return pltpu.einshape("hsd->shd", t).reshape(s, h * d)
    return jnp.concatenate([t[i] for i in range(h)], axis=-1)


# ----------------------------------------------------------------------------
# Fused kernel: all transformer blocks streamed over the depth grid axis,
# plus the output MLP head at the last depth step.
# ----------------------------------------------------------------------------
def _fused_kernel(num_heads, depth, bb, eps, use_einshape,
                  x_ref, wqkv_ref, wo_ref, w1_ref, w2_ref, vecs_ref,
                  wh1_ref, bh1_ref, wh2_ref, bh2_ref,
                  out_ref, act_ref):
    d = pl.program_id(1)
    bf16 = jnp.bfloat16

    # Load the input batch block into the VMEM carry at the first depth step.
    @pl.when(d == 0)
    def _():
        act_ref[...] = x_ref[...].reshape(act_ref.shape).astype(jnp.float32)

    x = act_ref[...]                                   # (BB*S, E) f32
    BS, E = x.shape
    H = num_heads
    Dh = E // H
    S = BS // bb

    # Packed per-layer vectors: bq*scale, bk, bv, bo, g1, be1, bf1, bf2, g2, be2
    vecs = vecs_ref[0]                                 # (10, E) f32
    bq, bk, bv, bo = vecs[0:1], vecs[1:2], vecs[2:3], vecs[3:4]
    g1, be1 = vecs[4:5], vecs[5:6]
    bf1, bf2 = vecs[6:7], vecs[7:8]
    g2, be2 = vecs[8:9], vecs[9:10]

    # ---- fused QKV projection: (BB*S,E) @ (E,3E), bf16 operands, f32 acc ----
    qkv = jnp.dot(x.astype(bf16), wqkv_ref[0],
                  preferred_element_type=jnp.float32)  # (BB*S, 3E) f32
    q = qkv[:, :E] + bq                                # scale already folded in
    k = qkv[:, E:2 * E] + bk
    v = qkv[:, 2 * E:] + bv

    # ---- multi-head attention (heads batched in one einsum; static loop
    #      over the small batch block) ----
    attn_rows = []
    for b in range(bb):
        lo, hi = b * S, (b + 1) * S
        qh = _split_heads(q[lo:hi], H, Dh, use_einshape)      # (H,S,Dh) f32
        kh = _split_heads(k[lo:hi], H, Dh, use_einshape)
        vh = _split_heads(v[lo:hi], H, Dh, use_einshape)
        s = jnp.einsum('hqd,hkd->hqk', qh.astype(bf16), kh.astype(bf16),
                       preferred_element_type=jnp.float32)    # (H,S,S) f32
        s = s - jnp.max(s, axis=-1, keepdims=True)
        p = jnp.exp(s)
        p = p * pl.reciprocal(jnp.sum(p, axis=-1, keepdims=True), approx=True)
        ah = jnp.einsum('hqk,hkd->hqd', p.astype(bf16), vh.astype(bf16),
                        preferred_element_type=jnp.float32)   # (H,S,Dh) f32
        attn_rows.append(_merge_heads(ah, use_einshape))      # (S, E)
    a = attn_rows[0] if bb == 1 else jnp.concatenate(attn_rows, axis=0)
    attn = jnp.dot(a.astype(bf16), wo_ref[0],
                   preferred_element_type=jnp.float32) + bo   # (BB*S, E) f32

    # ---- residual + LayerNorm 1 (two-pass: center first) ----
    y = x + attn
    mu = jnp.mean(y, axis=-1, keepdims=True)
    yc = y - mu
    var = jnp.mean(yc * yc, axis=-1, keepdims=True)
    y = yc * jax.lax.rsqrt(var + eps) * g1 + be1

    # ---- FFN: Linear -> ReLU -> (Dropout = identity) -> Linear ----
    h1 = jnp.maximum(
        jnp.dot(y.astype(bf16), w1_ref[0],
                preferred_element_type=jnp.float32) + bf1, 0.0)
    f = jnp.dot(h1.astype(bf16), w2_ref[0],
                preferred_element_type=jnp.float32) + bf2

    # ---- residual + LayerNorm 2 ----
    z = y + f
    mu = jnp.mean(z, axis=-1, keepdims=True)
    zc = z - mu
    var = jnp.mean(zc * zc, axis=-1, keepdims=True)
    z = zc * jax.lax.rsqrt(var + eps) * g2 + be2

    act_ref[...] = z

    # ---- output MLP head, only at the last depth step ----
    @pl.when(d == depth - 1)
    def _():
        h = jnp.maximum(
            jnp.dot(z.astype(bf16), wh1_ref[...],
                    preferred_element_type=jnp.float32) + bh1_ref[...], 0.0)
        o = jnp.dot(h.astype(bf16), wh2_ref[...],
                    preferred_element_type=jnp.float32) + bh2_ref[...]
        out_ref[...] = o.reshape(out_ref.shape).astype(out_ref.dtype)


# ----------------------------------------------------------------------------
# Wrapper: stacks / packs per-layer params (bf16 weights, f32 vectors), pads
# the head output to 128 lanes, and issues one pallas_call.
# ----------------------------------------------------------------------------
def transformer_forward(x, block_params, head_params, *, num_heads, eps=1e-5,
                        batch_block=None, use_einshape=True):
    B, S, E = x.shape
    depth = len(block_params)
    if batch_block is None:
        batch_block = B                       # amortize weight DMA over the batch
    assert B % batch_block == 0
    nb = B // batch_block
    Dh = E // num_heads
    scale = 1.0 / float(Dh) ** 0.5
    wdt = jnp.bfloat16

    # Fused QKV weights with the attention scale folded into the Q columns.
    wqkv = jnp.stack(
        [jnp.concatenate([p["wq"] * scale, p["wk"], p["wv"]], axis=1)
         for p in block_params], axis=0).astype(wdt)          # (D, E, 3E)
    wo = jnp.stack([p["wo"] for p in block_params], 0).astype(wdt)
    w1 = jnp.stack([p["w1"] for p in block_params], 0).astype(wdt)
    w2 = jnp.stack([p["w2"] for p in block_params], 0).astype(wdt)

    # Pack the ten per-layer vectors into one (D, 10, E) f32 stream.
    def vec_rows(p):
        return jnp.concatenate([
            p["bq"] * scale, p["bk"], p["bv"], p["bo"],
            p["g1"], p["be1"], p["bf1"], p["bf2"], p["g2"], p["be2"]], axis=0)
    vecs = jnp.stack([vec_rows(p) for p in block_params], 0).astype(jnp.float32)

    # Head weights, zero-padded so the kernel's output last dim is lane-dense.
    O = head_params["w1"].shape[1]
    Opad = max(128, ((O + 127) // 128) * 128)
    wh1 = jnp.zeros((E, Opad), jnp.float32).at[:, :O].set(head_params["w1"]).astype(wdt)
    bh1 = jnp.zeros((1, Opad), jnp.float32).at[:, :O].set(head_params["b1"])
    wh2 = jnp.zeros((Opad, Opad), jnp.float32).at[:O, :O].set(head_params["w2"]).astype(wdt)
    bh2 = jnp.zeros((1, Opad), jnp.float32).at[:, :O].set(head_params["b2"])

    kernel = functools.partial(_fused_kernel, num_heads, depth, batch_block, eps,
                               use_einshape)

    def wspec(shape):   # per-layer weights, streamed over the depth axis
        return pl.BlockSpec(shape, lambda b, d: (d, 0, 0))

    def hspec(shape):   # head weights (constant index -> DMA'd once, resident)
        return pl.BlockSpec(shape, lambda b, d: (0, 0))

    out = pl.pallas_call(
        kernel,
        out_shape=jax.ShapeDtypeStruct((B, S, Opad), x.dtype),
        grid=(nb, depth),
        in_specs=[
            pl.BlockSpec((batch_block, S, E), lambda b, d: (b, 0, 0)),   # x
            wspec((1, E, 3 * E)),                                        # wqkv
            wspec((1, E, E)),                                            # wo
            wspec((1, E, E)),                                            # ffn w1
            wspec((1, E, E)),                                            # ffn w2
            wspec((1, 10, E)),                                           # packed vecs
            hspec((E, Opad)), hspec((1, Opad)),                          # head lin1
            hspec((Opad, Opad)), hspec((1, Opad)),                       # head lin2
        ],
        out_specs=pl.BlockSpec((batch_block, S, Opad), lambda b, d: (b, 0, 0)),
        scratch_shapes=[pltpu.VMEM((batch_block * S, E), jnp.float32)],  # carry
        compiler_params=pltpu.CompilerParams(
            dimension_semantics=("parallel", "arbitrary"),
            vmem_limit_bytes=48 * 1024 * 1024),
    )(x, wqkv, wo, w1, w2, vecs, wh1, bh1, wh2, bh2)

    return out[:, :, :O]


# ----------------------------------------------------------------------------
# Pure-JAX f32 reference (module semantics) for the correctness check.
# ----------------------------------------------------------------------------
def ref_forward(x, block_params, head_params, *, num_heads, eps=1e-5):
    def ln(y, g, b):
        mu = jnp.mean(y, -1, keepdims=True)
        var = jnp.mean((y - mu) ** 2, -1, keepdims=True)
        return (y - mu) / jnp.sqrt(var + eps) * g + b

    for p in block_params:
        B, S, E = x.shape
        Dh = E // num_heads
        q = x @ p["wq"] + p["bq"]
        k = x @ p["wk"] + p["bk"]
        v = x @ p["wv"] + p["bv"]
        q = q.reshape(B, S, num_heads, Dh).transpose(0, 2, 1, 3)
        k = k.reshape(B, S, num_heads, Dh).transpose(0, 2, 1, 3)
        v = v.reshape(B, S, num_heads, Dh).transpose(0, 2, 1, 3)
        s = jnp.einsum("bhqd,bhkd->bhqk", q, k) / jnp.sqrt(jnp.float32(Dh))
        a = jnp.einsum("bhqk,bhkd->bhqd", jax.nn.softmax(s, -1), v)
        a = a.transpose(0, 2, 1, 3).reshape(B, S, E) @ p["wo"] + p["bo"]
        x = ln(x + a, p["g1"], p["be1"])
        f = jnp.maximum(x @ p["w1"] + p["bf1"], 0.0) @ p["w2"] + p["bf2"]
        x = ln(x + f, p["g2"], p["be2"])
    h = jnp.maximum(x @ head_params["w1"] + head_params["b1"], 0.0)
    return h @ head_params["w2"] + head_params["b2"]


# ----------------------------------------------------------------------------
# Parameter construction (deterministic, synthetic) + driver
# ----------------------------------------------------------------------------
if __name__ == "__main__":
    # Small stand-ins for the module's hard-coded dims
    # (input_size=hidden_size=1024 -> E=128, output_size=384 -> O=64,
    #  num_heads=8 -> 4, depth=6 kept as in the module).
    B, S = 2, 8
    E = 128
    O = 64
    NUM_HEADS = 4
    DEPTH = 6
    SCALE = 0.02

    key = jax.random.PRNGKey(0)
    keys = jax.random.split(key, DEPTH + 2)
    x = jax.random.normal(keys[0], (B, S, E), dtype=jnp.float32)

    def init_block(k):
        ks = jax.random.split(k, 6)
        rnd = lambda kk, shape: jax.random.normal(kk, shape, jnp.float32) * SCALE
        return dict(
            wq=rnd(ks[0], (E, E)), wk=rnd(ks[1], (E, E)), wv=rnd(ks[2], (E, E)),
            bq=jnp.zeros((1, E), jnp.float32),
            bk=jnp.zeros((1, E), jnp.float32),
            bv=jnp.zeros((1, E), jnp.float32),
            wo=rnd(ks[3], (E, E)), bo=jnp.zeros((1, E), jnp.float32),
            g1=jnp.ones((1, E), jnp.float32), be1=jnp.zeros((1, E), jnp.float32),
            w1=rnd(ks[4], (E, E)), bf1=jnp.zeros((1, E), jnp.float32),
            w2=rnd(ks[5], (E, E)), bf2=jnp.zeros((1, E), jnp.float32),
            g2=jnp.ones((1, E), jnp.float32), be2=jnp.zeros((1, E), jnp.float32),
        )

    block_params = [init_block(keys[1 + i]) for i in range(DEPTH)]

    hk = jax.random.split(keys[-1], 2)
    head_params = dict(
        w1=jax.random.normal(hk[0], (E, O), jnp.float32) * SCALE,
        b1=jnp.zeros((1, O), jnp.float32),
        w2=jax.random.normal(hk[1], (O, O), jnp.float32) * SCALE,
        b2=jnp.zeros((1, O), jnp.float32),
    )

    fwd = jax.jit(functools.partial(transformer_forward, num_heads=NUM_HEADS))
    try:
        out = jax.block_until_ready(fwd(x, block_params, head_params))
    except Exception:
        # Fallback if the einshape head-split relayout is rejected by this
        # Mosaic version: retry with the proven per-head slice/stack path.
        fwd = jax.jit(functools.partial(transformer_forward, num_heads=NUM_HEADS,
                                        use_einshape=False))
        out = jax.block_until_ready(fwd(x, block_params, head_params))

    ref = ref_forward(x, block_params, head_params, num_heads=NUM_HEADS)
    assert out.shape == (B, S, O), out.shape
    # bf16 matmuls (f32 accumulation) vs. f32 reference -> loose tolerance.
    assert jnp.allclose(out, ref, atol=1e-2, rtol=1e-2), \
        float(jnp.max(jnp.abs(out - ref)))

    print("KERNEL_OK")
</pallas_src>

<mosaic_0001>
module attributes {stable_mosaic.version = 11 : i64} {
  func.func @_fused_kernel(%arg0: i32, %arg1: i32, %arg2: memref<2x8x128xf32, #tpu.memory_space<vmem>>, %arg3: memref<1x128x384xbf16, #tpu.memory_space<vmem>>, %arg4: memref<1x128x128xbf16, #tpu.memory_space<vmem>>, %arg5: memref<1x128x128xbf16, #tpu.memory_space<vmem>>, %arg6: memref<1x128x128xbf16, #tpu.memory_space<vmem>>, %arg7: memref<1x10x128xf32, #tpu.memory_space<vmem>>, %arg8: memref<128x128xbf16, #tpu.memory_space<vmem>>, %arg9: memref<1x128xf32, #tpu.memory_space<vmem>>, %arg10: memref<128x128xbf16, #tpu.memory_space<vmem>>, %arg11: memref<1x128xf32, #tpu.memory_space<vmem>>, %arg12: memref<2x8x128xf32, #tpu.memory_space<vmem>>, %arg13: memref<16x128xf32, #tpu.memory_space<vmem>>) attributes {dimension_semantics = [#tpu.dimension_semantics<parallel>, #tpu.dimension_semantics<arbitrary>], iteration_bounds = array<i64: 1, 6>, scalar_prefetch = 0 : i64, scratch_operands = 1 : i64, tpu.core_type = #tpu.core_type<tc>, window_params = [{transform_indices = @transform_0, window_bounds = array<i64: 2, 8, 128>}, {transform_indices = @transform_1, window_bounds = array<i64: 1, 128, 384>}, {transform_indices = @transform_2, window_bounds = array<i64: 1, 128, 128>}, {transform_indices = @transform_3, window_bounds = array<i64: 1, 128, 128>}, {transform_indices = @transform_4, window_bounds = array<i64: 1, 128, 128>}, {transform_indices = @transform_5, window_bounds = array<i64: 1, 10, 128>}, {pipeline_mode = #tpu.pipeline_mode<synchronous>, transform_indices = @transform_6, window_bounds = array<i64: 128, 128>}, {pipeline_mode = #tpu.pipeline_mode<synchronous>, transform_indices = @transform_7, window_bounds = array<i64: 1, 128>}, {pipeline_mode = #tpu.pipeline_mode<synchronous>, transform_indices = @transform_8, window_bounds = array<i64: 128, 128>}, {pipeline_mode = #tpu.pipeline_mode<synchronous>, transform_indices = @transform_9, window_bounds = array<i64: 1, 128>}, {transform_indices = @transform_10, window_bounds = array<i64: 2, 8, 128>}]} {
    %c0_i32 = arith.constant 0 : i32
    %0 = arith.cmpi eq, %arg1, %c0_i32 : i32
    %1 = arith.extui %0 : i1 to i32
    %c0_i32_0 = arith.constant 0 : i32
    %2 = arith.cmpi ne, %1, %c0_i32_0 : i32
    scf.if %2 {
      %c0_42 = arith.constant 0 : index
      %c0_43 = arith.constant 0 : index
      %c0_44 = arith.constant 0 : index
      %150 = vector.load %arg2[%c0_42, %c0_43, %c0_44] : memref<2x8x128xf32, #tpu.memory_space<vmem>>, vector<2x8x128xf32>
      %151 = vector.shape_cast %150 : vector<2x8x128xf32> to vector<16x128xf32>
      %c0_45 = arith.constant 0 : index
      %c0_46 = arith.constant 0 : index
      %152 = vector.load %arg13[%c0_45, %c0_46] : memref<16x128xf32, #tpu.memory_space<vmem>>, vector<16x128xf32>
      tpu.vector_store %arg13[%c0_45, %c0_46], %151 {strides = array<i32>} : memref<16x128xf32, #tpu.memory_space<vmem>>, vector<16x128xf32>,
    } else {
    }
    %c0 = arith.constant 0 : index
    %c0_1 = arith.constant 0 : index
    %3 = vector.load %arg13[%c0, %c0_1] : memref<16x128xf32, #tpu.memory_space<vmem>>, vector<16x128xf32>
    %c0_2 = arith.constant 0 : index
    %c0_3 = arith.constant 0 : index
    %c0_4 = arith.constant 0 : index
    %4 = vector.load %arg7[%c0_2, %c0_3, %c0_4] : memref<1x10x128xf32, #tpu.memory_space<vmem>>, vector<1x10x128xf32>
    %5 = vector.shape_cast %4 : vector<1x10x128xf32> to vector<10x128xf32>
    %6 = vector.extract_strided_slice %5 {offsets = [0, 0], sizes = [1, 128], strides = [1, 1]} : vector<10x128xf32> to vector<1x128xf32>
    %7 = vector.extract_strided_slice %5 {offsets = [1, 0], sizes = [1, 128], strides = [1, 1]} : vector<10x128xf32> to vector<1x128xf32>
    %8 = vector.extract_strided_slice %5 {offsets = [2, 0], sizes = [1, 128], strides = [1, 1]} : vector<10x128xf32> to vector<1x128xf32>
    %9 = vector.extract_strided_slice %5 {offsets = [3, 0], sizes = [1, 128], strides = [1, 1]} : vector<10x128xf32> to vector<1x128xf32>
    %10 = vector.extract_strided_slice %5 {offsets = [4, 0], sizes = [1, 128], strides = [1, 1]} : vector<10x128xf32> to vector<1x128xf32>
    %11 = vector.extract_strided_slice %5 {offsets = [5, 0], sizes = [1, 128], strides = [1, 1]} : vector<10x128xf32> to vector<1x128xf32>
    %12 = vector.extract_strided_slice %5 {offsets = [6, 0], sizes = [1, 128], strides = [1, 1]} : vector<10x128xf32> to vector<1x128xf32>
    %13 = vector.extract_strided_slice %5 {offsets = [7, 0], sizes = [1, 128], strides = [1, 1]} : vector<10x128xf32> to vector<1x128xf32>
    %14 = vector.extract_strided_slice %5 {offsets = [8, 0], sizes = [1, 128], strides = [1, 1]} : vector<10x128xf32> to vector<1x128xf32>
    %15 = vector.extract_strided_slice %5 {offsets = [9, 0], sizes = [1, 128], strides = [1, 1]} : vector<10x128xf32> to vector<1x128xf32>
    %16 = arith.truncf %3 : vector<16x128xf32> to vector<16x128xbf16>
    %c0_5 = arith.constant 0 : index
    %c0_6 = arith.constant 0 : index
    %c0_7 = arith.constant 0 : index
    %17 = vector.load %arg3[%c0_5, %c0_6, %c0_7] : memref<1x128x384xbf16, #tpu.memory_space<vmem>>, vector<1x128x384xbf16>
    %18 = vector.shape_cast %17 : vector<1x128x384xbf16> to vector<128x384xbf16>
    %cst = arith.constant dense<0.000000e+00> : vector<16x384xf32>
    %19 = tpu.matmul %16, %18, %cst {dimension_numbers = #tpu.dot_dimension_numbers<[1], [0], [0], [1], [0, 0, 1, 1], [], []>} : vector<16x128xbf16>, vector<128x384xbf16>, vector<16x384xf32> -> vector<16x384xf32>
    %20 = vector.extract_strided_slice %19 {offsets = [0, 0], sizes = [16, 128], strides = [1, 1]} : vector<16x384xf32> to vector<16x128xf32>
    %21 = vector.broadcast %6 : vector<1x128xf32> to vector<16x128xf32>
    %22 = arith.addf %20, %21 : vector<16x128xf32>
    %23 = vector.extract_strided_slice %19 {offsets = [0, 128], sizes = [16, 128], strides = [1, 1]} : vector<16x384xf32> to vector<16x128xf32>
    %24 = vector.broadcast %7 : vector<1x128xf32> to vector<16x128xf32>
    %25 = arith.addf %23, %24 : vector<16x128xf32>
    %26 = vector.extract_strided_slice %19 {offsets = [0, 256], sizes = [16, 128], strides = [1, 1]} : vector<16x384xf32> to vector<16x128xf32>
    %27 = vector.broadcast %8 : vector<1x128xf32> to vector<16x128xf32>
    %28 = arith.addf %26, %27 : vector<16x128xf32>
    %29 = vector.extract_strided_slice %22 {offsets = [0, 0], sizes = [8, 128], strides = [1, 1]} : vector<16x128xf32> to vector<8x128xf32>
    %30 = vector.shape_cast %29 : vector<8x128xf32> to vector<8x4x32xf32>
    %31 = tpu.transpose %30, [1, 0, 2] : vector<8x4x32xf32> -> vector<4x8x32xf32>
    %32 = vector.extract_strided_slice %25 {offsets = [0, 0], sizes = [8, 128], strides = [1, 1]} : vector<16x128xf32> to vector<8x128xf32>
    %33 = vector.shape_cast %32 : vector<8x128xf32> to vector<8x4x32xf32>
    %34 = tpu.transpose %33, [1, 0, 2] : vector<8x4x32xf32> -> vector<4x8x32xf32>
    %35 = vector.extract_strided_slice %28 {offsets = [0, 0], sizes = [8, 128], strides = [1, 1]} : vector<16x128xf32> to vector<8x128xf32>
    %36 = vector.shape_cast %35 : vector<8x128xf32> to vector<8x4x32xf32>
    %37 = tpu.transpose %36, [1, 0, 2] : vector<8x4x32xf32> -> vector<4x8x32xf32>
    %38 = arith.truncf %31 : vector<4x8x32xf32> to vector<4x8x32xbf16>
    %39 = arith.truncf %34 : vector<4x8x32xf32> to vector<4x8x32xbf16>
    "tpu.trace_start"() <{level = 10 : i32, message = "hqd,hkd->hqk"}> : () -> ()
    %cst_8 = arith.constant dense<0.000000e+00> : vector<4x8x8xf32>
    %40 = tpu.matmul %38, %39, %cst_8 {dimension_numbers = #tpu.dot_dimension_numbers<[2], [2], [1], [1], [0, 0, 0, 1, 1, 1], [0], [0]>} : vector<4x8x32xbf16>, vector<4x8x32xbf16>, vector<4x8x8xf32> -> vector<4x8x8xf32>
    "tpu.trace_stop"() : () -> ()
    %cst_9 = arith.constant dense<0xFF800000> : vector<4x8xf32>
    %41 = vector.multi_reduction <maximumf>, %40, %cst_9 [2] : vector<4x8x8xf32> to vector<4x8xf32>
    %42 = vector.shape_cast %41 : vector<4x8xf32> to vector<4x8x1xf32>
    %43 = vector.broadcast %42 : vector<4x8x1xf32> to vector<4x8x8xf32>
    %44 = arith.subf %40, %43 : vector<4x8x8xf32>
    %45 = math.exp %44 : vector<4x8x8xf32>
    %cst_10 = arith.constant dense<0.000000e+00> : vector<4x8xf32>
    %46 = vector.multi_reduction <add>, %45, %cst_10 [2] : vector<4x8x8xf32> to vector<4x8xf32>
    %47 = vector.shape_cast %46 : vector<4x8xf32> to vector<4x8x1xf32>
    %48 = tpu.reciprocal %47 {approx = true} : vector<4x8x1xf32> -> vector<4x8x1xf32>
    %49 = vector.broadcast %48 : vector<4x8x1xf32> to vector<4x8x8xf32>
    %50 = arith.mulf %45, %49 : vector<4x8x8xf32>
    %51 = arith.truncf %50 : vector<4x8x8xf32> to vector<4x8x8xbf16>
    %52 = arith.truncf %37 : vector<4x8x32xf32> to vector<4x8x32xbf16>
    "tpu.trace_start"() <{level = 10 : i32, message = "hqk,hkd->hqd"}> : () -> ()
    %cst_11 = arith.constant dense<0.000000e+00> : vector<4x8x32xf32>
    %53 = tpu.matmul %51, %52, %cst_11 {dimension_numbers = #tpu.dot_dimension_numbers<[2], [1], [1], [2], [0, 0, 0, 1, 1, 2], [0], [0]>} : vector<4x8x8xbf16>, vector<4x8x32xbf16>, vector<4x8x32xf32> -> vector<4x8x32xf32>
    "tpu.trace_stop"() : () -> ()
    %54 = tpu.transpose %53, [1, 0, 2] : vector<4x8x32xf32> -> vector<8x4x32xf32>
    %55 = vector.shape_cast %54 : vector<8x4x32xf32> to vector<8x128xf32>
    %56 = vector.extract_strided_slice %22 {offsets = [8, 0], sizes = [8, 128], strides = [1, 1]} : vector<16x128xf32> to vector<8x128xf32>
    %57 = vector.shape_cast %56 : vector<8x128xf32> to vector<8x4x32xf32>
    %58 = tpu.transpose %57, [1, 0, 2] : vector<8x4x32xf32> -> vector<4x8x32xf32>
    %59 = vector.extract_strided_slice %25 {offsets = [8, 0], sizes = [8, 128], strides = [1, 1]} : vector<16x128xf32> to vector<8x128xf32>
    %60 = vector.shape_cast %59 : vector<8x128xf32> to vector<8x4x32xf32>
    %61 = tpu.transpose %60, [1, 0, 2] : vector<8x4x32xf32> -> vector<4x8x32xf32>
    %62 = vector.extract_strided_slice %28 {offsets = [8, 0], sizes = [8, 128], strides = [1, 1]} : vector<16x128xf32> to vector<8x128xf32>
    %63 = vector.shape_cast %62 : vector<8x128xf32> to vector<8x4x32xf32>
    %64 = tpu.transpose %63, [1, 0, 2] : vector<8x4x32xf32> -> vector<4x8x32xf32>
    %65 = arith.truncf %58 : vector<4x8x32xf32> to vector<4x8x32xbf16>
    %66 = arith.truncf %61 : vector<4x8x32xf32> to vector<4x8x32xbf16>
    "tpu.trace_start"() <{level = 10 : i32, message = "hqd,hkd->hqk"}> : () -> ()
    %cst_12 = arith.constant dense<0.000000e+00> : vector<4x8x8xf32>
    %67 = tpu.matmul %65, %66, %cst_12 {dimension_numbers = #tpu.dot_dimension_numbers<[2], [2], [1], [1], [0, 0, 0, 1, 1, 1], [0], [0]>} : vector<4x8x32xbf16>, vector<4x8x32xbf16>, vector<4x8x8xf32> -> vector<4x8x8xf32>
    "tpu.trace_stop"() : () -> ()
    %cst_13 = arith.constant dense<0xFF800000> : vector<4x8xf32>
    %68 = vector.multi_reduction <maximumf>, %67, %cst_13 [2] : vector<4x8x8xf32> to vector<4x8xf32>
    %69 = vector.shape_cast %68 : vector<4x8xf32> to vector<4x8x1xf32>
    %70 = vector.broadcast %69 : vector<4x8x1xf32> to vector<4x8x8xf32>
    %71 = arith.subf %67, %70 : vector<4x8x8xf32>
    %72 = math.exp %71 : vector<4x8x8xf32>
    %cst_14 = arith.constant dense<0.000000e+00> : vector<4x8xf32>
    %73 = vector.multi_reduction <add>, %72, %cst_14 [2] : vector<4x8x8xf32> to vector<4x8xf32>
    %74 = vector.shape_cast %73 : vector<4x8xf32> to vector<4x8x1xf32>
    %75 = tpu.reciprocal %74 {approx = true} : vector<4x8x1xf32> -> vector<4x8x1xf32>
    %76 = vector.broadcast %75 : vector<4x8x1xf32> to vector<4x8x8xf32>
    %77 = arith.mulf %72, %76 : vector<4x8x8xf32>
    %78 = arith.truncf %77 : vector<4x8x8xf32> to vector<4x8x8xbf16>
    %79 = arith.truncf %64 : vector<4x8x32xf32> to vector<4x8x32xbf16>
    "tpu.trace_start"() <{level = 10 : i32, message = "hqk,hkd->hqd"}> : () -> ()
    %cst_15 = arith.constant dense<0.000000e+00> : vector<4x8x32xf32>
    %80 = tpu.matmul %78, %79, %cst_15 {dimension_numbers = #tpu.dot_dimension_numbers<[2], [1], [1], [2], [0, 0, 0, 1, 1, 2], [0], [0]>} : vector<4x8x8xbf16>, vector<4x8x32xbf16>, vector<4x8x32xf32> -> vector<4x8x32xf32>
    "tpu.trace_stop"() : () -> ()
    %81 = tpu.transpose %80, [1, 0, 2] : vector<4x8x32xf32> -> vector<8x4x32xf32>
    %82 = vector.shape_cast %81 : vector<8x4x32xf32> to vector<8x128xf32>
    %83 = tpu.concatenate %55, %82 in 0 : vector<8x128xf32>, vector<8x128xf32> -> vector<16x128xf32>
    %84 = arith.truncf %83 : vector<16x128xf32> to vector<16x128xbf16>
    %c0_16 = arith.constant 0 : index
    %c0_17 = arith.constant 0 : index
    %c0_18 = arith.constant 0 : index
    %85 = vector.load %arg4[%c0_16, %c0_17, %c0_18] : memref<1x128x128xbf16, #tpu.memory_space<vmem>>, vector<1x128x128xbf16>
    %86 = vector.shape_cast %85 : vector<1x128x128xbf16> to vector<128x128xbf16>
    %cst_19 = arith.constant dense<0.000000e+00> : vector<16x128xf32>
    %87 = tpu.matmul %84, %86, %cst_19 {dimension_numbers = #tpu.dot_dimension_numbers<[1], [0], [0], [1], [0, 0, 1, 1], [], []>} : vector<16x128xbf16>, vector<128x128xbf16>, vector<16x128xf32> -> vector<16x128xf32>
    %88 = vector.broadcast %9 : vector<1x128xf32> to vector<16x128xf32>
    %89 = arith.addf %87, %88 : vector<16x128xf32>
    %90 = arith.addf %3, %89 : vector<16x128xf32>
    %cst_20 = arith.constant dense<0.000000e+00> : vector<16xf32>
    %91 = vector.multi_reduction <add>, %90, %cst_20 [1] : vector<16x128xf32> to vector<16xf32>
    %92 = vector.shape_cast %91 : vector<16xf32> to vector<16x1xf32>
    %cst_21 = arith.constant 1.280000e+02 : f32
    %93 = vector.broadcast %cst_21 : f32 to vector<16x1xf32>
    %94 = arith.divf %92, %93 : vector<16x1xf32>
    %95 = vector.broadcast %94 : vector<16x1xf32> to vector<16x128xf32>
    %96 = arith.subf %90, %95 : vector<16x128xf32>
    %97 = arith.mulf %96, %96 : vector<16x128xf32>
    %cst_22 = arith.constant dense<0.000000e+00> : vector<16xf32>
    %98 = vector.multi_reduction <add>, %97, %cst_22 [1] : vector<16x128xf32> to vector<16xf32>
    %99 = vector.shape_cast %98 : vector<16xf32> to vector<16x1xf32>
    %cst_23 = arith.constant 1.280000e+02 : f32
    %100 = vector.broadcast %cst_23 : f32 to vector<16x1xf32>
    %101 = arith.divf %99, %100 : vector<16x1xf32>
    %cst_24 = arith.constant 9.99999974E-6 : f32
    %102 = vector.broadcast %cst_24 : f32 to vector<16x1xf32>
    %103 = arith.addf %101, %102 : vector<16x1xf32>
    %104 = math.rsqrt %103 : vector<16x1xf32>
    %105 = vector.broadcast %104 : vector<16x1xf32> to vector<16x128xf32>
    %106 = arith.mulf %96, %105 : vector<16x128xf32>
    %107 = vector.broadcast %10 : vector<1x128xf32> to vector<16x128xf32>
    %108 = arith.mulf %106, %107 : vector<16x128xf32>
    %109 = vector.broadcast %11 : vector<1x128xf32> to vector<16x128xf32>
    %110 = arith.addf %108, %109 : vector<16x128xf32>
    %111 = arith.truncf %110 : vector<16x128xf32> to vector<16x128xbf16>
    %c0_25 = arith.constant 0 : index
    %c0_26 = arith.constant 0 : index
    %c0_27 = arith.constant 0 : index
    %112 = vector.load %arg5[%c0_25, %c0_26, %c0_27] : memref<1x128x128xbf16, #tpu.memory_space<vmem>>, vector<1x128x128xbf16>
    %113 = vector.shape_cast %112 : vector<1x128x128xbf16> to vector<128x128xbf16>
    %cst_28 = arith.constant dense<0.000000e+00> : vector<16x128xf32>
    %114 = tpu.matmul %111, %113, %cst_28 {dimension_numbers = #tpu.dot_dimension_numbers<[1], [0], [0], [1], [0, 0, 1, 1], [], []>} : vector<16x128xbf16>, vector<128x128xbf16>, vector<16x128xf32> -> vector<16x128xf32>
    %115 = vector.broadcast %12 : vector<1x128xf32> to vector<16x128xf32>
    %116 = arith.addf %114, %115 : vector<16x128xf32>
    %cst_29 = arith.constant 0.000000e+00 : f32
    %117 = vector.broadcast %cst_29 : f32 to vector<16x128xf32>
    %118 = arith.maximumf %116, %117 : vector<16x128xf32>
    %119 = arith.truncf %118 : vector<16x128xf32> to vector<16x128xbf16>
    %c0_30 = arith.constant 0 : index
    %c0_31 = arith.constant 0 : index
    %c0_32 = arith.constant 0 : index
    %120 = vector.load %arg6[%c0_30, %c0_31, %c0_32] : memref<1x128x128xbf16, #tpu.memory_space<vmem>>, vector<1x128x128xbf16>
    %121 = vector.shape_cast %120 : vector<1x128x128xbf16> to vector<128x128xbf16>
    %cst_33 = arith.constant dense<0.000000e+00> : vector<16x128xf32>
    %122 = tpu.matmul %119, %121, %cst_33 {dimension_numbers = #tpu.dot_dimension_numbers<[1], [0], [0], [1], [0, 0, 1, 1], [], []>} : vector<16x128xbf16>, vector<128x128xbf16>, vector<16x128xf32> -> vector<16x128xf32>
    %123 = vector.broadcast %13 : vector<1x128xf32> to vector<16x128xf32>
    %124 = arith.addf %122, %123 : vector<16x128xf32>
    %125 = arith.addf %110, %124 : vector<16x128xf32>
    %cst_34 = arith.constant dense<0.000000e+00> : vector<16xf32>
    %126 = vector.multi_reduction <add>, %125, %cst_34 [1] : vector<16x128xf32> to vector<16xf32>
    %127 = vector.shape_cast %126 : vector<16xf32> to vector<16x1xf32>
    %cst_35 = arith.constant 1.280000e+02 : f32
    %128 = vector.broadcast %cst_35 : f32 to vector<16x1xf32>
    %129 = arith.divf %127, %128 : vector<16x1xf32>
    %130 = vector.broadcast %129 : vector<16x1xf32> to vector<16x128xf32>
    %131 = arith.subf %125, %130 : vector<16x128xf32>
    %132 = arith.mulf %131, %131 : vector<16x128xf32>
    %cst_36 = arith.constant dense<0.000000e+00> : vector<16xf32>
    %133 = vector.multi_reduction <add>, %132, %cst_36 [1] : vector<16x128xf32> to vector<16xf32>
    %134 = vector.shape_cast %133 : vector<16xf32> to vector<16x1xf32>
    %cst_37 = arith.constant 1.280000e+02 : f32
    %135 = vector.broadcast %cst_37 : f32 to vector<16x1xf32>
    %136 = arith.divf %134, %135 : vector<16x1xf32>
    %cst_38 = arith.constant 9.99999974E-6 : f32
    %137 = vector.broadcast %cst_38 : f32 to vector<16x1xf32>
    %138 = arith.addf %136, %137 : vector<16x1xf32>
    %139 = math.rsqrt %138 : vector<16x1xf32>
    %140 = vector.broadcast %139 : vector<16x1xf32> to vector<16x128xf32>
    %141 = arith.mulf %131, %140 : vector<16x128xf32>
    %142 = vector.broadcast %14 : vector<1x128xf32> to vector<16x128xf32>
    %143 = arith.mulf %141, %142 : vector<16x128xf32>
    %144 = vector.broadcast %15 : vector<1x128xf32> to vector<16x128xf32>
    %145 = arith.addf %143, %144 : vector<16x128xf32>
    %c0_39 = arith.constant 0 : index
    %c0_40 = arith.constant 0 : index
    %146 = vector.load %arg13[%c0_39, %c0_40] : memref<16x128xf32, #tpu.memory_space<vmem>>, vector<16x128xf32>
    tpu.vector_store %arg13[%c0_39, %c0_40], %145 {strides = array<i32>} : memref<16x128xf32, #tpu.memory_space<vmem>>, vector<16x128xf32>,
    %c5_i32 = arith.constant 5 : i32
    %147 = arith.cmpi eq, %arg1, %c5_i32 : i32
    %148 = arith.extui %147 : i1 to i32
    %c0_i32_41 = arith.constant 0 : i32
    %149 = arith.cmpi ne, %148, %c0_i32_41 : i32
    scf.if %149 {
      %150 = arith.truncf %145 : vector<16x128xf32> to vector<16x128xbf16>
      %c0_42 = arith.constant 0 : index
      %c0_43 = arith.constant 0 : index
      %151 = vector.load %arg8[%c0_42, %c0_43] : memref<128x128xbf16, #tpu.memory_space<vmem>>, vector<128x128xbf16>
      %cst_44 = arith.constant dense<0.000000e+00> : vector<16x128xf32>
      %152 = tpu.matmul %150, %151, %cst_44 {dimension_numbers = #tpu.dot_dimension_numbers<[1], [0], [0], [1], [0, 0, 1, 1], [], []>} : vector<16x128xbf16>, vector<128x128xbf16>, vector<16x128xf32> -> vector<16x128xf32>
      %c0_45 = arith.constant 0 : index
      %c0_46 = arith.constant 0 : index
      %153 = vector.load %arg9[%c0_45, %c0_46] : memref<1x128xf32, #tpu.memory_space<vmem>>, vector<1x128xf32>
      %154 = vector.broadcast %153 : vector<1x128xf32> to vector<16x128xf32>
      %155 = arith.addf %152, %154 : vector<16x128xf32>
      %cst_47 = arith.constant 0.000000e+00 : f32
      %156 = vector.broadcast %cst_47 : f32 to vector<16x128xf32>
      %157 = arith.maximumf %155, %156 : vector<16x128xf32>
      %158 = arith.truncf %157 : vector<16x128xf32> to vector<16x128xbf16>
      %c0_48 = arith.constant 0 : index
      %c0_49 = arith.constant 0 : index
      %159 = vector.load %arg10[%c0_48, %c0_49] : memref<128x128xbf16, #tpu.memory_space<vmem>>, vector<128x128xbf16>
      %cst_50 = arith.constant dense<0.000000e+00> : vector<16x128xf32>
      %160 = tpu.matmul %158, %159, %cst_50 {dimension_numbers = #tpu.dot_dimension_numbers<[1], [0], [0], [1], [0, 0, 1, 1], [], []>} : vector<16x128xbf16>, vector<128x128xbf16>, vector<16x128xf32> -> vector<16x128xf32>
      %c0_51 = arith.constant 0 : index
      %c0_52 = arith.constant 0 : index
      %161 = vector.load %arg11[%c0_51, %c0_52] : memref<1x128xf32, #tpu.memory_space<vmem>>, vector<1x128xf32>
      %162 = vector.broadcast %161 : vector<1x128xf32> to vector<16x128xf32>
      %163 = arith.addf %160, %162 : vector<16x128xf32>
      %164 = vector.shape_cast %163 : vector<16x128xf32> to vector<2x8x128xf32>
      %c0_53 = arith.constant 0 : index
      %c0_54 = arith.constant 0 : index
      %c0_55 = arith.constant 0 : index
      %165 = vector.load %arg12[%c0_53, %c0_54, %c0_55] : memref<2x8x128xf32, #tpu.memory_space<vmem>>, vector<2x8x128xf32>
      tpu.vector_store %arg12[%c0_53, %c0_54, %c0_55], %164 {strides = array<i32>} : memref<2x8x128xf32, #tpu.memory_space<vmem>>, vector<2x8x128xf32>,
    } else {
    }
    return
  }
  func.func @transform_0(%arg0: i32, %arg1: i32) -> (i32, i32, i32) {
    %c0_i32 = arith.constant 0 : i32
    %c0_i32_0 = arith.constant 0 : i32
    %c0_i32_1 = arith.constant 0 : i32
    return %arg0, %c0_i32, %c0_i32_0 : i32, i32, i32
  }
  func.func @transform_1(%arg0: i32, %arg1: i32) -> (i32, i32, i32) {
    %c0_i32 = arith.constant 0 : i32
    %c0_i32_0 = arith.constant 0 : i32
    %c0_i32_1 = arith.constant 0 : i32
    return %arg1, %c0_i32, %c0_i32_0 : i32, i32, i32
  }
  func.func @transform_2(%arg0: i32, %arg1: i32) -> (i32, i32, i32) {
    %c0_i32 = arith.constant 0 : i32
    %c0_i32_0 = arith.constant 0 : i32
    %c0_i32_1 = arith.constant 0 : i32
    return %arg1, %c0_i32, %c0_i32_0 : i32, i32, i32
  }
  func.func @transform_3(%arg0: i32, %arg1: i32) -> (i32, i32, i32) {
    %c0_i32 = arith.constant 0 : i32
    %c0_i32_0 = arith.constant 0 : i32
    %c0_i32_1 = arith.constant 0 : i32
    return %arg1, %c0_i32, %c0_i32_0 : i32, i32, i32
  }
  func.func @transform_4(%arg0: i32, %arg1: i32) -> (i32, i32, i32) {
    %c0_i32 = arith.constant 0 : i32
    %c0_i32_0 = arith.constant 0 : i32
    %c0_i32_1 = arith.constant 0 : i32
    return %arg1, %c0_i32, %c0_i32_0 : i32, i32, i32
  }
  func.func @transform_5(%arg0: i32, %arg1: i32) -> (i32, i32, i32) {
    %c0_i32 = arith.constant 0 : i32
    %c0_i32_0 = arith.constant 0 : i32
    %c0_i32_1 = arith.constant 0 : i32
    return %arg1, %c0_i32, %c0_i32_0 : i32, i32, i32
  }
  func.func @transform_6(%arg0: i32, %arg1: i32) -> (i32, i32) {
    %c0_i32 = arith.constant 0 : i32
    %c0_i32_0 = arith.constant 0 : i32
    %c0_i32_1 = arith.constant 0 : i32
    return %c0_i32, %c0_i32_0 : i32, i32
  }
  func.func @transform_7(%arg0: i32, %arg1: i32) -> (i32, i32) {
    %c0_i32 = arith.constant 0 : i32
    %c0_i32_0 = arith.constant 0 : i32
    %c0_i32_1 = arith.constant 0 : i32
    return %c0_i32, %c0_i32_0 : i32, i32
  }
  func.func @transform_8(%arg0: i32, %arg1: i32) -> (i32, i32) {
    %c0_i32 = arith.constant 0 : i32
    %c0_i32_0 = arith.constant 0 : i32
    %c0_i32_1 = arith.constant 0 : i32
    return %c0_i32, %c0_i32_0 : i32, i32
  }
  func.func @transform_9(%arg0: i32, %arg1: i32) -> (i32, i32) {
    %c0_i32 = arith.constant 0 : i32
    %c0_i32_0 = arith.constant 0 : i32
    %c0_i32_1 = arith.constant 0 : i32
    return %c0_i32, %c0_i32_0 : i32, i32
  }
  func.func @transform_10(%arg0: i32, %arg1: i32) -> (i32, i32, i32) {
    %c0_i32 = arith.constant 0 : i32
    %c0_i32_0 = arith.constant 0 : i32
    %c0_i32_1 = arith.constant 0 : i32
    return %arg0, %c0_i32, %c0_i32_0 : i32, i32, i32
  }
}

module attributes {stable_mosaic.version = 11 : i64} {
  func.func @_fused_kernel(%arg0: i32, %arg1: i32, %arg2: memref<2x8x128xf32, #tpu.memory_space<vmem>>, %arg3: memref<1x128x384xbf16, #tpu.memory_space<vmem>>, %arg4: memref<1x128x128xbf16, #tpu.memory_space<vmem>>, %arg5: memref<1x128x128xbf16, #tpu.memory_space<vmem>>, %arg6: memref<1x128x128xbf16, #tpu.memory_space<vmem>>, %arg7: memref<1x10x128xf32, #tpu.memory_space<vmem>>, %arg8: memref<128x128xbf16, #tpu.memory_space<vmem>>, %arg9: memref<1x128xf32, #tpu.memory_space<vmem>>, %arg10: memref<128x128xbf16, #tpu.memory_space<vmem>>, %arg11: memref<1x128xf32, #tpu.memory_space<vmem>>, %arg12: memref<2x8x128xf32, #tpu.memory_space<vmem>>, %arg13: memref<16x128xf32, #tpu.memory_space<vmem>>) attributes {dimension_semantics = [#tpu.dimension_semantics<parallel>, #tpu.dimension_semantics<arbitrary>], iteration_bounds = array<i64: 1, 6>, scalar_prefetch = 0 : i64, scratch_operands = 1 : i64, tpu.core_type = #tpu.core_type<tc>, window_params = [{transform_indices = @transform_0, window_bounds = array<i64: 2, 8, 128>}, {transform_indices = @transform_1, window_bounds = array<i64: 1, 128, 384>}, {transform_indices = @transform_2, window_bounds = array<i64: 1, 128, 128>}, {transform_indices = @transform_3, window_bounds = array<i64: 1, 128, 128>}, {transform_indices = @transform_4, window_bounds = array<i64: 1, 128, 128>}, {transform_indices = @transform_5, window_bounds = array<i64: 1, 10, 128>}, {pipeline_mode = #tpu.pipeline_mode<synchronous>, transform_indices = @transform_6, window_bounds = array<i64: 128, 128>}, {pipeline_mode = #tpu.pipeline_mode<synchronous>, transform_indices = @transform_7, window_bounds = array<i64: 1, 128>}, {pipeline_mode = #tpu.pipeline_mode<synchronous>, transform_indices = @transform_8, window_bounds = array<i64: 128, 128>}, {pipeline_mode = #tpu.pipeline_mode<synchronous>, transform_indices = @transform_9, window_bounds = array<i64: 1, 128>}, {transform_indices = @transform_10, window_bounds = array<i64: 2, 8, 128>}]} {
    %c0_i32 = arith.constant 0 : i32
    %0 = arith.cmpi eq, %arg1, %c0_i32 : i32
    %1 = arith.extui %0 : i1 to i32
    %c0_i32_0 = arith.constant 0 : i32
    %2 = arith.cmpi ne, %1, %c0_i32_0 : i32
    scf.if %2 {
      %c0_42 = arith.constant 0 : index
      %c0_43 = arith.constant 0 : index
      %c0_44 = arith.constant 0 : index
      %206 = vector.load %arg2[%c0_42, %c0_43, %c0_44] : memref<2x8x128xf32, #tpu.memory_space<vmem>>, vector<2x8x128xf32>
      %207 = vector.shape_cast %206 : vector<2x8x128xf32> to vector<16x128xf32>
      %c0_45 = arith.constant 0 : index
      %c0_46 = arith.constant 0 : index
      %208 = vector.load %arg13[%c0_45, %c0_46] : memref<16x128xf32, #tpu.memory_space<vmem>>, vector<16x128xf32>
      tpu.vector_store %arg13[%c0_45, %c0_46], %207 {strides = array<i32>} : memref<16x128xf32, #tpu.memory_space<vmem>>, vector<16x128xf32>,
    } else {
    }
    %c0 = arith.constant 0 : index
    %c0_1 = arith.constant 0 : index
    %3 = vector.load %arg13[%c0, %c0_1] : memref<16x128xf32, #tpu.memory_space<vmem>>, vector<16x128xf32>
    %c0_2 = arith.constant 0 : index
    %c0_3 = arith.constant 0 : index
    %c0_4 = arith.constant 0 : index
    %4 = vector.load %arg7[%c0_2, %c0_3, %c0_4] : memref<1x10x128xf32, #tpu.memory_space<vmem>>, vector<1x10x128xf32>
    %5 = vector.shape_cast %4 : vector<1x10x128xf32> to vector<10x128xf32>
    %6 = vector.extract_strided_slice %5 {offsets = [0, 0], sizes = [1, 128], strides = [1, 1]} : vector<10x128xf32> to vector<1x128xf32>
    %7 = vector.extract_strided_slice %5 {offsets = [1, 0], sizes = [1, 128], strides = [1, 1]} : vector<10x128xf32> to vector<1x128xf32>
    %8 = vector.extract_strided_slice %5 {offsets = [2, 0], sizes = [1, 128], strides = [1, 1]} : vector<10x128xf32> to vector<1x128xf32>
    %9 = vector.extract_strided_slice %5 {offsets = [3, 0], sizes = [1, 128], strides = [1, 1]} : vector<10x128xf32> to vector<1x128xf32>
    %10 = vector.extract_strided_slice %5 {offsets = [4, 0], sizes = [1, 128], strides = [1, 1]} : vector<10x128xf32> to vector<1x128xf32>
    %11 = vector.extract_strided_slice %5 {offsets = [5, 0], sizes = [1, 128], strides = [1, 1]} : vector<10x128xf32> to vector<1x128xf32>
    %12 = vector.extract_strided_slice %5 {offsets = [6, 0], sizes = [1, 128], strides = [1, 1]} : vector<10x128xf32> to vector<1x128xf32>
    %13 = vector.extract_strided_slice %5 {offsets = [7, 0], sizes = [1, 128], strides = [1, 1]} : vector<10x128xf32> to vector<1x128xf32>
    %14 = vector.extract_strided_slice %5 {offsets = [8, 0], sizes = [1, 128], strides = [1, 1]} : vector<10x128xf32> to vector<1x128xf32>
    %15 = vector.extract_strided_slice %5 {offsets = [9, 0], sizes = [1, 128], strides = [1, 1]} : vector<10x128xf32> to vector<1x128xf32>
    %16 = arith.truncf %3 : vector<16x128xf32> to vector<16x128xbf16>
    %c0_5 = arith.constant 0 : index
    %c0_6 = arith.constant 0 : index
    %c0_7 = arith.constant 0 : index
    %17 = vector.load %arg3[%c0_5, %c0_6, %c0_7] : memref<1x128x384xbf16, #tpu.memory_space<vmem>>, vector<1x128x384xbf16>
    %18 = vector.shape_cast %17 : vector<1x128x384xbf16> to vector<128x384xbf16>
    %cst = arith.constant dense<0.000000e+00> : vector<16x384xf32>
    %19 = tpu.matmul %16, %18, %cst {dimension_numbers = #tpu.dot_dimension_numbers<[1], [0], [0], [1], [0, 0, 1, 1], [], []>} : vector<16x128xbf16>, vector<128x384xbf16>, vector<16x384xf32> -> vector<16x384xf32>
    %20 = vector.extract_strided_slice %19 {offsets = [0, 0], sizes = [16, 128], strides = [1, 1]} : vector<16x384xf32> to vector<16x128xf32>
    %21 = vector.broadcast %6 : vector<1x128xf32> to vector<16x128xf32>
    %22 = arith.addf %20, %21 : vector<16x128xf32>
    %23 = vector.extract_strided_slice %19 {offsets = [0, 128], sizes = [16, 128], strides = [1, 1]} : vector<16x384xf32> to vector<16x128xf32>
    %24 = vector.broadcast %7 : vector<1x128xf32> to vector<16x128xf32>
    %25 = arith.addf %23, %24 : vector<16x128xf32>
    %26 = vector.extract_strided_slice %19 {offsets = [0, 256], sizes = [16, 128], strides = [1, 1]} : vector<16x384xf32> to vector<16x128xf32>
    %27 = vector.broadcast %8 : vector<1x128xf32> to vector<16x128xf32>
    %28 = arith.addf %26, %27 : vector<16x128xf32>
    %29 = vector.extract_strided_slice %22 {offsets = [0, 0], sizes = [8, 128], strides = [1, 1]} : vector<16x128xf32> to vector<8x128xf32>
    %30 = vector.extract_strided_slice %29 {offsets = [0, 0], sizes = [8, 32], strides = [1, 1]} : vector<8x128xf32> to vector<8x32xf32>
    %31 = vector.extract_strided_slice %29 {offsets = [0, 32], sizes = [8, 32], strides = [1, 1]} : vector<8x128xf32> to vector<8x32xf32>
    %32 = vector.extract_strided_slice %29 {offsets = [0, 64], sizes = [8, 32], strides = [1, 1]} : vector<8x128xf32> to vector<8x32xf32>
    %33 = vector.extract_strided_slice %29 {offsets = [0, 96], sizes = [8, 32], strides = [1, 1]} : vector<8x128xf32> to vector<8x32xf32>
    %34 = vector.shape_cast %30 : vector<8x32xf32> to vector<1x8x32xf32>
    %35 = vector.shape_cast %31 : vector<8x32xf32> to vector<1x8x32xf32>
    %36 = vector.shape_cast %32 : vector<8x32xf32> to vector<1x8x32xf32>
    %37 = vector.shape_cast %33 : vector<8x32xf32> to vector<1x8x32xf32>
    %38 = tpu.concatenate %34, %35, %36, %37 in 0 : vector<1x8x32xf32>, vector<1x8x32xf32>, vector<1x8x32xf32>, vector<1x8x32xf32> -> vector<4x8x32xf32>
    %39 = vector.extract_strided_slice %25 {offsets = [0, 0], sizes = [8, 128], strides = [1, 1]} : vector<16x128xf32> to vector<8x128xf32>
    %40 = vector.extract_strided_slice %39 {offsets = [0, 0], sizes = [8, 32], strides = [1, 1]} : vector<8x128xf32> to vector<8x32xf32>
    %41 = vector.extract_strided_slice %39 {offsets = [0, 32], sizes = [8, 32], strides = [1, 1]} : vector<8x128xf32> to vector<8x32xf32>
    %42 = vector.extract_strided_slice %39 {offsets = [0, 64], sizes = [8, 32], strides = [1, 1]} : vector<8x128xf32> to vector<8x32xf32>
    %43 = vector.extract_strided_slice %39 {offsets = [0, 96], sizes = [8, 32], strides = [1, 1]} : vector<8x128xf32> to vector<8x32xf32>
    %44 = vector.shape_cast %40 : vector<8x32xf32> to vector<1x8x32xf32>
    %45 = vector.shape_cast %41 : vector<8x32xf32> to vector<1x8x32xf32>
    %46 = vector.shape_cast %42 : vector<8x32xf32> to vector<1x8x32xf32>
    %47 = vector.shape_cast %43 : vector<8x32xf32> to vector<1x8x32xf32>
    %48 = tpu.concatenate %44, %45, %46, %47 in 0 : vector<1x8x32xf32>, vector<1x8x32xf32>, vector<1x8x32xf32>, vector<1x8x32xf32> -> vector<4x8x32xf32>
    %49 = vector.extract_strided_slice %28 {offsets = [0, 0], sizes = [8, 128], strides = [1, 1]} : vector<16x128xf32> to vector<8x128xf32>
    %50 = vector.extract_strided_slice %49 {offsets = [0, 0], sizes = [8, 32], strides = [1, 1]} : vector<8x128xf32> to vector<8x32xf32>
    %51 = vector.extract_strided_slice %49 {offsets = [0, 32], sizes = [8, 32], strides = [1, 1]} : vector<8x128xf32> to vector<8x32xf32>
    %52 = vector.extract_strided_slice %49 {offsets = [0, 64], sizes = [8, 32], strides = [1, 1]} : vector<8x128xf32> to vector<8x32xf32>
    %53 = vector.extract_strided_slice %49 {offsets = [0, 96], sizes = [8, 32], strides = [1, 1]} : vector<8x128xf32> to vector<8x32xf32>
    %54 = vector.shape_cast %50 : vector<8x32xf32> to vector<1x8x32xf32>
    %55 = vector.shape_cast %51 : vector<8x32xf32> to vector<1x8x32xf32>
    %56 = vector.shape_cast %52 : vector<8x32xf32> to vector<1x8x32xf32>
    %57 = vector.shape_cast %53 : vector<8x32xf32> to vector<1x8x32xf32>
    %58 = tpu.concatenate %54, %55, %56, %57 in 0 : vector<1x8x32xf32>, vector<1x8x32xf32>, vector<1x8x32xf32>, vector<1x8x32xf32> -> vector<4x8x32xf32>
    %59 = arith.truncf %38 : vector<4x8x32xf32> to vector<4x8x32xbf16>
    %60 = arith.truncf %48 : vector<4x8x32xf32> to vector<4x8x32xbf16>
    "tpu.trace_start"() <{level = 10 : i32, message = "hqd,hkd->hqk"}> : () -> ()
    %cst_8 = arith.constant dense<0.000000e+00> : vector<4x8x8xf32>
    %61 = tpu.matmul %59, %60, %cst_8 {dimension_numbers = #tpu.dot_dimension_numbers<[2], [2], [1], [1], [0, 0, 0, 1, 1, 1], [0], [0]>} : vector<4x8x32xbf16>, vector<4x8x32xbf16>, vector<4x8x8xf32> -> vector<4x8x8xf32>
    "tpu.trace_stop"() : () -> ()
    %cst_9 = arith.constant dense<0xFF800000> : vector<4x8xf32>
    %62 = vector.multi_reduction <maximumf>, %61, %cst_9 [2] : vector<4x8x8xf32> to vector<4x8xf32>
    %63 = vector.shape_cast %62 : vector<4x8xf32> to vector<4x8x1xf32>
    %64 = vector.broadcast %63 : vector<4x8x1xf32> to vector<4x8x8xf32>
    %65 = arith.subf %61, %64 : vector<4x8x8xf32>
    %66 = math.exp %65 : vector<4x8x8xf32>
    %cst_10 = arith.constant dense<0.000000e+00> : vector<4x8xf32>
    %67 = vector.multi_reduction <add>, %66, %cst_10 [2] : vector<4x8x8xf32> to vector<4x8xf32>
    %68 = vector.shape_cast %67 : vector<4x8xf32> to vector<4x8x1xf32>
    %69 = tpu.reciprocal %68 {approx = true} : vector<4x8x1xf32> -> vector<4x8x1xf32>
    %70 = vector.broadcast %69 : vector<4x8x1xf32> to vector<4x8x8xf32>
    %71 = arith.mulf %66, %70 : vector<4x8x8xf32>
    %72 = arith.truncf %71 : vector<4x8x8xf32> to vector<4x8x8xbf16>
    %73 = arith.truncf %58 : vector<4x8x32xf32> to vector<4x8x32xbf16>
    "tpu.trace_start"() <{level = 10 : i32, message = "hqk,hkd->hqd"}> : () -> ()
    %cst_11 = arith.constant dense<0.000000e+00> : vector<4x8x32xf32>
    %74 = tpu.matmul %72, %73, %cst_11 {dimension_numbers = #tpu.dot_dimension_numbers<[2], [1], [1], [2], [0, 0, 0, 1, 1, 2], [0], [0]>} : vector<4x8x8xbf16>, vector<4x8x32xbf16>, vector<4x8x32xf32> -> vector<4x8x32xf32>
    "tpu.trace_stop"() : () -> ()
    %75 = vector.extract_strided_slice %74 {offsets = [0, 0, 0], sizes = [1, 8, 32], strides = [1, 1, 1]} : vector<4x8x32xf32> to vector<1x8x32xf32>
    %76 = vector.shape_cast %75 : vector<1x8x32xf32> to vector<8x32xf32>
    %77 = vector.extract_strided_slice %74 {offsets = [1, 0, 0], sizes = [1, 8, 32], strides = [1, 1, 1]} : vector<4x8x32xf32> to vector<1x8x32xf32>
    %78 = vector.shape_cast %77 : vector<1x8x32xf32> to vector<8x32xf32>
    %79 = vector.extract_strided_slice %74 {offsets = [2, 0, 0], sizes = [1, 8, 32], strides = [1, 1, 1]} : vector<4x8x32xf32> to vector<1x8x32xf32>
    %80 = vector.shape_cast %79 : vector<1x8x32xf32> to vector<8x32xf32>
    %81 = vector.extract_strided_slice %74 {offsets = [3, 0, 0], sizes = [1, 8, 32], strides = [1, 1, 1]} : vector<4x8x32xf32> to vector<1x8x32xf32>
    %82 = vector.shape_cast %81 : vector<1x8x32xf32> to vector<8x32xf32>
    %83 = tpu.concatenate %76, %78, %80, %82 in 1 : vector<8x32xf32>, vector<8x32xf32>, vector<8x32xf32>, vector<8x32xf32> -> vector<8x128xf32>
    %84 = vector.extract_strided_slice %22 {offsets = [8, 0], sizes = [8, 128], strides = [1, 1]} : vector<16x128xf32> to vector<8x128xf32>
    %85 = vector.extract_strided_slice %84 {offsets = [0, 0], sizes = [8, 32], strides = [1, 1]} : vector<8x128xf32> to vector<8x32xf32>
    %86 = vector.extract_strided_slice %84 {offsets = [0, 32], sizes = [8, 32], strides = [1, 1]} : vector<8x128xf32> to vector<8x32xf32>
    %87 = vector.extract_strided_slice %84 {offsets = [0, 64], sizes = [8, 32], strides = [1, 1]} : vector<8x128xf32> to vector<8x32xf32>
    %88 = vector.extract_strided_slice %84 {offsets = [0, 96], sizes = [8, 32], strides = [1, 1]} : vector<8x128xf32> to vector<8x32xf32>
    %89 = vector.shape_cast %85 : vector<8x32xf32> to vector<1x8x32xf32>
    %90 = vector.shape_cast %86 : vector<8x32xf32> to vector<1x8x32xf32>
    %91 = vector.shape_cast %87 : vector<8x32xf32> to vector<1x8x32xf32>
    %92 = vector.shape_cast %88 : vector<8x32xf32> to vector<1x8x32xf32>
    %93 = tpu.concatenate %89, %90, %91, %92 in 0 : vector<1x8x32xf32>, vector<1x8x32xf32>, vector<1x8x32xf32>, vector<1x8x32xf32> -> vector<4x8x32xf32>
    %94 = vector.extract_strided_slice %25 {offsets = [8, 0], sizes = [8, 128], strides = [1, 1]} : vector<16x128xf32> to vector<8x128xf32>
    %95 = vector.extract_strided_slice %94 {offsets = [0, 0], sizes = [8, 32], strides = [1, 1]} : vector<8x128xf32> to vector<8x32xf32>
    %96 = vector.extract_strided_slice %94 {offsets = [0, 32], sizes = [8, 32], strides = [1, 1]} : vector<8x128xf32> to vector<8x32xf32>
    %97 = vector.extract_strided_slice %94 {offsets = [0, 64], sizes = [8, 32], strides = [1, 1]} : vector<8x128xf32> to vector<8x32xf32>
    %98 = vector.extract_strided_slice %94 {offsets = [0, 96], sizes = [8, 32], strides = [1, 1]} : vector<8x128xf32> to vector<8x32xf32>
    %99 = vector.shape_cast %95 : vector<8x32xf32> to vector<1x8x32xf32>
    %100 = vector.shape_cast %96 : vector<8x32xf32> to vector<1x8x32xf32>
    %101 = vector.shape_cast %97 : vector<8x32xf32> to vector<1x8x32xf32>
    %102 = vector.shape_cast %98 : vector<8x32xf32> to vector<1x8x32xf32>
    %103 = tpu.concatenate %99, %100, %101, %102 in 0 : vector<1x8x32xf32>, vector<1x8x32xf32>, vector<1x8x32xf32>, vector<1x8x32xf32> -> vector<4x8x32xf32>
    %104 = vector.extract_strided_slice %28 {offsets = [8, 0], sizes = [8, 128], strides = [1, 1]} : vector<16x128xf32> to vector<8x128xf32>
    %105 = vector.extract_strided_slice %104 {offsets = [0, 0], sizes = [8, 32], strides = [1, 1]} : vector<8x128xf32> to vector<8x32xf32>
    %106 = vector.extract_strided_slice %104 {offsets = [0, 32], sizes = [8, 32], strides = [1, 1]} : vector<8x128xf32> to vector<8x32xf32>
    %107 = vector.extract_strided_slice %104 {offsets = [0, 64], sizes = [8, 32], strides = [1, 1]} : vector<8x128xf32> to vector<8x32xf32>
    %108 = vector.extract_strided_slice %104 {offsets = [0, 96], sizes = [8, 32], strides = [1, 1]} : vector<8x128xf32> to vector<8x32xf32>
    %109 = vector.shape_cast %105 : vector<8x32xf32> to vector<1x8x32xf32>
    %110 = vector.shape_cast %106 : vector<8x32xf32> to vector<1x8x32xf32>
    %111 = vector.shape_cast %107 : vector<8x32xf32> to vector<1x8x32xf32>
    %112 = vector.shape_cast %108 : vector<8x32xf32> to vector<1x8x32xf32>
    %113 = tpu.concatenate %109, %110, %111, %112 in 0 : vector<1x8x32xf32>, vector<1x8x32xf32>, vector<1x8x32xf32>, vector<1x8x32xf32> -> vector<4x8x32xf32>
    %114 = arith.truncf %93 : vector<4x8x32xf32> to vector<4x8x32xbf16>
    %115 = arith.truncf %103 : vector<4x8x32xf32> to vector<4x8x32xbf16>
    "tpu.trace_start"() <{level = 10 : i32, message = "hqd,hkd->hqk"}> : () -> ()
    %cst_12 = arith.constant dense<0.000000e+00> : vector<4x8x8xf32>
    %116 = tpu.matmul %114, %115, %cst_12 {dimension_numbers = #tpu.dot_dimension_numbers<[2], [2], [1], [1], [0, 0, 0, 1, 1, 1], [0], [0]>} : vector<4x8x32xbf16>, vector<4x8x32xbf16>, vector<4x8x8xf32> -> vector<4x8x8xf32>
    "tpu.trace_stop"() : () -> ()
    %cst_13 = arith.constant dense<0xFF800000> : vector<4x8xf32>
    %117 = vector.multi_reduction <maximumf>, %116, %cst_13 [2] : vector<4x8x8xf32> to vector<4x8xf32>
    %118 = vector.shape_cast %117 : vector<4x8xf32> to vector<4x8x1xf32>
    %119 = vector.broadcast %118 : vector<4x8x1xf32> to vector<4x8x8xf32>
    %120 = arith.subf %116, %119 : vector<4x8x8xf32>
    %121 = math.exp %120 : vector<4x8x8xf32>
    %cst_14 = arith.constant dense<0.000000e+00> : vector<4x8xf32>
    %122 = vector.multi_reduction <add>, %121, %cst_14 [2] : vector<4x8x8xf32> to vector<4x8xf32>
    %123 = vector.shape_cast %122 : vector<4x8xf32> to vector<4x8x1xf32>
    %124 = tpu.reciprocal %123 {approx = true} : vector<4x8x1xf32> -> vector<4x8x1xf32>
    %125 = vector.broadcast %124 : vector<4x8x1xf32> to vector<4x8x8xf32>
    %126 = arith.mulf %121, %125 : vector<4x8x8xf32>
    %127 = arith.truncf %126 : vector<4x8x8xf32> to vector<4x8x8xbf16>
    %128 = arith.truncf %113 : vector<4x8x32xf32> to vector<4x8x32xbf16>
    "tpu.trace_start"() <{level = 10 : i32, message = "hqk,hkd->hqd"}> : () -> ()
    %cst_15 = arith.constant dense<0.000000e+00> : vector<4x8x32xf32>
    %129 = tpu.matmul %127, %128, %cst_15 {dimension_numbers = #tpu.dot_dimension_numbers<[2], [1], [1], [2], [0, 0, 0, 1, 1, 2], [0], [0]>} : vector<4x8x8xbf16>, vector<4x8x32xbf16>, vector<4x8x32xf32> -> vector<4x8x32xf32>
    "tpu.trace_stop"() : () -> ()
    %130 = vector.extract_strided_slice %129 {offsets = [0, 0, 0], sizes = [1, 8, 32], strides = [1, 1, 1]} : vector<4x8x32xf32> to vector<1x8x32xf32>
    %131 = vector.shape_cast %130 : vector<1x8x32xf32> to vector<8x32xf32>
    %132 = vector.extract_strided_slice %129 {offsets = [1, 0, 0], sizes = [1, 8, 32], strides = [1, 1, 1]} : vector<4x8x32xf32> to vector<1x8x32xf32>
    %133 = vector.shape_cast %132 : vector<1x8x32xf32> to vector<8x32xf32>
    %134 = vector.extract_strided_slice %129 {offsets = [2, 0, 0], sizes = [1, 8, 32], strides = [1, 1, 1]} : vector<4x8x32xf32> to vector<1x8x32xf32>
    %135 = vector.shape_cast %134 : vector<1x8x32xf32> to vector<8x32xf32>
    %136 = vector.extract_strided_slice %129 {offsets = [3, 0, 0], sizes = [1, 8, 32], strides = [1, 1, 1]} : vector<4x8x32xf32> to vector<1x8x32xf32>
    %137 = vector.shape_cast %136 : vector<1x8x32xf32> to vector<8x32xf32>
    %138 = tpu.concatenate %131, %133, %135, %137 in 1 : vector<8x32xf32>, vector<8x32xf32>, vector<8x32xf32>, vector<8x32xf32> -> vector<8x128xf32>
    %139 = tpu.concatenate %83, %138 in 0 : vector<8x128xf32>, vector<8x128xf32> -> vector<16x128xf32>
    %140 = arith.truncf %139 : vector<16x128xf32> to vector<16x128xbf16>
    %c0_16 = arith.constant 0 : index
    %c0_17 = arith.constant 0 : index
    %c0_18 = arith.constant 0 : index
    %141 = vector.load %arg4[%c0_16, %c0_17, %c0_18] : memref<1x128x128xbf16, #tpu.memory_space<vmem>>, vector<1x128x128xbf16>
    %142 = vector.shape_cast %141 : vector<1x128x128xbf16> to vector<128x128xbf16>
    %cst_19 = arith.constant dense<0.000000e+00> : vector<16x128xf32>
    %143 = tpu.matmul %140, %142, %cst_19 {dimension_numbers = #tpu.dot_dimension_numbers<[1], [0], [0], [1], [0, 0, 1, 1], [], []>} : vector<16x128xbf16>, vector<128x128xbf16>, vector<16x128xf32> -> vector<16x128xf32>
    %144 = vector.broadcast %9 : vector<1x128xf32> to vector<16x128xf32>
    %145 = arith.addf %143, %144 : vector<16x128xf32>
    %146 = arith.addf %3, %145 : vector<16x128xf32>
    %cst_20 = arith.constant dense<0.000000e+00> : vector<16xf32>
    %147 = vector.multi_reduction <add>, %146, %cst_20 [1] : vector<16x128xf32> to vector<16xf32>
    %148 = vector.shape_cast %147 : vector<16xf32> to vector<16x1xf32>
    %cst_21 = arith.constant 1.280000e+02 : f32
    %149 = vector.broadcast %cst_21 : f32 to vector<16x1xf32>
    %150 = arith.divf %148, %149 : vector<16x1xf32>
    %151 = vector.broadcast %150 : vector<16x1xf32> to vector<16x128xf32>
    %152 = arith.subf %146, %151 : vector<16x128xf32>
    %153 = arith.mulf %152, %152 : vector<16x128xf32>
    %cst_22 = arith.constant dense<0.000000e+00> : vector<16xf32>
    %154 = vector.multi_reduction <add>, %153, %cst_22 [1] : vector<16x128xf32> to vector<16xf32>
    %155 = vector.shape_cast %154 : vector<16xf32> to vector<16x1xf32>
    %cst_23 = arith.constant 1.280000e+02 : f32
    %156 = vector.broadcast %cst_23 : f32 to vector<16x1xf32>
    %157 = arith.divf %155, %156 : vector<16x1xf32>
    %cst_24 = arith.constant 9.99999974E-6 : f32
    %158 = vector.broadcast %cst_24 : f32 to vector<16x1xf32>
    %159 = arith.addf %157, %158 : vector<16x1xf32>
    %160 = math.rsqrt %159 : vector<16x1xf32>
    %161 = vector.broadcast %160 : vector<16x1xf32> to vector<16x128xf32>
    %162 = arith.mulf %152, %161 : vector<16x128xf32>
    %163 = vector.broadcast %10 : vector<1x128xf32> to vector<16x128xf32>
    %164 = arith.mulf %162, %163 : vector<16x128xf32>
    %165 = vector.broadcast %11 : vector<1x128xf32> to vector<16x128xf32>
    %166 = arith.addf %164, %165 : vector<16x128xf32>
    %167 = arith.truncf %166 : vector<16x128xf32> to vector<16x128xbf16>
    %c0_25 = arith.constant 0 : index
    %c0_26 = arith.constant 0 : index
    %c0_27 = arith.constant 0 : index
    %168 = vector.load %arg5[%c0_25, %c0_26, %c0_27] : memref<1x128x128xbf16, #tpu.memory_space<vmem>>, vector<1x128x128xbf16>
    %169 = vector.shape_cast %168 : vector<1x128x128xbf16> to vector<128x128xbf16>
    %cst_28 = arith.constant dense<0.000000e+00> : vector<16x128xf32>
    %170 = tpu.matmul %167, %169, %cst_28 {dimension_numbers = #tpu.dot_dimension_numbers<[1], [0], [0], [1], [0, 0, 1, 1], [], []>} : vector<16x128xbf16>, vector<128x128xbf16>, vector<16x128xf32> -> vector<16x128xf32>
    %171 = vector.broadcast %12 : vector<1x128xf32> to vector<16x128xf32>
    %172 = arith.addf %170, %171 : vector<16x128xf32>
    %cst_29 = arith.constant 0.000000e+00 : f32
    %173 = vector.broadcast %cst_29 : f32 to vector<16x128xf32>
    %174 = arith.maximumf %172, %173 : vector<16x128xf32>
    %175 = arith.truncf %174 : vector<16x128xf32> to vector<16x128xbf16>
    %c0_30 = arith.constant 0 : index
    %c0_31 = arith.constant 0 : index
    %c0_32 = arith.constant 0 : index
    %176 = vector.load %arg6[%c0_30, %c0_31, %c0_32] : memref<1x128x128xbf16, #tpu.memory_space<vmem>>, vector<1x128x128xbf16>
    %177 = vector.shape_cast %176 : vector<1x128x128xbf16> to vector<128x128xbf16>
    %cst_33 = arith.constant dense<0.000000e+00> : vector<16x128xf32>
    %178 = tpu.matmul %175, %177, %cst_33 {dimension_numbers = #tpu.dot_dimension_numbers<[1], [0], [0], [1], [0, 0, 1, 1], [], []>} : vector<16x128xbf16>, vector<128x128xbf16>, vector<16x128xf32> -> vector<16x128xf32>
    %179 = vector.broadcast %13 : vector<1x128xf32> to vector<16x128xf32>
    %180 = arith.addf %178, %179 : vector<16x128xf32>
    %181 = arith.addf %166, %180 : vector<16x128xf32>
    %cst_34 = arith.constant dense<0.000000e+00> : vector<16xf32>
    %182 = vector.multi_reduction <add>, %181, %cst_34 [1] : vector<16x128xf32> to vector<16xf32>
    %183 = vector.shape_cast %182 : vector<16xf32> to vector<16x1xf32>
    %cst_35 = arith.constant 1.280000e+02 : f32
    %184 = vector.broadcast %cst_35 : f32 to vector<16x1xf32>
    %185 = arith.divf %183, %184 : vector<16x1xf32>
    %186 = vector.broadcast %185 : vector<16x1xf32> to vector<16x128xf32>
    %187 = arith.subf %181, %186 : vector<16x128xf32>
    %188 = arith.mulf %187, %187 : vector<16x128xf32>
    %cst_36 = arith.constant dense<0.000000e+00> : vector<16xf32>
    %189 = vector.multi_reduction <add>, %188, %cst_36 [1] : vector<16x128xf32> to vector<16xf32>
    %190 = vector.shape_cast %189 : vector<16xf32> to vector<16x1xf32>
    %cst_37 = arith.constant 1.280000e+02 : f32
    %191 = vector.broadcast %cst_37 : f32 to vector<16x1xf32>
    %192 = arith.divf %190, %191 : vector<16x1xf32>
    %cst_38 = arith.constant 9.99999974E-6 : f32
    %193 = vector.broadcast %cst_38 : f32 to vector<16x1xf32>
    %194 = arith.addf %192, %193 : vector<16x1xf32>
    %195 = math.rsqrt %194 : vector<16x1xf32>
    %196 = vector.broadcast %195 : vector<16x1xf32> to vector<16x128xf32>
    %197 = arith.mulf %187, %196 : vector<16x128xf32>
    %198 = vector.broadcast %14 : vector<1x128xf32> to vector<16x128xf32>
    %199 = arith.mulf %197, %198 : vector<16x128xf32>
    %200 = vector.broadcast %15 : vector<1x128xf32> to vector<16x128xf32>
    %201 = arith.addf %199, %200 : vector<16x128xf32>
    %c0_39 = arith.constant 0 : index
    %c0_40 = arith.constant 0 : index
    %202 = vector.load %arg13[%c0_39, %c0_40] : memref<16x128xf32, #tpu.memory_space<vmem>>, vector<16x128xf32>
    tpu.vector_store %arg13[%c0_39, %c0_40], %201 {strides = array<i32>} : memref<16x128xf32, #tpu.memory_space<vmem>>, vector<16x128xf32>,
    %c5_i32 = arith.constant 5 : i32
    %203 = arith.cmpi eq, %arg1, %c5_i32 : i32
    %204 = arith.extui %203 : i1 to i32
    %c0_i32_41 = arith.constant 0 : i32
    %205 = arith.cmpi ne, %204, %c0_i32_41 : i32
    scf.if %205 {
      %206 = arith.truncf %201 : vector<16x128xf32> to vector<16x128xbf16>
      %c0_42 = arith.constant 0 : index
      %c0_43 = arith.constant 0 : index
      %207 = vector.load %arg8[%c0_42, %c0_43] : memref<128x128xbf16, #tpu.memory_space<vmem>>, vector<128x128xbf16>
      %cst_44 = arith.constant dense<0.000000e+00> : vector<16x128xf32>
      %208 = tpu.matmul %206, %207, %cst_44 {dimension_numbers = #tpu.dot_dimension_numbers<[1], [0], [0], [1], [0, 0, 1, 1], [], []>} : vector<16x128xbf16>, vector<128x128xbf16>, vector<16x128xf32> -> vector<16x128xf32>
      %c0_45 = arith.constant 0 : index
      %c0_46 = arith.constant 0 : index
      %209 = vector.load %arg9[%c0_45, %c0_46] : memref<1x128xf32, #tpu.memory_space<vmem>>, vector<1x128xf32>
      %210 = vector.broadcast %209 : vector<1x128xf32> to vector<16x128xf32>
      %211 = arith.addf %208, %210 : vector<16x128xf32>
      %cst_47 = arith.constant 0.000000e+00 : f32
      %212 = vector.broadcast %cst_47 : f32 to vector<16x128xf32>
      %213 = arith.maximumf %211, %212 : vector<16x128xf32>
      %214 = arith.truncf %213 : vector<16x128xf32> to vector<16x128xbf16>
      %c0_48 = arith.constant 0 : index
      %c0_49 = arith.constant 0 : index
      %215 = vector.load %arg10[%c0_48, %c0_49] : memref<128x128xbf16, #tpu.memory_space<vmem>>, vector<128x128xbf16>
      %cst_50 = arith.constant dense<0.000000e+00> : vector<16x128xf32>
      %216 = tpu.matmul %214, %215, %cst_50 {dimension_numbers = #tpu.dot_dimension_numbers<[1], [0], [0], [1], [0, 0, 1, 1], [], []>} : vector<16x128xbf16>, vector<128x128xbf16>, vector<16x128xf32> -> vector<16x128xf32>
      %c0_51 = arith.constant 0 : index
      %c0_52 = arith.constant 0 : index
      %217 = vector.load %arg11[%c0_51, %c0_52] : memref<1x128xf32, #tpu.memory_space<vmem>>, vector<1x128xf32>
      %218 = vector.broadcast %217 : vector<1x128xf32> to vector<16x128xf32>
      %219 = arith.addf %216, %218 : vector<16x128xf32>
      %220 = vector.shape_cast %219 : vector<16x128xf32> to vector<2x8x128xf32>
      %c0_53 = arith.constant 0 : index
      %c0_54 = arith.constant 0 : index
      %c0_55 = arith.constant 0 : index
      %221 = vector.load %arg12[%c0_53, %c0_54, %c0_55] : memref<2x8x128xf32, #tpu.memory_space<vmem>>, vector<2x8x128xf32>
      tpu.vector_store %arg12[%c0_53, %c0_54, %c0_55], %220 {strides = array<i32>} : memref<2x8x128xf32, #tpu.memory_space<vmem>>, vector<2x8x128xf32>,
    } else {
    }
    return
  }
  func.func @transform_0(%arg0: i32, %arg1: i32) -> (i32, i32, i32) {
    %c0_i32 = arith.constant 0 : i32
    %c0_i32_0 = arith.constant 0 : i32
    %c0_i32_1 = arith.constant 0 : i32
    return %arg0, %c0_i32, %c0_i32_0 : i32, i32, i32
  }
  func.func @transform_1(%arg0: i32, %arg1: i32) -> (i32, i32, i32) {
    %c0_i32 = arith.constant 0 : i32
    %c0_i32_0 = arith.constant 0 : i32
    %c0_i32_1 = arith.constant 0 : i32
    return %arg1, %c0_i32, %c0_i32_0 : i32, i32, i32
  }
  func.func @transform_2(%arg0: i32, %arg1: i32) -> (i32, i32, i32) {
    %c0_i32 = arith.constant 0 : i32
    %c0_i32_0 = arith.constant 0 : i32
    %c0_i32_1 = arith.constant 0 : i32
    return %arg1, %c0_i32, %c0_i32_0 : i32, i32, i32
  }
  func.func @transform_3(%arg0: i32, %arg1: i32) -> (i32, i32, i32) {
    %c0_i32 = arith.constant 0 : i32
    %c0_i32_0 = arith.constant 0 : i32
    %c0_i32_1 = arith.constant 0 : i32
    return %arg1, %c0_i32, %c0_i32_0 : i32, i32, i32
  }
  func.func @transform_4(%arg0: i32, %arg1: i32) -> (i32, i32, i32) {
    %c0_i32 = arith.constant 0 : i32
    %c0_i32_0 = arith.constant 0 : i32
    %c0_i32_1 = arith.constant 0 : i32
    return %arg1, %c0_i32, %c0_i32_0 : i32, i32, i32
  }
  func.func @transform_5(%arg0: i32, %arg1: i32) -> (i32, i32, i32) {
    %c0_i32 = arith.constant 0 : i32
    %c0_i32_0 = arith.constant 0 : i32
    %c0_i32_1 = arith.constant 0 : i32
    return %arg1, %c0_i32, %c0_i32_0 : i32, i32, i32
  }
  func.func @transform_6(%arg0: i32, %arg1: i32) -> (i32, i32) {
    %c0_i32 = arith.constant 0 : i32
    %c0_i32_0 = arith.constant 0 : i32
    %c0_i32_1 = arith.constant 0 : i32
    return %c0_i32, %c0_i32_0 : i32, i32
  }
  func.func @transform_7(%arg0: i32, %arg1: i32) -> (i32, i32) {
    %c0_i32 = arith.constant 0 : i32
    %c0_i32_0 = arith.constant 0 : i32
    %c0_i32_1 = arith.constant 0 : i32
    return %c0_i32, %c0_i32_0 : i32, i32
  }
  func.func @transform_8(%arg0: i32, %arg1: i32) -> (i32, i32) {
    %c0_i32 = arith.constant 0 : i32
    %c0_i32_0 = arith.constant 0 : i32
    %c0_i32_1 = arith.constant 0 : i32
    return %c0_i32, %c0_i32_0 : i32, i32
  }
  func.func @transform_9(%arg0: i32, %arg1: i32) -> (i32, i32) {
    %c0_i32 = arith.constant 0 : i32
    %c0_i32_0 = arith.constant 0 : i32
    %c0_i32_1 = arith.constant 0 : i32
    return %c0_i32, %c0_i32_0 : i32, i32
  }
  func.func @transform_10(%arg0: i32, %arg1: i32) -> (i32, i32, i32) {
    %c0_i32 = arith.constant 0 : i32
    %c0_i32_0 = arith.constant 0 : i32
    %c0_i32_1 = arith.constant 0 : i32
    return %arg0, %c0_i32, %c0_i32_0 : i32, i32, i32
  }
}

</mosaic_0001>

<llo_original>
// kernel: transformer_forward.1
$region0: #{transformer_forward.1}
  #allocation0 [shape = 'u32[]', space=smem, size = 0x4, offset = 0x4, fixed_abs, tag = 'smem constant byte address 0x4 - core index']
  #allocation1 [shape = 'u32[144,128]{1,0:T(1,128)}', space=vmem, size = 0x12000, scoped, tag = 'internal scratch']
  #allocation2 [shape = 'f32[16,128]{1,0:T(8,128)}', space=vmem, size = 0x2000, scoped, tag = 'scratch operand']
  %s0 = inlined_call_operand.vmem [shape: f32[2,8,128], index: 0, kind: input, shape index: {}]
  %s1 = inlined_call_operand.vmem [shape: bf16[6,128,384], index: 1, kind: input, shape index: {}]
  %s2 = inlined_call_operand.vmem [shape: bf16[6,128,128], index: 2, kind: input, shape index: {}]
  %s3 = inlined_call_operand.vmem [shape: bf16[6,128,128], index: 3, kind: input, shape index: {}]
  %s4 = inlined_call_operand.vmem [shape: bf16[6,128,128], index: 4, kind: input, shape index: {}]
  %s5 = inlined_call_operand.vmem [shape: f32[6,10,128], index: 5, kind: input, shape index: {}]
  %s6 = inlined_call_operand.vmem [shape: bf16[128,128], index: 6, kind: input, shape index: {}]
  %s7 = inlined_call_operand.vmem [shape: f32[1,128], index: 7, kind: input, shape index: {}]
  %s8 = inlined_call_operand.vmem [shape: bf16[128,128], index: 8, kind: input, shape index: {}]
  %s9 = inlined_call_operand.vmem [shape: f32[1,128], index: 9, kind: input, shape index: {}]
  %s10 = inlined_call_operand.hbm [shape: f32[2,8,128], index: 10, kind: output, shape index: {}]
  %s11 = sld [smem:[#allocation0]]
  $region81: #{transformer_forward.1} parent=0
    _
  %s13 = ssub.s32 1, %s11
  %s14 = scalar_select 0, %s13, %s11
  $region1: #{transformer_forward.1} parent=0
    #allocation3 [shape = 'u8[8192]{0}', space=vmem, size = 0x2000, scoped, tag = 'output window, operand 0, single buffered']
    #allocation4 [shape = 's32[2]{0}', space=sflag, size = 0x8, scoped, tag = 'scoped memory for transformer_forward.1']
    %15 = vsyncpa [#allocation4], 0
    loop: start=0, step=1, limit=8
    $region2: #{transformer_forward.1} parent=1 // loop_pre_header
      _
    $region3: #{transformer_forward.1} parent=1 // loop_header
      %s17 = sphi 0, %s21
      %p18 = scmp.ge.s32.totalorder %s17, 8
      %s24 = sphi 0, %s36
      %s25 = sphi 0, %s32
      %s26 = sphi 0, %s24
      %s27 = sphi 0, %s25
      %s28 = sphi 0, %s26
      %s29 = sphi 0, %s27
      %s39 = sphi 0, %s41
      %s42 = sphi 0, %s39
      %s43 = sphi 0, %s42
      %s59 = sphi 0, %s43
      %s65 = sphi 0, %s67
      %s68 = sphi 0, %s65
      %s69 = sphi 0, %s68
      %s85 = sphi 0, %s69
      %s91 = sphi 0, %s93
      %s94 = sphi 0, %s91
      %s95 = sphi 0, %s94
      %s111 = sphi 0, %s95
      %s117 = sphi 0, %s119
      %s120 = sphi 0, %s117
      %s121 = sphi 0, %s120
      %s137 = sphi 0, %s121
      %s143 = sphi 0, %s145
      %s146 = sphi 0, %s143
      %s147 = sphi 0, %s146
      %s163 = sphi 0, %s147
      %s169 = sphi 0, %s171
      %s172 = sphi 0, %s169
      %s173 = sphi 0, %s172
      %s189 = sphi 0, %s173
      %s193 = sphi 0, %s193
      %s195 = sphi 0, %s193
      %s196 = sphi 0, %s195
      %s210 = sphi 0, %s196
      %s214 = sphi 0, %s214
      %s216 = sphi 0, %s214
      %s217 = sphi 0, %s216
      %s231 = sphi 0, %s217
      %s235 = sphi 0, %s235
      %s237 = sphi 0, %s235
      %s238 = sphi 0, %s237
      %s252 = sphi 0, %s238
      %s256 = sphi 0, %s256
      %s258 = sphi 0, %s256
      %s259 = sphi 0, %s258
      %s273 = sphi 0, %s259
      %s279 = sphi 0, %s281
      %s282 = sphi 0, %s279
      %s283 = sphi 0, %s282
      %s299 = sphi 0, %s283
    $region4: #{transformer_forward.1} parent=1 // loop_header_branch
      %20 = sbr.rel (%p18) target = $region8
    $region5: #{transformer_forward.1} parent=1 // loop_body
      %s22 = ssub.s32 %s17, 1
      %s23 = ssub.s32 %s17, 2
      %s30 = sadd.s32 1, %s25
      %p31 = scmp.ge.s32.totalorder %s30, 6
      %s32 = scalar_select %p31, 0, %s30
      %s33 = sadd.s32 1, %s24
      %s34 = scalar_select %p31, %s33, %s24
      %p35 = scmp.ge.s32.totalorder %s34, 1
      %s36 = scalar_select %p35, 0, %s34
      %s37 = ssub.s32 %s24, %s36
      %p38 = scmp.eq.s32.totalorder %s37, 0
      %s40 = sadd.s32 %s39, 1
      %s41 = scalar_select %p38, %s39, %s40
      %p44 = pneg %p38
      %p45 = scmp.eq.s32.totalorder %s17, 5
      %p46 = por %p44, %p45
      %p47 = scmp.ne.s32.totalorder %s39, %s42
      %p48 = scmp.eq.s32.totalorder %s17, 0
      %p49 = por %p47, %p48
      %p50 = scmp.ne.s32.totalorder %s39, %s42
      %p51 = scmp.eq.s32.totalorder %s22, 5
      %p52 = por %p50, %p51
      %p53 = scmp.ne.s32.totalorder %s42, %s43
      %p54 = scmp.eq.s32.totalorder %s22, 0
      %p55 = por %p53, %p54
      %p56 = scmp.ne.s32.totalorder %s42, %s43
      %p57 = scmp.eq.s32.totalorder %s23, 5
      %p58 = por %p56, %p57
      %p60 = scmp.ne.s32.totalorder %s43, %s59
      %p61 = scmp.eq.s32.totalorder %s23, 0
      %p62 = por %p60, %p61
      %s63 = ssub.s32 %s25, %s32
      %p64 = scmp.eq.s32.totalorder %s63, 0
      %s66 = sadd.s32 %s65, 1
      %s67 = scalar_select %p64, %s65, %s66
      %p70 = pneg %p64
      %p71 = scmp.eq.s32.totalorder %s17, 5
      %p72 = por %p70, %p71
      %p73 = scmp.ne.s32.totalorder %s65, %s68
      %p74 = scmp.eq.s32.totalorder %s17, 0
      %p75 = por %p73, %p74
      %p76 = scmp.ne.s32.totalorder %s65, %s68
      %p77 = scmp.eq.s32.totalorder %s22, 5
      %p78 = por %p76, %p77
      %p79 = scmp.ne.s32.totalorder %s68, %s69
      %p80 = scmp.eq.s32.totalorder %s22, 0
      %p81 = por %p79, %p80
      %p82 = scmp.ne.s32.totalorder %s68, %s69
      %p83 = scmp.eq.s32.totalorder %s23, 5
      %p84 = por %p82, %p83
      %p86 = scmp.ne.s32.totalorder %s69, %s85
      %p87 = scmp.eq.s32.totalorder %s23, 0
      %p88 = por %p86, %p87
      %s89 = ssub.s32 %s25, %s32
      %p90 = scmp.eq.s32.totalorder %s89, 0
      %s92 = sadd.s32 %s91, 1
      %s93 = scalar_select %p90, %s91, %s92
      %p96 = pneg %p90
      %p97 = scmp.eq.s32.totalorder %s17, 5
      %p98 = por %p96, %p97
      %p99 = scmp.ne.s32.totalorder %s91, %s94
      %p100 = scmp.eq.s32.totalorder %s17, 0
      %p101 = por %p99, %p100
      %p102 = scmp.ne.s32.totalorder %s91, %s94
      %p103 = scmp.eq.s32.totalorder %s22, 5
      %p104 = por %p102, %p103
      %p105 = scmp.ne.s32.totalorder %s94, %s95
      %p106 = scmp.eq.s32.totalorder %s22, 0
      %p107 = por %p105, %p106
      %p108 = scmp.ne.s32.totalorder %s94, %s95
      %p109 = scmp.eq.s32.totalorder %s23, 5
      %p110 = por %p108, %p109
      %p112 = scmp.ne.s32.totalorder %s95, %s111
      %p113 = scmp.eq.s32.totalorder %s23, 0
      %p114 = por %p112, %p113
      %s115 = ssub.s32 %s25, %s32
      %p116 = scmp.eq.s32.totalorder %s115, 0
      %s118 = sadd.s32 %s117, 1
      %s119 = scalar_select %p116, %s117, %s118
      %p122 = pneg %p116
      %p123 = scmp.eq.s32.totalorder %s17, 5
      %p124 = por %p122, %p123
      %p125 = scmp.ne.s32.totalorder %s117, %s120
      %p126 = scmp.eq.s32.totalorder %s17, 0
      %p127 = por %p125, %p126
      %p128 = scmp.ne.s32.totalorder %s117, %s120
      %p129 = scmp.eq.s32.totalorder %s22, 5
      %p130 = por %p128, %p129
      %p131 = scmp.ne.s32.totalorder %s120, %s121
      %p132 = scmp.eq.s32.totalorder %s22, 0
      %p133 = por %p131, %p132
      %p134 = scmp.ne.s32.totalorder %s120, %s121
      %p135 = scmp.eq.s32.totalorder %s23, 5
      %p136 = por %p134, %p135
      %p138 = scmp.ne.s32.totalorder %s121, %s137
      %p139 = scmp.eq.s32.totalorder %s23, 0
      %p140 = por %p138, %p139
      %s141 = ssub.s32 %s25, %s32
      %p142 = scmp.eq.s32.totalorder %s141, 0
      %s144 = sadd.s32 %s143, 1
      %s145 = scalar_select %p142, %s143, %s144
      %p148 = pneg %p142
      %p149 = scmp.eq.s32.totalorder %s17, 5
      %p150 = por %p148, %p149
      %p151 = scmp.ne.s32.totalorder %s143, %s146
      %p152 = scmp.eq.s32.totalorder %s17, 0
      %p153 = por %p151, %p152
      %p154 = scmp.ne.s32.totalorder %s143, %s146
      %p155 = scmp.eq.s32.totalorder %s22, 5
      %p156 = por %p154, %p155
      %p157 = scmp.ne.s32.totalorder %s146, %s147
      %p158 = scmp.eq.s32.totalorder %s22, 0
      %p159 = por %p157, %p158
      %p160 = scmp.ne.s32.totalorder %s146, %s147
      %p161 = scmp.eq.s32.totalorder %s23, 5
      %p162 = por %p160, %p161
      %p164 = scmp.ne.s32.totalorder %s147, %s163
      %p165 = scmp.eq.s32.totalorder %s23, 0
      %p166 = por %p164, %p165
      %s167 = ssub.s32 %s25, %s32
      %p168 = scmp.eq.s32.totalorder %s167, 0
      %s170 = sadd.s32 %s169, 1
      %s171 = scalar_select %p168, %s169, %s170
      %p174 = pneg %p168
      %p175 = scmp.eq.s32.totalorder %s17, 5
      %p176 = por %p174, %p175
      %p177 = scmp.ne.s32.totalorder %s169, %s172
      %p178 = scmp.eq.s32.totalorder %s17, 0
      %p179 = por %p177, %p178
      %p180 = scmp.ne.s32.totalorder %s169, %s172
      %p181 = scmp.eq.s32.totalorder %s22, 5
      %p182 = por %p180, %p181
      %p183 = scmp.ne.s32.totalorder %s172, %s173
      %p184 = scmp.eq.s32.totalorder %s22, 0
      %p185 = por %p183, %p184
      %p186 = scmp.ne.s32.totalorder %s172, %s173
      %p187 = scmp.eq.s32.totalorder %s23, 5
      %p188 = por %p186, %p187
      %p190 = scmp.ne.s32.totalorder %s173, %s189
      %p191 = scmp.eq.s32.totalorder %s23, 0
      %p192 = por %p190, %p191
      %s194 = sadd.s32 %s193, 1
      %p197 = scmp.eq.s32.totalorder %s17, 5
      %p198 = scmp.ne.s32.totalorder %s193, %s195
      %p199 = scmp.eq.s32.totalorder %s17, 0
      %p200 = por %p198, %p199
      %p201 = scmp.ne.s32.totalorder %s193, %s195
      %p202 = scmp.eq.s32.totalorder %s22, 5
      %p203 = por %p201, %p202
      %p204 = scmp.ne.s32.totalorder %s195, %s196
      %p205 = scmp.eq.s32.totalorder %s22, 0
      %p206 = por %p204, %p205
      %p207 = scmp.ne.s32.totalorder %s195, %s196
      %p208 = scmp.eq.s32.totalorder %s23, 5
      %p209 = por %p207, %p208
      %p211 = scmp.ne.s32.totalorder %s196, %s210
      %p212 = scmp.eq.s32.totalorder %s23, 0
      %p213 = por %p211, %p212
      %s215 = sadd.s32 %s214, 1
      %p218 = scmp.eq.s32.totalorder %s17, 5
      %p219 = scmp.ne.s32.totalorder %s214, %s216
      %p220 = scmp.eq.s32.totalorder %s17, 0
      %p221 = por %p219, %p220
      %p222 = scmp.ne.s32.totalorder %s214, %s216
      %p223 = scmp.eq.s32.totalorder %s22, 5
      %p224 = por %p222, %p223
      %p225 = scmp.ne.s32.totalorder %s216, %s217
      %p226 = scmp.eq.s32.totalorder %s22, 0
      %p227 = por %p225, %p226
      %p228 = scmp.ne.s32.totalorder %s216, %s217
      %p229 = scmp.eq.s32.totalorder %s23, 5
      %p230 = por %p228, %p229
      %p232 = scmp.ne.s32.totalorder %s217, %s231
      %p233 = scmp.eq.s32.totalorder %s23, 0
      %p234 = por %p232, %p233
      %s236 = sadd.s32 %s235, 1
      %p239 = scmp.eq.s32.totalorder %s17, 5
      %p240 = scmp.ne.s32.totalorder %s235, %s237
      %p241 = scmp.eq.s32.totalorder %s17, 0
      %p242 = por %p240, %p241
      %p243 = scmp.ne.s32.totalorder %s235, %s237
      %p244 = scmp.eq.s32.totalorder %s22, 5
      %p245 = por %p243, %p244
      %p246 = scmp.ne.s32.totalorder %s237, %s238
      %p247 = scmp.eq.s32.totalorder %s22, 0
      %p248 = por %p246, %p247
      %p249 = scmp.ne.s32.totalorder %s237, %s238
      %p250 = scmp.eq.s32.totalorder %s23, 5
      %p251 = por %p249, %p250
      %p253 = scmp.ne.s32.totalorder %s238, %s252
      %p254 = scmp.eq.s32.totalorder %s23, 0
      %p255 = por %p253, %p254
      %s257 = sadd.s32 %s256, 1
      %p260 = scmp.eq.s32.totalorder %s17, 5
      %p261 = scmp.ne.s32.totalorder %s256, %s258
      %p262 = scmp.eq.s32.totalorder %s17, 0
      %p263 = por %p261, %p262
      %p264 = scmp.ne.s32.totalorder %s256, %s258
      %p265 = scmp.eq.s32.totalorder %s22, 5
      %p266 = por %p264, %p265
      %p267 = scmp.ne.s32.totalorder %s258, %s259
      %p268 = scmp.eq.s32.totalorder %s22, 0
      %p269 = por %p267, %p268
      %p270 = scmp.ne.s32.totalorder %s258, %s259
      %p271 = scmp.eq.s32.totalorder %s23, 5
      %p272 = por %p270, %p271
      %p274 = scmp.ne.s32.totalorder %s259, %s273
      %p275 = scmp.eq.s32.totalorder %s23, 0
      %p276 = por %p274, %p275
      %s277 = ssub.s32 %s24, %s36
      %p278 = scmp.eq.s32.totalorder %s277, 0
      %s280 = sadd.s32 %s279, 1
      %s281 = scalar_select %p278, %s279, %s280
      %p284 = pneg %p278
      %p285 = scmp.eq.s32.totalorder %s17, 5
      %p286 = por %p284, %p285
      %p287 = scmp.ne.s32.totalorder %s279, %s282
      %p288 = scmp.eq.s32.totalorder %s17, 0
      %p289 = por %p287, %p288
      %p290 = scmp.ne.s32.totalorder %s279, %s282
      %p291 = scmp.eq.s32.totalorder %s22, 5
      %p292 = por %p290, %p291
      %p293 = scmp.ne.s32.totalorder %s282, %s283
      %p294 = scmp.eq.s32.totalorder %s22, 0
      %p295 = por %p293, %p294
      %p296 = scmp.ne.s32.totalorder %s282, %s283
      %p297 = scmp.eq.s32.totalorder %s23, 5
      %p298 = por %p296, %p297
      %p300 = scmp.ne.s32.totalorder %s283, %s299
      %p301 = scmp.eq.s32.totalorder %s23, 0
      %p302 = por %p300, %p301
      %p303 = scmp.le.s32.totalorder 1, %s17
      %p304 = scmp.lt.s32.totalorder %s17, 7
      %p305 = pnand %p303, %p304
      %p306 = pneg %p305
      // Predicated region
      $region9: #{transformer_forward.1} parent=5 // pred_check
        _
      $region10: #{transformer_forward.1} parent=5 // pred_check_branch
        %308 = sbr.rel (%p305) target = $region12
      $region11: #{transformer_forward.1} parent=5 // pred_region
        %s309 = ssub.s32 %s17, 1
        // Predicated region
        $region13: #{transformer_forward.1} parent=11 // pred_check
          %p310 = pneg %p55
        $region14: #{transformer_forward.1} parent=11 // pred_check_branch
          %312 = sbr.rel (%p310) target = $region16
        $region15: #{transformer_forward.1} parent=11 // pred_region
          %s313 = smul.u32 2, %s26
          %p314 = scmp.lt.s32.totalorder %s313, 1
          %s315 = scalar_select %p314, %s313, 1
          %s316 = smul.addr %s315, 8
          %s317 = scalar_lea.vmem %s0, %s316
          %s318 = smul.u32 2, %s26
        $region16: #{transformer_forward.1} parent=11 // pred_fallthru
          _
        // Predicated region
        $region17: #{transformer_forward.1} parent=11 // pred_check
          %p319 = pneg %p206
        $region18: #{transformer_forward.1} parent=11 // pred_check_branch
          %321 = sbr.rel (%p319) target = $region20
        $region19: #{transformer_forward.1} parent=11 // pred_region
          _
        $region20: #{transformer_forward.1} parent=11 // pred_fallthru
          _
        // Predicated region
        $region21: #{transformer_forward.1} parent=11 // pred_check
          %p322 = pneg %p227
        $region22: #{transformer_forward.1} parent=11 // pred_check_branch
          %324 = sbr.rel (%p322) target = $region24
        $region23: #{transformer_forward.1} parent=11 // pred_region
          _
        $region24: #{transformer_forward.1} parent=11 // pred_fallthru
          _
        // Predicated region
        $region25: #{transformer_forward.1} parent=11 // pred_check
          %p325 = pneg %p248
        $region26: #{transformer_forward.1} parent=11 // pred_check_branch
          %327 = sbr.rel (%p325) target = $region28
        $region27: #{transformer_forward.1} parent=11 // pred_region
          _
        $region28: #{transformer_forward.1} parent=11 // pred_fallthru
          _
        // Predicated region
        $region29: #{transformer_forward.1} parent=11 // pred_check
          %p328 = pneg %p269
        $region30: #{transformer_forward.1} parent=11 // pred_check_branch
          %330 = sbr.rel (%p328) target = $region32
        $region31: #{transformer_forward.1} parent=11 // pred_region
          _
        $region32: #{transformer_forward.1} parent=11 // pred_fallthru
          _
      $region12: #{transformer_forward.1} parent=5 // pred_fallthru
        _
      %p331 = scmp.lt.s32.totalorder %s17, 6
      // Predicated region
      $region33: #{transformer_forward.1} parent=5 // pred_check
        %p332 = pneg %p331
      $region34: #{transformer_forward.1} parent=5 // pred_check_branch
        %334 = sbr.rel (%p332) target = $region36
      $region35: #{transformer_forward.1} parent=5 // pred_region
        // Predicated region
        $region37: #{transformer_forward.1} parent=35 // pred_check
          %p335 = pneg %p75
        $region38: #{transformer_forward.1} parent=35 // pred_check_branch
          %337 = sbr.rel (%p335) target = $region40
        $region39: #{transformer_forward.1} parent=35 // pred_region
          %p338 = scmp.lt.s32.totalorder %s25, 5
          %s339 = scalar_select %p338, %s25, 5
          %s340 = smul.addr %s339, 48
          %s341 = smul.addr %s340, 4
          %s342 = scalar_lea.vmem %s1, %s341
        $region40: #{transformer_forward.1} parent=35 // pred_fallthru
          _
        // Predicated region
        $region41: #{transformer_forward.1} parent=35 // pred_check
          %p343 = pneg %p101
        $region42: #{transformer_forward.1} parent=35 // pred_check_branch
          %345 = sbr.rel (%p343) target = $region44
        $region43: #{transformer_forward.1} parent=35 // pred_region
          %p346 = scmp.lt.s32.totalorder %s25, 5
          %s347 = scalar_select %p346, %s25, 5
          %s348 = smul.addr %s347, 16
          %s349 = smul.addr %s348, 4
          %s350 = scalar_lea.vmem %s2, %s349
        $region44: #{transformer_forward.1} parent=35 // pred_fallthru
          _
        // Predicated region
        $region45: #{transformer_forward.1} parent=35 // pred_check
          %p351 = pneg %p127
        $region46: #{transformer_forward.1} parent=35 // pred_check_branch
          %353 = sbr.rel (%p351) target = $region48
        $region47: #{transformer_forward.1} parent=35 // pred_region
          %p354 = scmp.lt.s32.totalorder %s25, 5
          %s355 = scalar_select %p354, %s25, 5
          %s356 = smul.addr %s355, 16
          %s357 = smul.addr %s356, 4
          %s358 = scalar_lea.vmem %s3, %s357
        $region48: #{transformer_forward.1} parent=35 // pred_fallthru
          _
        // Predicated region
        $region49: #{transformer_forward.1} parent=35 // pred_check
          %p359 = pneg %p153
        $region50: #{transformer_forward.1} parent=35 // pred_check_branch
          %361 = sbr.rel (%p359) target = $region52
        $region51: #{transformer_forward.1} parent=35 // pred_region
          %p362 = scmp.lt.s32.totalorder %s25, 5
          %s363 = scalar_select %p362, %s25, 5
          %s364 = smul.addr %s363, 16
          %s365 = smul.addr %s364, 4
          %s366 = scalar_lea.vmem %s4, %s365
        $region52: #{transformer_forward.1} parent=35 // pred_fallthru
          _
        // Predicated region
        $region53: #{transformer_forward.1} parent=35 // pred_check
          %p367 = pneg %p179
        $region54: #{transformer_forward.1} parent=35 // pred_check_branch
          %369 = sbr.rel (%p367) target = $region56
        $region55: #{transformer_forward.1} parent=35 // pred_region
          %p370 = scmp.lt.s32.totalorder %s25, 5
          %s371 = scalar_select %p370, %s25, 5
          %s372 = smul.addr %s371, 2
          %s373 = smul.addr %s372, 8
          %s374 = scalar_lea.vmem %s5, %s373
        $region56: #{transformer_forward.1} parent=35 // pred_fallthru
          _
      $region36: #{transformer_forward.1} parent=5 // pred_fallthru
        _
      %p375 = scmp.le.s32.totalorder 1, %s17
      %p376 = scmp.lt.s32.totalorder %s17, 7
      %p377 = pnand %p375, %p376
      %p378 = pneg %p377
      // Predicated region
      $region57: #{transformer_forward.1} parent=5 // pred_check
        _
      $region58: #{transformer_forward.1} parent=5 // pred_check_branch
        %380 = sbr.rel (%p377) target = $region60
      $region59: #{transformer_forward.1} parent=5 // pred_region
        %s381 = ssub.s32 %s17, 1
        %s382 = smul.u32 2, %s26
        %p383 = scmp.lt.s32.totalorder %s382, 1
        %s384 = scalar_select %p383, %s382, 1
        %s385 = smul.addr %s384, 8
        %s386 = scalar_lea.vmem %s0, %s385
        %p387 = pneg %p55
        %p388 = pneg %p52
        %p389 = scmp.lt.s32.totalorder %s27, 5
        %s390 = scalar_select %p389, %s27, 5
        %s391 = smul.addr %s390, 48
        %s392 = smul.addr %s391, 4
        %s393 = scalar_lea.vmem %s1, %s392
        %p394 = pneg %p81
        %p395 = pneg %p78
        %p396 = scmp.lt.s32.totalorder %s27, 5
        %s397 = scalar_select %p396, %s27, 5
        %s398 = smul.addr %s397, 16
        %s399 = smul.addr %s398, 4
        %s400 = scalar_lea.vmem %s2, %s399
        %p401 = pneg %p107
        %p402 = pneg %p104
        %p403 = scmp.lt.s32.totalorder %s27, 5
        %s404 = scalar_select %p403, %s27, 5
        %s405 = smul.addr %s404, 16
        %s406 = smul.addr %s405, 4
        %s407 = scalar_lea.vmem %s3, %s406
        %p408 = pneg %p133
        %p409 = pneg %p130
        %p410 = scmp.lt.s32.totalorder %s27, 5
        %s411 = scalar_select %p410, %s27, 5
        %s412 = smul.addr %s411, 16
        %s413 = smul.addr %s412, 4
        %s414 = scalar_lea.vmem %s4, %s413
        %p415 = pneg %p159
        %p416 = pneg %p156
        %p417 = scmp.lt.s32.totalorder %s27, 5
        %s418 = scalar_select %p417, %s27, 5
        %s419 = smul.addr %s418, 2
        %s420 = smul.addr %s419, 8
        %s421 = scalar_lea.vmem %s5, %s420
        %p422 = pneg %p185
        %p423 = pneg %p182
        %p424 = pneg %p206
        %p425 = pneg %p203
        %p426 = pneg %p227
        %p427 = pneg %p224
        %p428 = pneg %p248
        %p429 = pneg %p245
        %p430 = pneg %p269
        %p431 = pneg %p266
        %p432 = pneg %p295
        %p433 = pneg %p292
        %s434 = smul.u32 2, %s26
        %p435 = scmp.lt.s32.totalorder %s434, 1
        %s436 = scalar_select %p435, %s434, 1
        %s437 = smul.addr %s436, 8
        %s438 = scalar_lea.vmem %s0, %s437
        %s439 = smul.u32 2, %s26
        %p440 = scmp.lt.s32.totalorder %s27, 5
        %s441 = scalar_select %p440, %s27, 5
        %s442 = smul.addr %s441, 48
        %s443 = smul.addr %s442, 4
        %s444 = scalar_lea.vmem %s1, %s443
        %p445 = scmp.lt.s32.totalorder %s27, 5
        %s446 = scalar_select %p445, %s27, 5
        %s447 = smul.addr %s446, 16
        %s448 = smul.addr %s447, 4
        %s449 = scalar_lea.vmem %s2, %s448
        %p450 = scmp.lt.s32.totalorder %s27, 5
        %s451 = scalar_select %p450, %s27, 5
        %s452 = smul.addr %s451, 16
        %s453 = smul.addr %s452, 4
        %s454 = scalar_lea.vmem %s3, %s453
        %p455 = scmp.lt.s32.totalorder %s27, 5
        %s456 = scalar_select %p455, %s27, 5
        %s457 = smul.addr %s456, 16
        %s458 = smul.addr %s457, 4
        %s459 = scalar_lea.vmem %s4, %s458
        %p460 = scmp.lt.s32.totalorder %s27, 5
        %s461 = scalar_select %p460, %s27, 5
        %s462 = smul.addr %s461, 2
        %s463 = smul.addr %s462, 8
        %s464 = scalar_lea.vmem %s5, %s463
        %s465 = smul.u32 2, %s26
        %p467 = scmp.eq.s32.totalorder %s27, 0
        // Predicated region
        $region61: #{transformer_forward.1} parent=59 // pred_check
          %p468 = pneg %p467
        $region62: #{transformer_forward.1} parent=59 // pred_check_branch
          %470 = sbr.rel (%p468) target = $region64
        $region63: #{transformer_forward.1} parent=59 // pred_region
          %v471 = vld [vmem:[%s438] sm:$0xff]
          %v472 = vld [vmem:[%s438 + $0x8] sm:$0xff]
          %473 = vst [vmem:[#allocation2] sm:$0xff] %v471
          %474 = vst [vmem:[#allocation2 + $0x8] sm:$0xff] %v472
        $region64: #{transformer_forward.1} parent=59 // pred_fallthru
          _
        %v475 = vld [vmem:[#allocation2] sm:$0xff]
        %v476 = vld [vmem:[#allocation2 + $0x8] sm:$0xff]
        %v477 = vld [vmem:[%s464] sm:$0xff]
        %v478 = vld [vmem:[%s464 + $0x8] sm:$0x3]
        %v479 = vpack.c.bf16 %v476, %v475
        %v480 = vld [vmem:[%s444] sm:$0xff]
        %v481 = vld [vmem:[%s444 + $0x8] sm:$0xf]
        %v482 = vld [vmem:[%s444 + $0xc] sm:$0xff]
        %v483 = vld [vmem:[%s444 + $0x14] sm:$0xf]
        %v484 = vld [vmem:[%s444 + $0x18] sm:$0xff]
        %v485 = vld [vmem:[%s444 + $0x20] sm:$0xf]
        %v486 = vld [vmem:[%s444 + $0x24] sm:$0xff]
        %v487 = vld [vmem:[%s444 + $0x2c] sm:$0xf]
        %v488 = vld [vmem:[%s444 + $0x30] sm:$0xff]
        %v489 = vld [vmem:[%s444 + $0x38] sm:$0xf]
        %v490 = vld [vmem:[%s444 + $0x3c] sm:$0xff]
        %v491 = vld [vmem:[%s444 + $0x44] sm:$0xf]
        %v492 = vld [vmem:[%s444 + $0x48] sm:$0xff]
        %v493 = vld [vmem:[%s444 + $0x50] sm:$0xf]
        %v494 = vld [vmem:[%s444 + $0x54] sm:$0xff]
        %v495 = vld [vmem:[%s444 + $0x5c] sm:$0xf]
        %v496 = vld [vmem:[%s444 + $0x60] sm:$0xff]
        %v497 = vld [vmem:[%s444 + $0x68] sm:$0xf]
        %v498 = vld [vmem:[%s444 + $0x6c] sm:$0xff]
        %v499 = vld [vmem:[%s444 + $0x74] sm:$0xf]
        %v500 = vld [vmem:[%s444 + $0x78] sm:$0xff]
        %v501 = vld [vmem:[%s444 + $0x80] sm:$0xf]
        %v502 = vld [vmem:[%s444 + $0x84] sm:$0xff]
        %v503 = vld [vmem:[%s444 + $0x8c] sm:$0xf]
        %v504 = vld [vmem:[%s444 + $0x90] sm:$0xff]
        %v505 = vld [vmem:[%s444 + $0x98] sm:$0xf]
        %v506 = vld [vmem:[%s444 + $0x9c] sm:$0xff]
        %v507 = vld [vmem:[%s444 + $0xa4] sm:$0xf]
        %v508 = vld [vmem:[%s444 + $0xa8] sm:$0xff]
        %v509 = vld [vmem:[%s444 + $0xb0] sm:$0xf]
        %v510 = vld [vmem:[%s444 + $0xb4] sm:$0xff]
        %v511 = vld [vmem:[%s444 + $0xbc] sm:$0xf]
        %v544 = vunpack.c.l.b16 %v480
        %v545 = vunpack.c.h.b16 %v480
        %v546 = vunpack.c.l.b16 %v481
        %v547 = vunpack.c.l.b16 %v482
        %v548 = vunpack.c.h.b16 %v482
        %v549 = vunpack.c.l.b16 %v483
        %v550 = vunpack.c.l.b16 %v484
        %v551 = vunpack.c.h.b16 %v484
        %v552 = vunpack.c.l.b16 %v485
        %v553 = vunpack.c.l.b16 %v486
        %v554 = vunpack.c.h.b16 %v486
        %v555 = vunpack.c.l.b16 %v487
        %v556 = vunpack.c.l.b16 %v488
        %v557 = vunpack.c.h.b16 %v488
        %v558 = vunpack.c.l.b16 %v489
        %v559 = vunpack.c.l.b16 %v490
        %v560 = vunpack.c.h.b16 %v490
        %v561 = vunpack.c.l.b16 %v491
        %v562 = vunpack.c.l.b16 %v492
        %v563 = vunpack.c.h.b16 %v492
        %v564 = vunpack.c.l.b16 %v493
        %v565 = vunpack.c.l.b16 %v494
        %v566 = vunpack.c.h.b16 %v494
        %v567 = vunpack.c.l.b16 %v495
        %v568 = vunpack.c.l.b16 %v496
        %v569 = vunpack.c.h.b16 %v496
        %v570 = vunpack.c.l.b16 %v497
        %v571 = vunpack.c.l.b16 %v498
        %v572 = vunpack.c.h.b16 %v498
        %v573 = vunpack.c.l.b16 %v499
        %v574 = vunpack.c.l.b16 %v500
        %v575 = vunpack.c.h.b16 %v500
        %v576 = vunpack.c.l.b16 %v501
        %v577 = vunpack.c.l.b16 %v502
        %v578 = vunpack.c.h.b16 %v502
        %v579 = vunpack.c.l.b16 %v503
        %v580 = vunpack.c.l.b16 %v504
        %v581 = vunpack.c.h.b16 %v504
        %v582 = vunpack.c.l.b16 %v505
        %v583 = vunpack.c.l.b16 %v506
        %v584 = vunpack.c.h.b16 %v506
        %v585 = vunpack.c.l.b16 %v507
        %v586 = vunpack.c.l.b16 %v508
        %v587 = vunpack.c.h.b16 %v508
        %v588 = vunpack.c.l.b16 %v509
        %v589 = vunpack.c.l.b16 %v510
        %v590 = vunpack.c.h.b16 %v510
        %v591 = vunpack.c.l.b16 %v511
        %v592 = vpack.c.b16 %v547, %v544
        %v593 = vpack.c.b16 %v548, %v545
        %v594 = vpack.c.b16 %v549, %v546
        %v595 = vpack.c.b16 %v553, %v550
        %v596 = vpack.c.b16 %v554, %v551
        %v597 = vpack.c.b16 %v555, %v552
        %v598 = vpack.c.b16 %v559, %v556
        %v599 = vpack.c.b16 %v560, %v557
        %v600 = vpack.c.b16 %v561, %v558
        %v601 = vpack.c.b16 %v565, %v562
        %v602 = vpack.c.b16 %v566, %v563
        %v603 = vpack.c.b16 %v567, %v564
        %v604 = vpack.c.b16 %v571, %v568
        %v605 = vpack.c.b16 %v572, %v569
        %v606 = vpack.c.b16 %v573, %v570
        %v607 = vpack.c.b16 %v577, %v574
        %v608 = vpack.c.b16 %v578, %v575
        %v609 = vpack.c.b16 %v579, %v576
        %v610 = vpack.c.b16 %v583, %v580
        %v611 = vpack.c.b16 %v584, %v581
        %v612 = vpack.c.b16 %v585, %v582
        %v613 = vpack.c.b16 %v589, %v586
        %v614 = vpack.c.b16 %v590, %v587
        %v615 = vpack.c.b16 %v591, %v588
        %640 = vmatprep.subr.bf16.mxu0 %v614
        %641 = vmatpush1.bf16.msra.mxu0 %v613
        %642 = vmatprep.subr.bf16.mxu0 %v611
        %643 = vmatpush1.bf16.msra.mxu0 %v610
        %644 = vmatprep.subr.bf16.mxu0 %v608
        %645 = vmatpush1.bf16.msra.mxu0 %v607
        %646 = vmatprep.subr.bf16.mxu0 %v605
        %647 = vmatpush1.bf16.msra.mxu0 %v604
        %648 = vmatprep.subr.bf16.mxu0 %v602
        %649 = vmatpush1.bf16.msra.mxu0 %v601
        %650 = vmatprep.subr.bf16.mxu0 %v599
        %651 = vmatpush1.bf16.msra.mxu0 %v598
        %652 = vmatprep.subr.bf16.mxu0 %v596
        %653 = vmatpush1.bf16.msra.mxu0 %v595
        %654 = vmatprep.subr.bf16.mxu0 %v593
        %655 = vmatpush1.bf16.msra.mxu0 %v592
        %656 = vmatprep.subr.bf16.mxu0 0
        %657 = vmatpush2.bf16.msra.mxu0 0
        %658 = vmatprep.subr.bf16.mxu0 0
        %659 = vmatpush2.bf16.msra.mxu0 0
        %660 = vmatprep.subr.bf16.mxu0 0
        %661 = vmatpush2.bf16.msra.mxu0 0
        %662 = vmatprep.subr.bf16.mxu0 0
        %663 = vmatpush2.bf16.msra.mxu0 0
        %664 = vmatprep.subr.bf16.mxu0 0
        %665 = vmatpush2.bf16.msra.mxu0 0
        %666 = vmatprep.subr.bf16.mxu0 0
        %667 = vmatpush2.bf16.msra.mxu0 0
        %668 = vmatprep.subr.bf16.mxu0 0
        %669 = vmatpush2.bf16.msra.mxu0 0
        %670 = vmatprep.subr.bf16.mxu0 0
        %671 = vmatpush2.bf16.msra.mxu0 0
        %672 = vmatprep.mubr.bf16.mxu0 0
        %673 = vmatmul.mubr.bf16.gmra.mxu0 %v479
        %v674 = vpop.f32.mrf.mxu0
        %v675 = vadd.f32 0.0, %v674
        %v676 = vpop.f32.mrf.mxu0
        %v677 = vadd.f32 0.0, %v676
        %v678 = vpop.f32.mrf.mxu0
        %v679 = vadd.f32 0.0, %v678
        %v680 = vpop.f32.mrf.mxu0
        %v681 = vadd.f32 0.0, %v680
        %682 = vdwg.mxu0
        %683 = vmatprep.subr.bf16.mxu0 0
        %684 = vmatpush1.bf16.msra.mxu0 %v615
        %685 = vmatprep.subr.bf16.mxu0 0
        %686 = vmatpush1.bf16.msra.mxu0 %v612
        %687 = vmatprep.subr.bf16.mxu0 0
        %688 = vmatpush1.bf16.msra.mxu0 %v609
        %689 = vmatprep.subr.bf16.mxu0 0
        %690 = vmatpush1.bf16.msra.mxu0 %v606
        %691 = vmatprep.subr.bf16.mxu0 0
        %692 = vmatpush1.bf16.msra.mxu0 %v603
        %693 = vmatprep.subr.bf16.mxu0 0
        %694 = vmatpush1.bf16.msra.mxu0 %v600
        %695 = vmatprep.subr.bf16.mxu0 0
        %696 = vmatpush1.bf16.msra.mxu0 %v597
        %697 = vmatprep.subr.bf16.mxu0 0
        %698 = vmatpush1.bf16.msra.mxu0 %v594
        %699 = vmatprep.subr.bf16.mxu0 0
        %700 = vmatpush2.bf16.msra.mxu0 0
        %701 = vmatprep.subr.bf16.mxu0 0
        %702 = vmatpush2.bf16.msra.mxu0 0
        %703 = vmatprep.subr.bf16.mxu0 0
        %704 = vmatpush2.bf16.msra.mxu0 0
        %705 = vmatprep.subr.bf16.mxu0 0
        %706 = vmatpush2.bf16.msra.mxu0 0
        %707 = vmatprep.subr.bf16.mxu0 0
        %708 = vmatpush2.bf16.msra.mxu0 0
        %709 = vmatprep.subr.bf16.mxu0 0
        %710 = vmatpush2.bf16.msra.mxu0 0
        %711 = vmatprep.subr.bf16.mxu0 0
        %712 = vmatpush2.bf16.msra.mxu0 0
        %713 = vmatprep.subr.bf16.mxu0 0
        %714 = vmatpush2.bf16.msra.mxu0 0
        %715 = vmatprep.mubr.bf16.mxu0 0
        %716 = vmatmul.mubr.bf16.gmra.mxu0 %v479
        %v717 = vpop.f32.mrf.mxu0
        %v718 = vadd.f32 0.0, %v717
        %v719 = vpop.f32.mrf.mxu0
        %v720 = vpop.f32.mrf.mxu0
        %v721 = vadd.f32 0.0, %v720
        %v722 = vpop.f32.mrf.mxu0
        %723 = vdwg.mxu0
        %v724 = vlaneseq
        %v725 = vshrl.u32 %v724, 7
        %v726 = vsub.s32 0, %v725
        %v727 = vrot.slane %v477, %v726
        %v728 = vadd.f32 %v675, %v727
        %v729 = vadd.f32 %v679, %v727
        %v730 = vlaneseq
        %v731 = vshrl.u32 %v730, 7
        %v732 = vsub.s32 1, %v731
        %v733 = vrot.slane %v477, %v732
        %v734 = vadd.f32 %v677, %v733
        %v735 = vadd.f32 %v681, %v733
        %v736 = vlaneseq
        %v737 = vshrl.u32 %v736, 7
        %v738 = vsub.s32 2, %v737
        %v739 = vrot.slane %v477, %v738
        %v740 = vadd.f32 %v718, %v739
        %v741 = vadd.f32 %v721, %v739
        %743 = vrot.lane.b32.xlu0 %v728, 96
        %v744 = vpop.permute.xlu0 %743
        %746 = vrot.lane.b32.xlu0 %v728, 64
        %v747 = vpop.permute.xlu0 %746
        %749 = vrot.lane.b32.xlu0 %v728, 32
        %v750 = vpop.permute.xlu0 %749
        %v752 = vcombine.low %v728, %v747
        %v753 = vcombine.high %v728, %v747
        %v755 = vunpack.c.l.s4 1983009808
        %v756 = vunpack.c.0.s8 %v755
        %v757 = vlaneseq
        %v758 = vshrl.u32 %v757, 7
        %v759 = vsub.s32 %v756, %v758
        %v760 = vrot.slane %v752, %v759
        %v762 = vunpack.c.l.s4 1983009808
        %v763 = vunpack.c.0.s8 %v762
        %v764 = vlaneseq
        %v765 = vshrl.u32 %v764, 7
        %v766 = vsub.s32 %v763, %v765
        %v767 = vrot.slane %v753, %v766
        %v768 = vcombine.low %v744, %v750
        %v769 = vcombine.high %v744, %v750
        %v771 = vunpack.c.l.s4 1983009808
        %v772 = vunpack.c.0.s8 %v771
        %v773 = vlaneseq
        %v774 = vshrl.u32 %v773, 7
        %v775 = vsub.s32 %v772, %v774
        %v776 = vrot.slane %v768, %v775
        %v778 = vunpack.c.l.s4 1983009808
        %v779 = vunpack.c.0.s8 %v778
        %v780 = vlaneseq
        %v781 = vshrl.u32 %v780, 7
        %v782 = vsub.s32 %v779, %v781
        %v783 = vrot.slane %v769, %v782
        %v784 = vcombine.low %v760, %v776
        %v785 = vcombine.high %v760, %v776
        %v787 = vunpack.c.l.s4 1934713408
        %v788 = vunpack.c.0.s8 %v787
        %v789 = vlaneseq
        %v790 = vshrl.u32 %v789, 7
        %v791 = vsub.s32 %v788, %v790
        %v792 = vrot.slane %v784, %v791
        %v794 = vunpack.c.l.s4 1934713408
        %v795 = vunpack.c.0.s8 %v794
        %v796 = vlaneseq
        %v797 = vshrl.u32 %v796, 7
        %v798 = vsub.s32 %v795, %v797
        %v799 = vrot.slane %v785, %v798
        %v800 = vcombine.low %v767, %v783
        %v801 = vcombine.high %v767, %v783
        %v803 = vunpack.c.l.s4 1934713408
        %v804 = vunpack.c.0.s8 %v803
        %v805 = vlaneseq
        %v806 = vshrl.u32 %v805, 7
        %v807 = vsub.s32 %v804, %v806
        %v808 = vrot.slane %v800, %v807
        %v810 = vunpack.c.l.s4 1934713408
        %v811 = vunpack.c.0.s8 %v810
        %v812 = vlaneseq
        %v813 = vshrl.u32 %v812, 7
        %v814 = vsub.s32 %v811, %v813
        %v815 = vrot.slane %v801, %v814
        %v816 = vcombine.high %v792, 0.0
        %v817 = vcombine.high %v799, 0.0
        %v818 = vcombine.high %v808, 0.0
        %v819 = vcombine.high %v815, 0.0
        %v820 = vcombine.low %v792, %v799
        %v822 = vunpack.c.l.s4 1983009808
        %v823 = vunpack.c.0.s8 %v822
        %v824 = vlaneseq
        %v825 = vshrl.u32 %v824, 7
        %v826 = vsub.s32 %v823, %v825
        %v827 = vrot.slane %v820, %v826
        %v828 = vcombine.low %v816, %v817
        %v830 = vunpack.c.l.s4 1983009808
        %v831 = vunpack.c.0.s8 %v830
        %v832 = vlaneseq
        %v833 = vshrl.u32 %v832, 7
        %v834 = vsub.s32 %v831, %v833
        %v835 = vrot.slane %v828, %v834
        %v836 = vcombine.low %v808, %v815
        %v838 = vunpack.c.l.s4 1983009808
        %v839 = vunpack.c.0.s8 %v838
        %v840 = vlaneseq
        %v841 = vshrl.u32 %v840, 7
        %v842 = vsub.s32 %v839, %v841
        %v843 = vrot.slane %v836, %v842
        %v844 = vcombine.low %v818, %v819
        %v846 = vunpack.c.l.s4 1983009808
        %v847 = vunpack.c.0.s8 %v846
        %v848 = vlaneseq
        %v849 = vshrl.u32 %v848, 7
        %v850 = vsub.s32 %v847, %v849
        %v851 = vrot.slane %v844, %v850
        %v852 = vcombine.low %v827, %v835
        %v853 = vcombine.high %v827, %v835
        %v855 = vunpack.c.l.s4 1934713408
        %v856 = vunpack.c.0.s8 %v855
        %v857 = vlaneseq
        %v858 = vshrl.u32 %v857, 7
        %v859 = vsub.s32 %v856, %v858
        %v860 = vrot.slane %v852, %v859
        %v862 = vunpack.c.l.s4 1934713408
        %v863 = vunpack.c.0.s8 %v862
        %v864 = vlaneseq
        %v865 = vshrl.u32 %v864, 7
        %v866 = vsub.s32 %v863, %v865
        %v867 = vrot.slane %v853, %v866
        %v868 = vcombine.low %v843, %v851
        %v869 = vcombine.high %v843, %v851
        %v871 = vunpack.c.l.s4 1934713408
        %v872 = vunpack.c.0.s8 %v871
        %v873 = vlaneseq
        %v874 = vshrl.u32 %v873, 7
        %v875 = vsub.s32 %v872, %v874
        %v876 = vrot.slane %v868, %v875
        %v878 = vunpack.c.l.s4 1934713408
        %v879 = vunpack.c.0.s8 %v878
        %v880 = vlaneseq
        %v881 = vshrl.u32 %v880, 7
        %v882 = vsub.s32 %v879, %v881
        %v883 = vrot.slane %v869, %v882
        %v884 = vcombine.low %v860, %v876
        %v885 = vcombine.high %v860, %v876
        %v886 = vcombine.low %v867, %v883
        %v887 = vcombine.high %v867, %v883
        %889 = vrot.lane.b32.xlu0 %v734, 96
        %v890 = vpop.permute.xlu0 %889
        %892 = vrot.lane.b32.xlu0 %v734, 64
        %v893 = vpop.permute.xlu0 %892
        %895 = vrot.lane.b32.xlu0 %v734, 32
        %v896 = vpop.permute.xlu0 %895
        %v898 = vcombine.low %v734, %v893
        %v899 = vcombine.high %v734, %v893
        %v901 = vunpack.c.l.s4 1983009808
        %v902 = vunpack.c.0.s8 %v901
        %v903 = vlaneseq
        %v904 = vshrl.u32 %v903, 7
        %v905 = vsub.s32 %v902, %v904
        %v906 = vrot.slane %v898, %v905
        %v908 = vunpack.c.l.s4 1983009808
        %v909 = vunpack.c.0.s8 %v908
        %v910 = vlaneseq
        %v911 = vshrl.u32 %v910, 7
        %v912 = vsub.s32 %v909, %v911
        %v913 = vrot.slane %v899, %v912
        %v914 = vcombine.low %v890, %v896
        %v915 = vcombine.high %v890, %v896
        %v917 = vunpack.c.l.s4 1983009808
        %v918 = vunpack.c.0.s8 %v917
        %v919 = vlaneseq
        %v920 = vshrl.u32 %v919, 7
        %v921 = vsub.s32 %v918, %v920
        %v922 = vrot.slane %v914, %v921
        %v924 = vunpack.c.l.s4 1983009808
        %v925 = vunpack.c.0.s8 %v924
        %v926 = vlaneseq
        %v927 = vshrl.u32 %v926, 7
        %v928 = vsub.s32 %v925, %v927
        %v929 = vrot.slane %v915, %v928
        %v930 = vcombine.low %v906, %v922
        %v931 = vcombine.high %v906, %v922
        %v933 = vunpack.c.l.s4 1934713408
        %v934 = vunpack.c.0.s8 %v933
        %v935 = vlaneseq
        %v936 = vshrl.u32 %v935, 7
        %v937 = vsub.s32 %v934, %v936
        %v938 = vrot.slane %v930, %v937
        %v940 = vunpack.c.l.s4 1934713408
        %v941 = vunpack.c.0.s8 %v940
        %v942 = vlaneseq
        %v943 = vshrl.u32 %v942, 7
        %v944 = vsub.s32 %v941, %v943
        %v945 = vrot.slane %v931, %v944
        %v946 = vcombine.low %v913, %v929
        %v947 = vcombine.high %v913, %v929
        %v949 = vunpack.c.l.s4 1934713408
        %v950 = vunpack.c.0.s8 %v949
        %v951 = vlaneseq
        %v952 = vshrl.u32 %v951, 7
        %v953 = vsub.s32 %v950, %v952
        %v954 = vrot.slane %v946, %v953
        %v956 = vunpack.c.l.s4 1934713408
        %v957 = vunpack.c.0.s8 %v956
        %v958 = vlaneseq
        %v959 = vshrl.u32 %v958, 7
        %v960 = vsub.s32 %v957, %v959
        %v961 = vrot.slane %v947, %v960
        %v962 = vcombine.high %v938, 0.0
        %v963 = vcombine.high %v945, 0.0
        %v964 = vcombine.high %v954, 0.0
        %v965 = vcombine.high %v961, 0.0
        %v966 = vcombine.low %v938, %v945
        %v968 = vunpack.c.l.s4 1983009808
        %v969 = vunpack.c.0.s8 %v968
        %v970 = vlaneseq
        %v971 = vshrl.u32 %v970, 7
        %v972 = vsub.s32 %v969, %v971
        %v973 = vrot.slane %v966, %v972
        %v974 = vcombine.low %v962, %v963
        %v976 = vunpack.c.l.s4 1983009808
        %v977 = vunpack.c.0.s8 %v976
        %v978 = vlaneseq
        %v979 = vshrl.u32 %v978, 7
        %v980 = vsub.s32 %v977, %v979
        %v981 = vrot.slane %v974, %v980
        %v982 = vcombine.low %v954, %v961
        %v984 = vunpack.c.l.s4 1983009808
        %v985 = vunpack.c.0.s8 %v984
        %v986 = vlaneseq
        %v987 = vshrl.u32 %v986, 7
        %v988 = vsub.s32 %v985, %v987
        %v989 = vrot.slane %v982, %v988
        %v990 = vcombine.low %v964, %v965
        %v992 = vunpack.c.l.s4 1983009808
        %v993 = vunpack.c.0.s8 %v992
        %v994 = vlaneseq
        %v995 = vshrl.u32 %v994, 7
        %v996 = vsub.s32 %v993, %v995
        %v997 = vrot.slane %v990, %v996
        %v998 = vcombine.low %v973, %v981
        %v999 = vcombine.high %v973, %v981
        %v1001 = vunpack.c.l.s4 1934713408
        %v1002 = vunpack.c.0.s8 %v1001
        %v1003 = vlaneseq
        %v1004 = vshrl.u32 %v1003, 7
        %v1005 = vsub.s32 %v1002, %v1004
        %v1006 = vrot.slane %v998, %v1005
        %v1008 = vunpack.c.l.s4 1934713408
        %v1009 = vunpack.c.0.s8 %v1008
        %v1010 = vlaneseq
        %v1011 = vshrl.u32 %v1010, 7
        %v1012 = vsub.s32 %v1009, %v1011
        %v1013 = vrot.slane %v999, %v1012
        %v1014 = vcombine.low %v989, %v997
        %v1015 = vcombine.high %v989, %v997
        %v1017 = vunpack.c.l.s4 1934713408
        %v1018 = vunpack.c.0.s8 %v1017
        %v1019 = vlaneseq
        %v1020 = vshrl.u32 %v1019, 7
        %v1021 = vsub.s32 %v1018, %v1020
        %v1022 = vrot.slane %v1014, %v1021
        %v1024 = vunpack.c.l.s4 1934713408
        %v1025 = vunpack.c.0.s8 %v1024
        %v1026 = vlaneseq
        %v1027 = vshrl.u32 %v1026, 7
        %v1028 = vsub.s32 %v1025, %v1027
        %v1029 = vrot.slane %v1015, %v1028
        %v1030 = vcombine.low %v1006, %v1022
        %v1031 = vcombine.high %v1006, %v1022
        %v1032 = vcombine.low %v1013, %v1029
        %v1033 = vcombine.high %v1013, %v1029
        %1035 = vrot.lane.b32.xlu0 %v740, 96
        %v1036 = vpop.permute.xlu0 %1035
        %1038 = vrot.lane.b32.xlu0 %v740, 64
        %v1039 = vpop.permute.xlu0 %1038
        %1041 = vrot.lane.b32.xlu0 %v740, 32
        %v1042 = vpop.permute.xlu0 %1041
        %v1044 = vcombine.low %v740, %v1039
        %v1045 = vcombine.high %v740, %v1039
        %v1047 = vunpack.c.l.s4 1983009808
        %v1048 = vunpack.c.0.s8 %v1047
        %v1049 = vlaneseq
        %v1050 = vshrl.u32 %v1049, 7
        %v1051 = vsub.s32 %v1048, %v1050
        %v1052 = vrot.slane %v1044, %v1051
        %v1054 = vunpack.c.l.s4 1983009808
        %v1055 = vunpack.c.0.s8 %v1054
        %v1056 = vlaneseq
        %v1057 = vshrl.u32 %v1056, 7
        %v1058 = vsub.s32 %v1055, %v1057
        %v1059 = vrot.slane %v1045, %v1058
        %v1060 = vcombine.low %v1036, %v1042
        %v1061 = vcombine.high %v1036, %v1042
        %v1063 = vunpack.c.l.s4 1983009808
        %v1064 = vunpack.c.0.s8 %v1063
        %v1065 = vlaneseq
        %v1066 = vshrl.u32 %v1065, 7
        %v1067 = vsub.s32 %v1064, %v1066
        %v1068 = vrot.slane %v1060, %v1067
        %v1070 = vunpack.c.l.s4 1983009808
        %v1071 = vunpack.c.0.s8 %v1070
        %v1072 = vlaneseq
        %v1073 = vshrl.u32 %v1072, 7
        %v1074 = vsub.s32 %v1071, %v1073
        %v1075 = vrot.slane %v1061, %v1074
        %v1076 = vcombine.low %v1052, %v1068
        %v1077 = vcombine.high %v1052, %v1068
        %v1079 = vunpack.c.l.s4 1934713408
        %v1080 = vunpack.c.0.s8 %v1079
        %v1081 = vlaneseq
        %v1082 = vshrl.u32 %v1081, 7
        %v1083 = vsub.s32 %v1080, %v1082
        %v1084 = vrot.slane %v1076, %v1083
        %v1086 = vunpack.c.l.s4 1934713408
        %v1087 = vunpack.c.0.s8 %v1086
        %v1088 = vlaneseq
        %v1089 = vshrl.u32 %v1088, 7
        %v1090 = vsub.s32 %v1087, %v1089
        %v1091 = vrot.slane %v1077, %v1090
        %v1092 = vcombine.low %v1059, %v1075
        %v1093 = vcombine.high %v1059, %v1075
        %v1095 = vunpack.c.l.s4 1934713408
        %v1096 = vunpack.c.0.s8 %v1095
        %v1097 = vlaneseq
        %v1098 = vshrl.u32 %v1097, 7
        %v1099 = vsub.s32 %v1096, %v1098
        %v1100 = vrot.slane %v1092, %v1099
        %v1102 = vunpack.c.l.s4 1934713408
        %v1103 = vunpack.c.0.s8 %v1102
        %v1104 = vlaneseq
        %v1105 = vshrl.u32 %v1104, 7
        %v1106 = vsub.s32 %v1103, %v1105
        %v1107 = vrot.slane %v1093, %v1106
        %v1108 = vcombine.high %v1084, 0.0
        %v1109 = vcombine.high %v1091, 0.0
        %v1110 = vcombine.high %v1100, 0.0
        %v1111 = vcombine.high %v1107, 0.0
        %v1112 = vcombine.low %v1084, %v1091
        %v1114 = vunpack.c.l.s4 1983009808
        %v1115 = vunpack.c.0.s8 %v1114
        %v1116 = vlaneseq
        %v1117 = vshrl.u32 %v1116, 7
        %v1118 = vsub.s32 %v1115, %v1117
        %v1119 = vrot.slane %v1112, %v1118
        %v1120 = vcombine.low %v1108, %v1109
        %v1122 = vunpack.c.l.s4 1983009808
        %v1123 = vunpack.c.0.s8 %v1122
        %v1124 = vlaneseq
        %v1125 = vshrl.u32 %v1124, 7
        %v1126 = vsub.s32 %v1123, %v1125
        %v1127 = vrot.slane %v1120, %v1126
        %v1128 = vcombine.low %v1100, %v1107
        %v1130 = vunpack.c.l.s4 1983009808
        %v1131 = vunpack.c.0.s8 %v1130
        %v1132 = vlaneseq
        %v1133 = vshrl.u32 %v1132, 7
        %v1134 = vsub.s32 %v1131, %v1133
        %v1135 = vrot.slane %v1128, %v1134
        %v1136 = vcombine.low %v1110, %v1111
        %v1138 = vunpack.c.l.s4 1983009808
        %v1139 = vunpack.c.0.s8 %v1138
        %v1140 = vlaneseq
        %v1141 = vshrl.u32 %v1140, 7
        %v1142 = vsub.s32 %v1139, %v1141
        %v1143 = vrot.slane %v1136, %v1142
        %v1144 = vcombine.low %v1119, %v1127
        %v1145 = vcombine.high %v1119, %v1127
        %v1147 = vunpack.c.l.s4 1934713408
        %v1148 = vunpack.c.0.s8 %v1147
        %v1149 = vlaneseq
        %v1150 = vshrl.u32 %v1149, 7
        %v1151 = vsub.s32 %v1148, %v1150
        %v1152 = vrot.slane %v1144, %v1151
        %v1154 = vunpack.c.l.s4 1934713408
        %v1155 = vunpack.c.0.s8 %v1154
        %v1156 = vlaneseq
        %v1157 = vshrl.u32 %v1156, 7
        %v1158 = vsub.s32 %v1155, %v1157
        %v1159 = vrot.slane %v1145, %v1158
        %v1160 = vcombine.low %v1135, %v1143
        %v1161 = vcombine.high %v1135, %v1143
        %v1163 = vunpack.c.l.s4 1934713408
        %v1164 = vunpack.c.0.s8 %v1163
        %v1165 = vlaneseq
        %v1166 = vshrl.u32 %v1165, 7
        %v1167 = vsub.s32 %v1164, %v1166
        %v1168 = vrot.slane %v1160, %v1167
        %v1170 = vunpack.c.l.s4 1934713408
        %v1171 = vunpack.c.0.s8 %v1170
        %v1172 = vlaneseq
        %v1173 = vshrl.u32 %v1172, 7
        %v1174 = vsub.s32 %v1171, %v1173
        %v1175 = vrot.slane %v1161, %v1174
        %v1176 = vcombine.low %v1152, %v1168
        %v1177 = vcombine.high %v1152, %v1168
        %v1178 = vcombine.low %v1159, %v1175
        %v1179 = vcombine.high %v1159, %v1175
        %v1180 = vpack.c.bf16 %v884, %v884
        %v1181 = vpack.c.bf16 %v885, %v885
        %v1182 = vpack.c.bf16 %v886, %v886
        %v1183 = vpack.c.bf16 %v887, %v887
        %v1184 = vpack.c.bf16 %v1030, %v1030
        %v1185 = vpack.c.bf16 %v1031, %v1031
        %v1186 = vpack.c.bf16 %v1032, %v1032
        %v1187 = vpack.c.bf16 %v1033, %v1033
        %vm1188 = vcmask 261120
        %v1190 = vsel %vm1188, %v1180, 0
        %v1193 = vsel %vm1188, %v1184, 0
        %1195 = vmatprep.subr.bf16.mxu0 0
        %1196 = vmatpush1.bf16.xpose.msra.mxu0 0
        %1197 = vmatprep.subr.bf16.mxu0 0
        %1198 = vmatpush1.bf16.xpose.msra.mxu0 0
        %1199 = vmatprep.subr.bf16.mxu0 0
        %1200 = vmatpush1.bf16.xpose.msra.mxu0 0
        %1201 = vmatprep.subr.bf16.mxu0 0
        %1202 = vmatpush1.bf16.xpose.msra.mxu0 0
        %1203 = vmatprep.subr.bf16.mxu0 0
        %1204 = vmatpush1.bf16.xpose.msra.mxu0 0
        %1205 = vmatprep.subr.bf16.mxu0 0
        %1206 = vmatpush1.bf16.xpose.msra.mxu0 0
        %1207 = vmatprep.subr.bf16.mxu0 0
        %1208 = vmatpush1.bf16.xpose.msra.mxu0 0
        %1209 = vmatprep.subr.bf16.mxu0 0
        %1210 = vmatpush1.bf16.xpose.msra.mxu0 %v1193
        %1211 = vmatprep.subr.bf16.mxu0 0
        %1212 = vmatpush2.bf16.xpose.msra.mxu0 0
        %1213 = vmatprep.subr.bf16.mxu0 0
        %1214 = vmatpush2.bf16.xpose.msra.mxu0 0
        %1215 = vmatprep.subr.bf16.mxu0 0
        %1216 = vmatpush2.bf16.xpose.msra.mxu0 0
        %1217 = vmatprep.subr.bf16.mxu0 0
        %1218 = vmatpush2.bf16.xpose.msra.mxu0 0
        %1219 = vmatprep.subr.bf16.mxu0 0
        %1220 = vmatpush2.bf16.xpose.msra.mxu0 0
        %1221 = vmatprep.subr.bf16.mxu0 0
        %1222 = vmatpush2.bf16.xpose.msra.mxu0 0
        %1223 = vmatprep.subr.bf16.mxu0 0
        %1224 = vmatpush2.bf16.xpose.msra.mxu0 0
        %1225 = vmatprep.subr.bf16.mxu0 0
        %1226 = vmatpush2.bf16.xpose.msra.mxu0 0
        %1227 = vmatprep.mubr.bf16.mxu0 0
        %1228 = vmatmul.mubr.bf16.gmra.mxu0 %v1190
        %v1229 = vpop.f32.mrf.mxu0
        %v1230 = vadd.f32 0.0, %v1229
        %v1231 = vpop.f32.mrf.mxu0
        %v1232 = vpop.f32.mrf.mxu0
        %v1233 = vpop.f32.mrf.mxu0
        %1234 = vdwg.mxu0
        %v1236 = vsel %vm1188, %v1181, 0
        %v1239 = vsel %vm1188, %v1185, 0
        %1241 = vmatprep.subr.bf16.mxu0 0
        %1242 = vmatpush1.bf16.xpose.msra.mxu0 0
        %1243 = vmatprep.subr.bf16.mxu0 0
        %1244 = vmatpush1.bf16.xpose.msra.mxu0 0
        %1245 = vmatprep.subr.bf16.mxu0 0
        %1246 = vmatpush1.bf16.xpose.msra.mxu0 0
        %1247 = vmatprep.subr.bf16.mxu0 0
        %1248 = vmatpush1.bf16.xpose.msra.mxu0 0
        %1249 = vmatprep.subr.bf16.mxu0 0
        %1250 = vmatpush1.bf16.xpose.msra.mxu0 0
        %1251 = vmatprep.subr.bf16.mxu0 0
        %1252 = vmatpush1.bf16.xpose.msra.mxu0 0
        %1253 = vmatprep.subr.bf16.mxu0 0
        %1254 = vmatpush1.bf16.xpose.msra.mxu0 0
        %1255 = vmatprep.subr.bf16.mxu0 0
        %1256 = vmatpush1.bf16.xpose.msra.mxu0 %v1239
        %1257 = vmatprep.subr.bf16.mxu0 0
        %1258 = vmatpush2.bf16.xpose.msra.mxu0 0
        %1259 = vmatprep.subr.bf16.mxu0 0
        %1260 = vmatpush2.bf16.xpose.msra.mxu0 0
        %1261 = vmatprep.subr.bf16.mxu0 0
        %1262 = vmatpush2.bf16.xpose.msra.mxu0 0
        %1263 = vmatprep.subr.bf16.mxu0 0
        %1264 = vmatpush2.bf16.xpose.msra.mxu0 0
        %1265 = vmatprep.subr.bf16.mxu0 0
        %1266 = vmatpush2.bf16.xpose.msra.mxu0 0
        %1267 = vmatprep.subr.bf16.mxu0 0
        %1268 = vmatpush2.bf16.xpose.msra.mxu0 0
        %1269 = vmatprep.subr.bf16.mxu0 0
        %1270 = vmatpush2.bf16.xpose.msra.mxu0 0
        %1271 = vmatprep.subr.bf16.mxu0 0
        %1272 = vmatpush2.bf16.xpose.msra.mxu0 0
        %1273 = vmatprep.mubr.bf16.mxu0 0
        %1274 = vmatmul.mubr.bf16.gmra.mxu0 %v1236
        %v1275 = vpop.f32.mrf.mxu0
        %v1276 = vadd.f32 0.0, %v1275
        %v1277 = vpop.f32.mrf.mxu0
        %v1278 = vpop.f32.mrf.mxu0
        %v1279 = vpop.f32.mrf.mxu0
        %1280 = vdwg.mxu0
        %v1282 = vsel %vm1188, %v1182, 0
        %v1285 = vsel %vm1188, %v1186, 0
        %1287 = vmatprep.subr.bf16.mxu0 0
        %1288 = vmatpush1.bf16.xpose.msra.mxu0 0
        %1289 = vmatprep.subr.bf16.mxu0 0
        %1290 = vmatpush1.bf16.xpose.msra.mxu0 0
        %1291 = vmatprep.subr.bf16.mxu0 0
        %1292 = vmatpush1.bf16.xpose.msra.mxu0 0
        %1293 = vmatprep.subr.bf16.mxu0 0
        %1294 = vmatpush1.bf16.xpose.msra.mxu0 0
        %1295 = vmatprep.subr.bf16.mxu0 0
        %1296 = vmatpush1.bf16.xpose.msra.mxu0 0
        %1297 = vmatprep.subr.bf16.mxu0 0
        %1298 = vmatpush1.bf16.xpose.msra.mxu0 0
        %1299 = vmatprep.subr.bf16.mxu0 0
        %1300 = vmatpush1.bf16.xpose.msra.mxu0 0
        %1301 = vmatprep.subr.bf16.mxu0 0
        %1302 = vmatpush1.bf16.xpose.msra.mxu0 %v1285
        %1303 = vmatprep.subr.bf16.mxu0 0
        %1304 = vmatpush2.bf16.xpose.msra.mxu0 0
        %1305 = vmatprep.subr.bf16.mxu0 0
        %1306 = vmatpush2.bf16.xpose.msra.mxu0 0
        %1307 = vmatprep.subr.bf16.mxu0 0
        %1308 = vmatpush2.bf16.xpose.msra.mxu0 0
        %1309 = vmatprep.subr.bf16.mxu0 0
        %1310 = vmatpush2.bf16.xpose.msra.mxu0 0
        %1311 = vmatprep.subr.bf16.mxu0 0
        %1312 = vmatpush2.bf16.xpose.msra.mxu0 0
        %1313 = vmatprep.subr.bf16.mxu0 0
        %1314 = vmatpush2.bf16.xpose.msra.mxu0 0
        %1315 = vmatprep.subr.bf16.mxu0 0
        %1316 = vmatpush2.bf16.xpose.msra.mxu0 0
        %1317 = vmatprep.subr.bf16.mxu0 0
        %1318 = vmatpush2.bf16.xpose.msra.mxu0 0
        %1319 = vmatprep.mubr.bf16.mxu0 0
        %1320 = vmatmul.mubr.bf16.gmra.mxu0 %v1282
        %v1321 = vpop.f32.mrf.mxu0
        %v1322 = vadd.f32 0.0, %v1321
        %v1323 = vpop.f32.mrf.mxu0
        %v1324 = vpop.f32.mrf.mxu0
        %v1325 = vpop.f32.mrf.mxu0
        %1326 = vdwg.mxu0
        %v1328 = vsel %vm1188, %v1183, 0
        %v1331 = vsel %vm1188, %v1187, 0
        %1333 = vmatprep.subr.bf16.mxu0 0
        %1334 = vmatpush1.bf16.xpose.msra.mxu0 0
        %1335 = vmatprep.subr.bf16.mxu0 0
        %1336 = vmatpush1.bf16.xpose.msra.mxu0 0
        %1337 = vmatprep.subr.bf16.mxu0 0
        %1338 = vmatpush1.bf16.xpose.msra.mxu0 0
        %1339 = vmatprep.subr.bf16.mxu0 0
        %1340 = vmatpush1.bf16.xpose.msra.mxu0 0
        %1341 = vmatprep.subr.bf16.mxu0 0
        %1342 = vmatpush1.bf16.xpose.msra.mxu0 0
        %1343 = vmatprep.subr.bf16.mxu0 0
        %1344 = vmatpush1.bf16.xpose.msra.mxu0 0
        %1345 = vmatprep.subr.bf16.mxu0 0
        %1346 = vmatpush1.bf16.xpose.msra.mxu0 0
        %1347 = vmatprep.subr.bf16.mxu0 0
        %1348 = vmatpush1.bf16.xpose.msra.mxu0 %v1331
        %1349 = vmatprep.subr.bf16.mxu0 0
        %1350 = vmatpush2.bf16.xpose.msra.mxu0 0
        %1351 = vmatprep.subr.bf16.mxu0 0
        %1352 = vmatpush2.bf16.xpose.msra.mxu0 0
        %1353 = vmatprep.subr.bf16.mxu0 0
        %1354 = vmatpush2.bf16.xpose.msra.mxu0 0
        %1355 = vmatprep.subr.bf16.mxu0 0
        %1356 = vmatpush2.bf16.xpose.msra.mxu0 0
        %1357 = vmatprep.subr.bf16.mxu0 0
        %1358 = vmatpush2.bf16.xpose.msra.mxu0 0
        %1359 = vmatprep.subr.bf16.mxu0 0
        %1360 = vmatpush2.bf16.xpose.msra.mxu0 0
        %1361 = vmatprep.subr.bf16.mxu0 0
        %1362 = vmatpush2.bf16.xpose.msra.mxu0 0
        %1363 = vmatprep.subr.bf16.mxu0 0
        %1364 = vmatpush2.bf16.xpose.msra.mxu0 0
        %1365 = vmatprep.mubr.bf16.mxu0 0
        %1366 = vmatmul.mubr.bf16.gmra.mxu0 %v1328
        %v1367 = vpop.f32.mrf.mxu0
        %v1368 = vadd.f32 0.0, %v1367
        %v1369 = vpop.f32.mrf.mxu0
        %v1370 = vpop.f32.mrf.mxu0
        %v1371 = vpop.f32.mrf.mxu0
        %1372 = vdwg.mxu0
        %vm1373 = vcmask 64512
        %v1374 = vsel %vm1373, %v1230, -inf
        %1375 = vmax.xlane.f32.xlu0 %v1374
        %v1376 = vpop.xlane.xlu0 %1375
        %v1377 = vsel %vm1373, %v1276, -inf
        %1378 = vmax.xlane.f32.xlu0 %v1377
        %v1379 = vpop.xlane.xlu0 %1378
        %v1380 = vsel %vm1373, %v1322, -inf
        %1381 = vmax.xlane.f32.xlu0 %v1380
        %v1382 = vpop.xlane.xlu0 %1381
        %v1383 = vsel %vm1373, %v1368, -inf
        %1384 = vmax.xlane.f32.xlu0 %v1383
        %v1385 = vpop.xlane.xlu0 %1384
        %v1386 = vsub.f32 %v1230, %v1376
        %v1387 = vsub.f32 %v1276, %v1379
        %v1388 = vsub.f32 %v1322, %v1382
        %v1389 = vsub.f32 %v1368, %v1385
        %v1390 = vmul.f32 %v1386, 1.442695
        %v1391 = vpow.pop %v1390
        %v1392 = vmul.f32 %v1387, 1.442695
        %v1393 = vpow.pop %v1392
        %v1394 = vmul.f32 %v1388, 1.442695
        %v1395 = vpow.pop %v1394
        %v1396 = vmul.f32 %v1389, 1.442695
        %v1397 = vpow.pop %v1396
        %v1398 = vsel %vm1373, %v1391, 0.0
        %1399 = vadd.xlane.f32.xlu0 %v1398
        %v1400 = vpop.xlane.xlu0 %1399
        %v1401 = vsel %vm1373, %v1393, 0.0
        %1402 = vadd.xlane.f32.xlu0 %v1401
        %v1403 = vpop.xlane.xlu0 %1402
        %v1404 = vsel %vm1373, %v1395, 0.0
        %1405 = vadd.xlane.f32.xlu0 %v1404
        %v1406 = vpop.xlane.xlu0 %1405
        %v1407 = vsel %vm1373, %v1397, 0.0
        %1408 = vadd.xlane.f32.xlu0 %v1407
        %v1409 = vpop.xlane.xlu0 %1408
        %v1410 = vrcp.pop %v1400
        %v1411 = vrcp.pop %v1403
        %v1412 = vrcp.pop %v1406
        %v1413 = vrcp.pop %v1409
        %v1414 = vmul.f32 %v1391, %v1410
        %v1415 = vmul.f32 %v1393, %v1411
        %v1416 = vmul.f32 %v1395, %v1412
        %v1417 = vmul.f32 %v1397, %v1413
        %v1418 = vpack.c.bf16 %v1414, %v1414
        %v1419 = vpack.c.bf16 %v1415, %v1415
        %v1420 = vpack.c.bf16 %v1416, %v1416
        %v1421 = vpack.c.bf16 %v1417, %v1417
        %v1422 = vpack.c.bf16 %v1176, %v1176
        %v1423 = vpack.c.bf16 %v1177, %v1177
        %v1424 = vpack.c.bf16 %v1178, %v1178
        %v1425 = vpack.c.bf16 %v1179, %v1179
        %v1427 = vsel %vm1373, %v1418, 0
        %vm1429 = vcmask 1043456
        %v1431 = vsel %vm1429, %v1422, 0
        %1433 = vmatprep.subr.bf16.mxu0 0
        %1434 = vmatpush1.bf16.msra.mxu0 0
        %1435 = vmatprep.subr.bf16.mxu0 0
        %1436 = vmatpush1.bf16.msra.mxu0 0
        %1437 = vmatprep.subr.bf16.mxu0 0
        %1438 = vmatpush1.bf16.msra.mxu0 0
        %1439 = vmatprep.subr.bf16.mxu0 0
        %1440 = vmatpush1.bf16.msra.mxu0 0
        %1441 = vmatprep.subr.bf16.mxu0 0
        %1442 = vmatpush1.bf16.msra.mxu0 0
        %1443 = vmatprep.subr.bf16.mxu0 0
        %1444 = vmatpush1.bf16.msra.mxu0 0
        %1445 = vmatprep.subr.bf16.mxu0 0
        %1446 = vmatpush1.bf16.msra.mxu0 0
        %1447 = vmatprep.subr.bf16.mxu0 0
        %1448 = vmatpush1.bf16.msra.mxu0 %v1431
        %1449 = vmatprep.subr.bf16.mxu0 0
        %1450 = vmatpush2.bf16.msra.mxu0 0
        %1451 = vmatprep.subr.bf16.mxu0 0
        %1452 = vmatpush2.bf16.msra.mxu0 0
        %1453 = vmatprep.subr.bf16.mxu0 0
        %1454 = vmatpush2.bf16.msra.mxu0 0
        %1455 = vmatprep.subr.bf16.mxu0 0
        %1456 = vmatpush2.bf16.msra.mxu0 0
        %1457 = vmatprep.subr.bf16.mxu0 0
        %1458 = vmatpush2.bf16.msra.mxu0 0
        %1459 = vmatprep.subr.bf16.mxu0 0
        %1460 = vmatpush2.bf16.msra.mxu0 0
        %1461 = vmatprep.subr.bf16.mxu0 0
        %1462 = vmatpush2.bf16.msra.mxu0 0
        %1463 = vmatprep.subr.bf16.mxu0 0
        %1464 = vmatpush2.bf16.msra.mxu0 0
        %1465 = vmatprep.mubr.bf16.mxu0 0
        %1466 = vmatmul.mubr.bf16.gmra.mxu0 %v1427
        %v1467 = vpop.f32.mrf.mxu0
        %v1468 = vadd.f32 0.0, %v1467
        %v1469 = vpop.f32.mrf.mxu0
        %v1470 = vpop.f32.mrf.mxu0
        %v1471 = vpop.f32.mrf.mxu0
        %1472 = vdwg.mxu0
        %v1474 = vsel %vm1373, %v1419, 0
        %v1477 = vsel %vm1429, %v1423, 0
        %1479 = vmatprep.subr.bf16.mxu0 0
        %1480 = vmatpush1.bf16.msra.mxu0 0
        %1481 = vmatprep.subr.bf16.mxu0 0
        %1482 = vmatpush1.bf16.msra.mxu0 0
        %1483 = vmatprep.subr.bf16.mxu0 0
        %1484 = vmatpush1.bf16.msra.mxu0 0
        %1485 = vmatprep.subr.bf16.mxu0 0
        %1486 = vmatpush1.bf16.msra.mxu0 0
        %1487 = vmatprep.subr.bf16.mxu0 0
        %1488 = vmatpush1.bf16.msra.mxu0 0
        %1489 = vmatprep.subr.bf16.mxu0 0
        %1490 = vmatpush1.bf16.msra.mxu0 0
        %1491 = vmatprep.subr.bf16.mxu0 0
        %1492 = vmatpush1.bf16.msra.mxu0 0
        %1493 = vmatprep.subr.bf16.mxu0 0
        %1494 = vmatpush1.bf16.msra.mxu0 %v1477
        %1495 = vmatprep.subr.bf16.mxu0 0
        %1496 = vmatpush2.bf16.msra.mxu0 0
        %1497 = vmatprep.subr.bf16.mxu0 0
        %1498 = vmatpush2.bf16.msra.mxu0 0
        %1499 = vmatprep.subr.bf16.mxu0 0
        %1500 = vmatpush2.bf16.msra.mxu0 0
        %1501 = vmatprep.subr.bf16.mxu0 0
        %1502 = vmatpush2.bf16.msra.mxu0 0
        %1503 = vmatprep.subr.bf16.mxu0 0
        %1504 = vmatpush2.bf16.msra.mxu0 0
        %1505 = vmatprep.subr.bf16.mxu0 0
        %1506 = vmatpush2.bf16.msra.mxu0 0
        %1507 = vmatprep.subr.bf16.mxu0 0
        %1508 = vmatpush2.bf16.msra.mxu0 0
        %1509 = vmatprep.subr.bf16.mxu0 0
        %1510 = vmatpush2.bf16.msra.mxu0 0
        %1511 = vmatprep.mubr.bf16.mxu0 0
        %1512 = vmatmul.mubr.bf16.gmra.mxu0 %v1474
        %v1513 = vpop.f32.mrf.mxu0
        %v1514 = vadd.f32 0.0, %v1513
        %v1515 = vpop.f32.mrf.mxu0
        %v1516 = vpop.f32.mrf.mxu0
        %v1517 = vpop.f32.mrf.mxu0
        %1518 = vdwg.mxu0
        %v1520 = vsel %vm1373, %v1420, 0
        %v1523 = vsel %vm1429, %v1424, 0
        %1525 = vmatprep.subr.bf16.mxu0 0
        %1526 = vmatpush1.bf16.msra.mxu0 0
        %1527 = vmatprep.subr.bf16.mxu0 0
        %1528 = vmatpush1.bf16.msra.mxu0 0
        %1529 = vmatprep.subr.bf16.mxu0 0
        %1530 = vmatpush1.bf16.msra.mxu0 0
        %1531 = vmatprep.subr.bf16.mxu0 0
        %1532 = vmatpush1.bf16.msra.mxu0 0
        %1533 = vmatprep.subr.bf16.mxu0 0
        %1534 = vmatpush1.bf16.msra.mxu0 0
        %1535 = vmatprep.subr.bf16.mxu0 0
        %1536 = vmatpush1.bf16.msra.mxu0 0
        %1537 = vmatprep.subr.bf16.mxu0 0
        %1538 = vmatpush1.bf16.msra.mxu0 0
        %1539 = vmatprep.subr.bf16.mxu0 0
        %1540 = vmatpush1.bf16.msra.mxu0 %v1523
        %1541 = vmatprep.subr.bf16.mxu0 0
        %1542 = vmatpush2.bf16.msra.mxu0 0
        %1543 = vmatprep.subr.bf16.mxu0 0
        %1544 = vmatpush2.bf16.msra.mxu0 0
        %1545 = vmatprep.subr.bf16.mxu0 0
        %1546 = vmatpush2.bf16.msra.mxu0 0
        %1547 = vmatprep.subr.bf16.mxu0 0
        %1548 = vmatpush2.bf16.msra.mxu0 0
        %1549 = vmatprep.subr.bf16.mxu0 0
        %1550 = vmatpush2.bf16.msra.mxu0 0
        %1551 = vmatprep.subr.bf16.mxu0 0
        %1552 = vmatpush2.bf16.msra.mxu0 0
        %1553 = vmatprep.subr.bf16.mxu0 0
        %1554 = vmatpush2.bf16.msra.mxu0 0
        %1555 = vmatprep.subr.bf16.mxu0 0
        %1556 = vmatpush2.bf16.msra.mxu0 0
        %1557 = vmatprep.mubr.bf16.mxu0 0
        %1558 = vmatmul.mubr.bf16.gmra.mxu0 %v1520
        %v1559 = vpop.f32.mrf.mxu0
        %v1560 = vadd.f32 0.0, %v1559
        %v1561 = vpop.f32.mrf.mxu0
        %v1562 = vpop.f32.mrf.mxu0
        %v1563 = vpop.f32.mrf.mxu0
        %1564 = vdwg.mxu0
        %v1566 = vsel %vm1373, %v1421, 0
        %v1569 = vsel %vm1429, %v1425, 0
        %1571 = vmatprep.subr.bf16.mxu0 0
        %1572 = vmatpush1.bf16.msra.mxu0 0
        %1573 = vmatprep.subr.bf16.mxu0 0
        %1574 = vmatpush1.bf16.msra.mxu0 0
        %1575 = vmatprep.subr.bf16.mxu0 0
        %1576 = vmatpush1.bf16.msra.mxu0 0
        %1577 = vmatprep.subr.bf16.mxu0 0
        %1578 = vmatpush1.bf16.msra.mxu0 0
        %1579 = vmatprep.subr.bf16.mxu0 0
        %1580 = vmatpush1.bf16.msra.mxu0 0
        %1581 = vmatprep.subr.bf16.mxu0 0
        %1582 = vmatpush1.bf16.msra.mxu0 0
        %1583 = vmatprep.subr.bf16.mxu0 0
        %1584 = vmatpush1.bf16.msra.mxu0 0
        %1585 = vmatprep.subr.bf16.mxu0 0
        %1586 = vmatpush1.bf16.msra.mxu0 %v1569
        %1587 = vmatprep.subr.bf16.mxu0 0
        %1588 = vmatpush2.bf16.msra.mxu0 0
        %1589 = vmatprep.subr.bf16.mxu0 0
        %1590 = vmatpush2.bf16.msra.mxu0 0
        %1591 = vmatprep.subr.bf16.mxu0 0
        %1592 = vmatpush2.bf16.msra.mxu0 0
        %1593 = vmatprep.subr.bf16.mxu0 0
        %1594 = vmatpush2.bf16.msra.mxu0 0
        %1595 = vmatprep.subr.bf16.mxu0 0
        %1596 = vmatpush2.bf16.msra.mxu0 0
        %1597 = vmatprep.subr.bf16.mxu0 0
        %1598 = vmatpush2.bf16.msra.mxu0 0
        %1599 = vmatprep.subr.bf16.mxu0 0
        %1600 = vmatpush2.bf16.msra.mxu0 0
        %1601 = vmatprep.subr.bf16.mxu0 0
        %1602 = vmatpush2.bf16.msra.mxu0 0
        %1603 = vmatprep.mubr.bf16.mxu0 0
        %1604 = vmatmul.mubr.bf16.gmra.mxu0 %v1566
        %v1605 = vpop.f32.mrf.mxu0
        %v1606 = vadd.f32 0.0, %v1605
        %v1607 = vpop.f32.mrf.mxu0
        %v1608 = vpop.f32.mrf.mxu0
        %v1609 = vpop.f32.mrf.mxu0
        %1610 = vdwg.mxu0
        %v1611 = vcombine.low %v1468, %v1560
        %v1612 = vcombine.high %v1468, %v1560
        %v1614 = vunpack.c.l.s4 1983009808
        %v1615 = vunpack.c.0.s8 %v1614
        %v1616 = vlaneseq
        %v1617 = vshrl.u32 %v1616, 7
        %v1618 = vsub.s32 %v1615, %v1617
        %v1619 = vrot.slane %v1611, %v1618
        %v1621 = vunpack.c.l.s4 1983009808
        %v1622 = vunpack.c.0.s8 %v1621
        %v1623 = vlaneseq
        %v1624 = vshrl.u32 %v1623, 7
        %v1625 = vsub.s32 %v1622, %v1624
        %v1626 = vrot.slane %v1612, %v1625
        %v1627 = vcombine.low %v1514, %v1606
        %v1628 = vcombine.high %v1514, %v1606
        %v1630 = vunpack.c.l.s4 1983009808
        %v1631 = vunpack.c.0.s8 %v1630
        %v1632 = vlaneseq
        %v1633 = vshrl.u32 %v1632, 7
        %v1634 = vsub.s32 %v1631, %v1633
        %v1635 = vrot.slane %v1627, %v1634
        %v1637 = vunpack.c.l.s4 1983009808
        %v1638 = vunpack.c.0.s8 %v1637
        %v1639 = vlaneseq
        %v1640 = vshrl.u32 %v1639, 7
        %v1641 = vsub.s32 %v1638, %v1640
        %v1642 = vrot.slane %v1628, %v1641
        %v1643 = vcombine.low %v1619, %v1635
        %v1644 = vcombine.high %v1619, %v1635
        %v1646 = vunpack.c.l.s4 1934713408
        %v1647 = vunpack.c.0.s8 %v1646
        %v1648 = vlaneseq
        %v1649 = vshrl.u32 %v1648, 7
        %v1650 = vsub.s32 %v1647, %v1649
        %v1651 = vrot.slane %v1643, %v1650
        %v1653 = vunpack.c.l.s4 1934713408
        %v1654 = vunpack.c.0.s8 %v1653
        %v1655 = vlaneseq
        %v1656 = vshrl.u32 %v1655, 7
        %v1657 = vsub.s32 %v1654, %v1656
        %v1658 = vrot.slane %v1644, %v1657
        %v1659 = vcombine.low %v1626, %v1642
        %v1660 = vcombine.high %v1626, %v1642
        %v1662 = vunpack.c.l.s4 1934713408
        %v1663 = vunpack.c.0.s8 %v1662
        %v1664 = vlaneseq
        %v1665 = vshrl.u32 %v1664, 7
        %v1666 = vsub.s32 %v1663, %v1665
        %v1667 = vrot.slane %v1659, %v1666
        %v1669 = vunpack.c.l.s4 1934713408
        %v1670 = vunpack.c.0.s8 %v1669
        %v1671 = vlaneseq
        %v1672 = vshrl.u32 %v1671, 7
        %v1673 = vsub.s32 %v1670, %v1672
        %v1674 = vrot.slane %v1660, %v1673
        %v1675 = vcombine.high %v1651, 0.0
        %v1676 = vcombine.high %v1658, 0.0
        %v1677 = vcombine.high %v1667, 0.0
        %v1678 = vcombine.high %v1674, 0.0
        %v1679 = vcombine.low %v1651, %v1658
        %v1681 = vunpack.c.l.s4 1983009808
        %v1682 = vunpack.c.0.s8 %v1681
        %v1683 = vlaneseq
        %v1684 = vshrl.u32 %v1683, 7
        %v1685 = vsub.s32 %v1682, %v1684
        %v1686 = vrot.slane %v1679, %v1685
        %v1687 = vcombine.low %v1675, %v1676
        %v1689 = vunpack.c.l.s4 1983009808
        %v1690 = vunpack.c.0.s8 %v1689
        %v1691 = vlaneseq
        %v1692 = vshrl.u32 %v1691, 7
        %v1693 = vsub.s32 %v1690, %v1692
        %v1694 = vrot.slane %v1687, %v1693
        %v1695 = vcombine.low %v1667, %v1674
        %v1697 = vunpack.c.l.s4 1983009808
        %v1698 = vunpack.c.0.s8 %v1697
        %v1699 = vlaneseq
        %v1700 = vshrl.u32 %v1699, 7
        %v1701 = vsub.s32 %v1698, %v1700
        %v1702 = vrot.slane %v1695, %v1701
        %v1703 = vcombine.low %v1677, %v1678
        %v1705 = vunpack.c.l.s4 1983009808
        %v1706 = vunpack.c.0.s8 %v1705
        %v1707 = vlaneseq
        %v1708 = vshrl.u32 %v1707, 7
        %v1709 = vsub.s32 %v1706, %v1708
        %v1710 = vrot.slane %v1703, %v1709
        %v1711 = vcombine.low %v1686, %v1694
        %v1712 = vcombine.high %v1686, %v1694
        %v1714 = vunpack.c.l.s4 1934713408
        %v1715 = vunpack.c.0.s8 %v1714
        %v1716 = vlaneseq
        %v1717 = vshrl.u32 %v1716, 7
        %v1718 = vsub.s32 %v1715, %v1717
        %v1719 = vrot.slane %v1711, %v1718
        %v1721 = vunpack.c.l.s4 1934713408
        %v1722 = vunpack.c.0.s8 %v1721
        %v1723 = vlaneseq
        %v1724 = vshrl.u32 %v1723, 7
        %v1725 = vsub.s32 %v1722, %v1724
        %v1726 = vrot.slane %v1712, %v1725
        %v1727 = vcombine.low %v1702, %v1710
        %v1728 = vcombine.high %v1702, %v1710
        %v1730 = vunpack.c.l.s4 1934713408
        %v1731 = vunpack.c.0.s8 %v1730
        %v1732 = vlaneseq
        %v1733 = vshrl.u32 %v1732, 7
        %v1734 = vsub.s32 %v1731, %v1733
        %v1735 = vrot.slane %v1727, %v1734
        %v1737 = vunpack.c.l.s4 1934713408
        %v1738 = vunpack.c.0.s8 %v1737
        %v1739 = vlaneseq
        %v1740 = vshrl.u32 %v1739, 7
        %v1741 = vsub.s32 %v1738, %v1740
        %v1742 = vrot.slane %v1728, %v1741
        %v1743 = vcombine.low %v1719, %v1735
        %v1744 = vcombine.high %v1719, %v1735
        %v1745 = vcombine.low %v1726, %v1742
        %v1746 = vcombine.high %v1726, %v1742
        %1748 = vrot.lane.b32.xlu0 %v1744, 32
        %v1749 = vpop.permute.xlu0 %1748
        %1752 = vrot.lane.b32.xlu0 %v1745, 64
        %v1753 = vpop.permute.xlu0 %1752
        %1756 = vrot.lane.b32.xlu0 %v1746, 96
        %v1757 = vpop.permute.xlu0 %1756
        %v1759 = vsel %vm1188, %v1743, %v1749
        %vm1760 = vcmask 523264
        %v1761 = vsel %vm1760, %v1759, %v1753
        %vm1762 = vcmask 785408
        %v1763 = vsel %vm1762, %v1761, %v1757
        %1765 = vrot.lane.b32.xlu0 %v729, 96
        %v1766 = vpop.permute.xlu0 %1765
        %1768 = vrot.lane.b32.xlu0 %v729, 64
        %v1769 = vpop.permute.xlu0 %1768
        %1771 = vrot.lane.b32.xlu0 %v729, 32
        %v1772 = vpop.permute.xlu0 %1771
        %v1774 = vcombine.low %v729, %v1769
        %v1775 = vcombine.high %v729, %v1769
        %v1777 = vunpack.c.l.s4 1983009808
        %v1778 = vunpack.c.0.s8 %v1777
        %v1779 = vlaneseq
        %v1780 = vshrl.u32 %v1779, 7
        %v1781 = vsub.s32 %v1778, %v1780
        %v1782 = vrot.slane %v1774, %v1781
        %v1784 = vunpack.c.l.s4 1983009808
        %v1785 = vunpack.c.0.s8 %v1784
        %v1786 = vlaneseq
        %v1787 = vshrl.u32 %v1786, 7
        %v1788 = vsub.s32 %v1785, %v1787
        %v1789 = vrot.slane %v1775, %v1788
        %v1790 = vcombine.low %v1766, %v1772
        %v1791 = vcombine.high %v1766, %v1772
        %v1793 = vunpack.c.l.s4 1983009808
        %v1794 = vunpack.c.0.s8 %v1793
        %v1795 = vlaneseq
        %v1796 = vshrl.u32 %v1795, 7
        %v1797 = vsub.s32 %v1794, %v1796
        %v1798 = vrot.slane %v1790, %v1797
        %v1800 = vunpack.c.l.s4 1983009808
        %v1801 = vunpack.c.0.s8 %v1800
        %v1802 = vlaneseq
        %v1803 = vshrl.u32 %v1802, 7
        %v1804 = vsub.s32 %v1801, %v1803
        %v1805 = vrot.slane %v1791, %v1804
        %v1806 = vcombine.low %v1782, %v1798
        %v1807 = vcombine.high %v1782, %v1798
        %v1809 = vunpack.c.l.s4 1934713408
        %v1810 = vunpack.c.0.s8 %v1809
        %v1811 = vlaneseq
        %v1812 = vshrl.u32 %v1811, 7
        %v1813 = vsub.s32 %v1810, %v1812
        %v1814 = vrot.slane %v1806, %v1813
        %v1816 = vunpack.c.l.s4 1934713408
        %v1817 = vunpack.c.0.s8 %v1816
        %v1818 = vlaneseq
        %v1819 = vshrl.u32 %v1818, 7
        %v1820 = vsub.s32 %v1817, %v1819
        %v1821 = vrot.slane %v1807, %v1820
        %v1822 = vcombine.low %v1789, %v1805
        %v1823 = vcombine.high %v1789, %v1805
        %v1825 = vunpack.c.l.s4 1934713408
        %v1826 = vunpack.c.0.s8 %v1825
        %v1827 = vlaneseq
        %v1828 = vshrl.u32 %v1827, 7
        %v1829 = vsub.s32 %v1826, %v1828
        %v1830 = vrot.slane %v1822, %v1829
        %v1832 = vunpack.c.l.s4 1934713408
        %v1833 = vunpack.c.0.s8 %v1832
        %v1834 = vlaneseq
        %v1835 = vshrl.u32 %v1834, 7
        %v1836 = vsub.s32 %v1833, %v1835
        %v1837 = vrot.slane %v1823, %v1836
        %v1838 = vcombine.high %v1814, 0.0
        %v1839 = vcombine.high %v1821, 0.0
        %v1840 = vcombine.high %v1830, 0.0
        %v1841 = vcombine.high %v1837, 0.0
        %v1842 = vcombine.low %v1814, %v1821
        %v1844 = vunpack.c.l.s4 1983009808
        %v1845 = vunpack.c.0.s8 %v1844
        %v1846 = vlaneseq
        %v1847 = vshrl.u32 %v1846, 7
        %v1848 = vsub.s32 %v1845, %v1847
        %v1849 = vrot.slane %v1842, %v1848
        %v1850 = vcombine.low %v1838, %v1839
        %v1852 = vunpack.c.l.s4 1983009808
        %v1853 = vunpack.c.0.s8 %v1852
        %v1854 = vlaneseq
        %v1855 = vshrl.u32 %v1854, 7
        %v1856 = vsub.s32 %v1853, %v1855
        %v1857 = vrot.slane %v1850, %v1856
        %v1858 = vcombine.low %v1830, %v1837
        %v1860 = vunpack.c.l.s4 1983009808
        %v1861 = vunpack.c.0.s8 %v1860
        %v1862 = vlaneseq
        %v1863 = vshrl.u32 %v1862, 7
        %v1864 = vsub.s32 %v1861, %v1863
        %v1865 = vrot.slane %v1858, %v1864
        %v1866 = vcombine.low %v1840, %v1841
        %v1868 = vunpack.c.l.s4 1983009808
        %v1869 = vunpack.c.0.s8 %v1868
        %v1870 = vlaneseq
        %v1871 = vshrl.u32 %v1870, 7
        %v1872 = vsub.s32 %v1869, %v1871
        %v1873 = vrot.slane %v1866, %v1872
        %v1874 = vcombine.low %v1849, %v1857
        %v1875 = vcombine.high %v1849, %v1857
        %v1877 = vunpack.c.l.s4 1934713408
        %v1878 = vunpack.c.0.s8 %v1877
        %v1879 = vlaneseq
        %v1880 = vshrl.u32 %v1879, 7
        %v1881 = vsub.s32 %v1878, %v1880
        %v1882 = vrot.slane %v1874, %v1881
        %v1884 = vunpack.c.l.s4 1934713408
        %v1885 = vunpack.c.0.s8 %v1884
        %v1886 = vlaneseq
        %v1887 = vshrl.u32 %v1886, 7
        %v1888 = vsub.s32 %v1885, %v1887
        %v1889 = vrot.slane %v1875, %v1888
        %v1890 = vcombine.low %v1865, %v1873
        %v1891 = vcombine.high %v1865, %v1873
        %v1893 = vunpack.c.l.s4 1934713408
        %v1894 = vunpack.c.0.s8 %v1893
        %v1895 = vlaneseq
        %v1896 = vshrl.u32 %v1895, 7
        %v1897 = vsub.s32 %v1894, %v1896
        %v1898 = vrot.slane %v1890, %v1897
        %v1900 = vunpack.c.l.s4 1934713408
        %v1901 = vunpack.c.0.s8 %v1900
        %v1902 = vlaneseq
        %v1903 = vshrl.u32 %v1902, 7
        %v1904 = vsub.s32 %v1901, %v1903
        %v1905 = vrot.slane %v1891, %v1904
        %v1906 = vcombine.low %v1882, %v1898
        %v1907 = vcombine.high %v1882, %v1898
        %v1908 = vcombine.low %v1889, %v1905
        %v1909 = vcombine.high %v1889, %v1905
        %1911 = vrot.lane.b32.xlu0 %v735, 96
        %v1912 = vpop.permute.xlu0 %1911
        %1914 = vrot.lane.b32.xlu0 %v735, 64
        %v1915 = vpop.permute.xlu0 %1914
        %1917 = vrot.lane.b32.xlu0 %v735, 32
        %v1918 = vpop.permute.xlu0 %1917
        %v1920 = vcombine.low %v735, %v1915
        %v1921 = vcombine.high %v735, %v1915
        %v1923 = vunpack.c.l.s4 1983009808
        %v1924 = vunpack.c.0.s8 %v1923
        %v1925 = vlaneseq
        %v1926 = vshrl.u32 %v1925, 7
        %v1927 = vsub.s32 %v1924, %v1926
        %v1928 = vrot.slane %v1920, %v1927
        %v1930 = vunpack.c.l.s4 1983009808
        %v1931 = vunpack.c.0.s8 %v1930
        %v1932 = vlaneseq
        %v1933 = vshrl.u32 %v1932, 7
        %v1934 = vsub.s32 %v1931, %v1933
        %v1935 = vrot.slane %v1921, %v1934
        %v1936 = vcombine.low %v1912, %v1918
        %v1937 = vcombine.high %v1912, %v1918
        %v1939 = vunpack.c.l.s4 1983009808
        %v1940 = vunpack.c.0.s8 %v1939
        %v1941 = vlaneseq
        %v1942 = vshrl.u32 %v1941, 7
        %v1943 = vsub.s32 %v1940, %v1942
        %v1944 = vrot.slane %v1936, %v1943
        %v1946 = vunpack.c.l.s4 1983009808
        %v1947 = vunpack.c.0.s8 %v1946
        %v1948 = vlaneseq
        %v1949 = vshrl.u32 %v1948, 7
        %v1950 = vsub.s32 %v1947, %v1949
        %v1951 = vrot.slane %v1937, %v1950
        %v1952 = vcombine.low %v1928, %v1944
        %v1953 = vcombine.high %v1928, %v1944
        %v1955 = vunpack.c.l.s4 1934713408
        %v1956 = vunpack.c.0.s8 %v1955
        %v1957 = vlaneseq
        %v1958 = vshrl.u32 %v1957, 7
        %v1959 = vsub.s32 %v1956, %v1958
        %v1960 = vrot.slane %v1952, %v1959
        %v1962 = vunpack.c.l.s4 1934713408
        %v1963 = vunpack.c.0.s8 %v1962
        %v1964 = vlaneseq
        %v1965 = vshrl.u32 %v1964, 7
        %v1966 = vsub.s32 %v1963, %v1965
        %v1967 = vrot.slane %v1953, %v1966
        %v1968 = vcombine.low %v1935, %v1951
        %v1969 = vcombine.high %v1935, %v1951
        %v1971 = vunpack.c.l.s4 1934713408
        %v1972 = vunpack.c.0.s8 %v1971
        %v1973 = vlaneseq
        %v1974 = vshrl.u32 %v1973, 7
        %v1975 = vsub.s32 %v1972, %v1974
        %v1976 = vrot.slane %v1968, %v1975
        %v1978 = vunpack.c.l.s4 1934713408
        %v1979 = vunpack.c.0.s8 %v1978
        %v1980 = vlaneseq
        %v1981 = vshrl.u32 %v1980, 7
        %v1982 = vsub.s32 %v1979, %v1981
        %v1983 = vrot.slane %v1969, %v1982
        %v1984 = vcombine.high %v1960, 0.0
        %v1985 = vcombine.high %v1967, 0.0
        %v1986 = vcombine.high %v1976, 0.0
        %v1987 = vcombine.high %v1983, 0.0
        %v1988 = vcombine.low %v1960, %v1967
        %v1990 = vunpack.c.l.s4 1983009808
        %v1991 = vunpack.c.0.s8 %v1990
        %v1992 = vlaneseq
        %v1993 = vshrl.u32 %v1992, 7
        %v1994 = vsub.s32 %v1991, %v1993
        %v1995 = vrot.slane %v1988, %v1994
        %v1996 = vcombine.low %v1984, %v1985
        %v1998 = vunpack.c.l.s4 1983009808
        %v1999 = vunpack.c.0.s8 %v1998
        %v2000 = vlaneseq
        %v2001 = vshrl.u32 %v2000, 7
        %v2002 = vsub.s32 %v1999, %v2001
        %v2003 = vrot.slane %v1996, %v2002
        %v2004 = vcombine.low %v1976, %v1983
        %v2006 = vunpack.c.l.s4 1983009808
        %v2007 = vunpack.c.0.s8 %v2006
        %v2008 = vlaneseq
        %v2009 = vshrl.u32 %v2008, 7
        %v2010 = vsub.s32 %v2007, %v2009
        %v2011 = vrot.slane %v2004, %v2010
        %v2012 = vcombine.low %v1986, %v1987
        %v2014 = vunpack.c.l.s4 1983009808
        %v2015 = vunpack.c.0.s8 %v2014
        %v2016 = vlaneseq
        %v2017 = vshrl.u32 %v2016, 7
        %v2018 = vsub.s32 %v2015, %v2017
        %v2019 = vrot.slane %v2012, %v2018
        %v2020 = vcombine.low %v1995, %v2003
        %v2021 = vcombine.high %v1995, %v2003
        %v2023 = vunpack.c.l.s4 1934713408
        %v2024 = vunpack.c.0.s8 %v2023
        %v2025 = vlaneseq
        %v2026 = vshrl.u32 %v2025, 7
        %v2027 = vsub.s32 %v2024, %v2026
        %v2028 = vrot.slane %v2020, %v2027
        %v2030 = vunpack.c.l.s4 1934713408
        %v2031 = vunpack.c.0.s8 %v2030
        %v2032 = vlaneseq
        %v2033 = vshrl.u32 %v2032, 7
        %v2034 = vsub.s32 %v2031, %v2033
        %v2035 = vrot.slane %v2021, %v2034
        %v2036 = vcombine.low %v2011, %v2019
        %v2037 = vcombine.high %v2011, %v2019
        %v2039 = vunpack.c.l.s4 1934713408
        %v2040 = vunpack.c.0.s8 %v2039
        %v2041 = vlaneseq
        %v2042 = vshrl.u32 %v2041, 7
        %v2043 = vsub.s32 %v2040, %v2042
        %v2044 = vrot.slane %v2036, %v2043
        %v2046 = vunpack.c.l.s4 1934713408
        %v2047 = vunpack.c.0.s8 %v2046
        %v2048 = vlaneseq
        %v2049 = vshrl.u32 %v2048, 7
        %v2050 = vsub.s32 %v2047, %v2049
        %v2051 = vrot.slane %v2037, %v2050
        %v2052 = vcombine.low %v2028, %v2044
        %v2053 = vcombine.high %v2028, %v2044
        %v2054 = vcombine.low %v2035, %v2051
        %v2055 = vcombine.high %v2035, %v2051
        %2057 = vrot.lane.b32.xlu0 %v741, 96
        %v2058 = vpop.permute.xlu0 %2057
        %2060 = vrot.lane.b32.xlu0 %v741, 64
        %v2061 = vpop.permute.xlu0 %2060
        %2063 = vrot.lane.b32.xlu0 %v741, 32
        %v2064 = vpop.permute.xlu0 %2063
        %v2066 = vcombine.low %v741, %v2061
        %v2067 = vcombine.high %v741, %v2061
        %v2069 = vunpack.c.l.s4 1983009808
        %v2070 = vunpack.c.0.s8 %v2069
        %v2071 = vlaneseq
        %v2072 = vshrl.u32 %v2071, 7
        %v2073 = vsub.s32 %v2070, %v2072
        %v2074 = vrot.slane %v2066, %v2073
        %v2076 = vunpack.c.l.s4 1983009808
        %v2077 = vunpack.c.0.s8 %v2076
        %v2078 = vlaneseq
        %v2079 = vshrl.u32 %v2078, 7
        %v2080 = vsub.s32 %v2077, %v2079
        %v2081 = vrot.slane %v2067, %v2080
        %v2082 = vcombine.low %v2058, %v2064
        %v2083 = vcombine.high %v2058, %v2064
        %v2085 = vunpack.c.l.s4 1983009808
        %v2086 = vunpack.c.0.s8 %v2085
        %v2087 = vlaneseq
        %v2088 = vshrl.u32 %v2087, 7
        %v2089 = vsub.s32 %v2086, %v2088
        %v2090 = vrot.slane %v2082, %v2089
        %v2092 = vunpack.c.l.s4 1983009808
        %v2093 = vunpack.c.0.s8 %v2092
        %v2094 = vlaneseq
        %v2095 = vshrl.u32 %v2094, 7
        %v2096 = vsub.s32 %v2093, %v2095
        %v2097 = vrot.slane %v2083, %v2096
        %v2098 = vcombine.low %v2074, %v2090
        %v2099 = vcombine.high %v2074, %v2090
        %v2101 = vunpack.c.l.s4 1934713408
        %v2102 = vunpack.c.0.s8 %v2101
        %v2103 = vlaneseq
        %v2104 = vshrl.u32 %v2103, 7
        %v2105 = vsub.s32 %v2102, %v2104
        %v2106 = vrot.slane %v2098, %v2105
        %v2108 = vunpack.c.l.s4 1934713408
        %v2109 = vunpack.c.0.s8 %v2108
        %v2110 = vlaneseq
        %v2111 = vshrl.u32 %v2110, 7
        %v2112 = vsub.s32 %v2109, %v2111
        %v2113 = vrot.slane %v2099, %v2112
        %v2114 = vcombine.low %v2081, %v2097
        %v2115 = vcombine.high %v2081, %v2097
        %v2117 = vunpack.c.l.s4 1934713408
        %v2118 = vunpack.c.0.s8 %v2117
        %v2119 = vlaneseq
        %v2120 = vshrl.u32 %v2119, 7
        %v2121 = vsub.s32 %v2118, %v2120
        %v2122 = vrot.slane %v2114, %v2121
        %v2124 = vunpack.c.l.s4 1934713408
        %v2125 = vunpack.c.0.s8 %v2124
        %v2126 = vlaneseq
        %v2127 = vshrl.u32 %v2126, 7
        %v2128 = vsub.s32 %v2125, %v2127
        %v2129 = vrot.slane %v2115, %v2128
        %v2130 = vcombine.high %v2106, 0.0
        %v2131 = vcombine.high %v2113, 0.0
        %v2132 = vcombine.high %v2122, 0.0
        %v2133 = vcombine.high %v2129, 0.0
        %v2134 = vcombine.low %v2106, %v2113
        %v2136 = vunpack.c.l.s4 1983009808
        %v2137 = vunpack.c.0.s8 %v2136
        %v2138 = vlaneseq
        %v2139 = vshrl.u32 %v2138, 7
        %v2140 = vsub.s32 %v2137, %v2139
        %v2141 = vrot.slane %v2134, %v2140
        %v2142 = vcombine.low %v2130, %v2131
        %v2144 = vunpack.c.l.s4 1983009808
        %v2145 = vunpack.c.0.s8 %v2144
        %v2146 = vlaneseq
        %v2147 = vshrl.u32 %v2146, 7
        %v2148 = vsub.s32 %v2145, %v2147
        %v2149 = vrot.slane %v2142, %v2148
        %v2150 = vcombine.low %v2122, %v2129
        %v2152 = vunpack.c.l.s4 1983009808
        %v2153 = vunpack.c.0.s8 %v2152
        %v2154 = vlaneseq
        %v2155 = vshrl.u32 %v2154, 7
        %v2156 = vsub.s32 %v2153, %v2155
        %v2157 = vrot.slane %v2150, %v2156
        %v2158 = vcombine.low %v2132, %v2133
        %v2160 = vunpack.c.l.s4 1983009808
        %v2161 = vunpack.c.0.s8 %v2160
        %v2162 = vlaneseq
        %v2163 = vshrl.u32 %v2162, 7
        %v2164 = vsub.s32 %v2161, %v2163
        %v2165 = vrot.slane %v2158, %v2164
        %v2166 = vcombine.low %v2141, %v2149
        %v2167 = vcombine.high %v2141, %v2149
        %v2169 = vunpack.c.l.s4 1934713408
        %v2170 = vunpack.c.0.s8 %v2169
        %v2171 = vlaneseq
        %v2172 = vshrl.u32 %v2171, 7
        %v2173 = vsub.s32 %v2170, %v2172
        %v2174 = vrot.slane %v2166, %v2173
        %v2176 = vunpack.c.l.s4 1934713408
        %v2177 = vunpack.c.0.s8 %v2176
        %v2178 = vlaneseq
        %v2179 = vshrl.u32 %v2178, 7
        %v2180 = vsub.s32 %v2177, %v2179
        %v2181 = vrot.slane %v2167, %v2180
        %v2182 = vcombine.low %v2157, %v2165
        %v2183 = vcombine.high %v2157, %v2165
        %v2185 = vunpack.c.l.s4 1934713408
        %v2186 = vunpack.c.0.s8 %v2185
        %v2187 = vlaneseq
        %v2188 = vshrl.u32 %v2187, 7
        %v2189 = vsub.s32 %v2186, %v2188
        %v2190 = vrot.slane %v2182, %v2189
        %v2192 = vunpack.c.l.s4 1934713408
        %v2193 = vunpack.c.0.s8 %v2192
        %v2194 = vlaneseq
        %v2195 = vshrl.u32 %v2194, 7
        %v2196 = vsub.s32 %v2193, %v2195
        %v2197 = vrot.slane %v2183, %v2196
        %v2198 = vcombine.low %v2174, %v2190
        %v2199 = vcombine.high %v2174, %v2190
        %v2200 = vcombine.low %v2181, %v2197
        %v2201 = vcombine.high %v2181, %v2197
        %v2202 = vpack.c.bf16 %v1906, %v1906
        %v2203 = vpack.c.bf16 %v1907, %v1907
        %v2204 = vpack.c.bf16 %v1908, %v1908
        %v2205 = vpack.c.bf16 %v1909, %v1909
        %v2206 = vpack.c.bf16 %v2052, %v2052
        %v2207 = vpack.c.bf16 %v2053, %v2053
        %v2208 = vpack.c.bf16 %v2054, %v2054
        %v2209 = vpack.c.bf16 %v2055, %v2055
        %v2211 = vsel %vm1188, %v2202, 0
        %v2214 = vsel %vm1188, %v2206, 0
        %2216 = vmatprep.subr.bf16.mxu0 0
        %2217 = vmatpush1.bf16.xpose.msra.mxu0 0
        %2218 = vmatprep.subr.bf16.mxu0 0
        %2219 = vmatpush1.bf16.xpose.msra.mxu0 0
        %2220 = vmatprep.subr.bf16.mxu0 0
        %2221 = vmatpush1.bf16.xpose.msra.mxu0 0
        %2222 = vmatprep.subr.bf16.mxu0 0
        %2223 = vmatpush1.bf16.xpose.msra.mxu0 0
        %2224 = vmatprep.subr.bf16.mxu0 0
        %2225 = vmatpush1.bf16.xpose.msra.mxu0 0
        %2226 = vmatprep.subr.bf16.mxu0 0
        %2227 = vmatpush1.bf16.xpose.msra.mxu0 0
        %2228 = vmatprep.subr.bf16.mxu0 0
        %2229 = vmatpush1.bf16.xpose.msra.mxu0 0
        %2230 = vmatprep.subr.bf16.mxu0 0
        %2231 = vmatpush1.bf16.xpose.msra.mxu0 %v2214
        %2232 = vmatprep.subr.bf16.mxu0 0
        %2233 = vmatpush2.bf16.xpose.msra.mxu0 0
        %2234 = vmatprep.subr.bf16.mxu0 0
        %2235 = vmatpush2.bf16.xpose.msra.mxu0 0
        %2236 = vmatprep.subr.bf16.mxu0 0
        %2237 = vmatpush2.bf16.xpose.msra.mxu0 0
        %2238 = vmatprep.subr.bf16.mxu0 0
        %2239 = vmatpush2.bf16.xpose.msra.mxu0 0
        %2240 = vmatprep.subr.bf16.mxu0 0
        %2241 = vmatpush2.bf16.xpose.msra.mxu0 0
        %2242 = vmatprep.subr.bf16.mxu0 0
        %2243 = vmatpush2.bf16.xpose.msra.mxu0 0
        %2244 = vmatprep.subr.bf16.mxu0 0
        %2245 = vmatpush2.bf16.xpose.msra.mxu0 0
        %2246 = vmatprep.subr.bf16.mxu0 0
        %2247 = vmatpush2.bf16.xpose.msra.mxu0 0
        %2248 = vmatprep.mubr.bf16.mxu0 0
        %2249 = vmatmul.mubr.bf16.gmra.mxu0 %v2211
        %v2250 = vpop.f32.mrf.mxu0
        %v2251 = vadd.f32 0.0, %v2250
        %v2252 = vpop.f32.mrf.mxu0
        %v2253 = vpop.f32.mrf.mxu0
        %v2254 = vpop.f32.mrf.mxu0
        %2255 = vdwg.mxu0
        %v2257 = vsel %vm1188, %v2203, 0
        %v2260 = vsel %vm1188, %v2207, 0
        %2262 = vmatprep.subr.bf16.mxu0 0
        %2263 = vmatpush1.bf16.xpose.msra.mxu0 0
        %2264 = vmatprep.subr.bf16.mxu0 0
        %2265 = vmatpush1.bf16.xpose.msra.mxu0 0
        %2266 = vmatprep.subr.bf16.mxu0 0
        %2267 = vmatpush1.bf16.xpose.msra.mxu0 0
        %2268 = vmatprep.subr.bf16.mxu0 0
        %2269 = vmatpush1.bf16.xpose.msra.mxu0 0
        %2270 = vmatprep.subr.bf16.mxu0 0
        %2271 = vmatpush1.bf16.xpose.msra.mxu0 0
        %2272 = vmatprep.subr.bf16.mxu0 0
        %2273 = vmatpush1.bf16.xpose.msra.mxu0 0
        %2274 = vmatprep.subr.bf16.mxu0 0
        %2275 = vmatpush1.bf16.xpose.msra.mxu0 0
        %2276 = vmatprep.subr.bf16.mxu0 0
        %2277 = vmatpush1.bf16.xpose.msra.mxu0 %v2260
        %2278 = vmatprep.subr.bf16.mxu0 0
        %2279 = vmatpush2.bf16.xpose.msra.mxu0 0
        %2280 = vmatprep.subr.bf16.mxu0 0
        %2281 = vmatpush2.bf16.xpose.msra.mxu0 0
        %2282 = vmatprep.subr.bf16.mxu0 0
        %2283 = vmatpush2.bf16.xpose.msra.mxu0 0
        %2284 = vmatprep.subr.bf16.mxu0 0
        %2285 = vmatpush2.bf16.xpose.msra.mxu0 0
        %2286 = vmatprep.subr.bf16.mxu0 0
        %2287 = vmatpush2.bf16.xpose.msra.mxu0 0
        %2288 = vmatprep.subr.bf16.mxu0 0
        %2289 = vmatpush2.bf16.xpose.msra.mxu0 0
        %2290 = vmatprep.subr.bf16.mxu0 0
        %2291 = vmatpush2.bf16.xpose.msra.mxu0 0
        %2292 = vmatprep.subr.bf16.mxu0 0
        %2293 = vmatpush2.bf16.xpose.msra.mxu0 0
        %2294 = vmatprep.mubr.bf16.mxu0 0
        %2295 = vmatmul.mubr.bf16.gmra.mxu0 %v2257
        %v2296 = vpop.f32.mrf.mxu0
        %v2297 = vadd.f32 0.0, %v2296
        %v2298 = vpop.f32.mrf.mxu0
        %v2299 = vpop.f32.mrf.mxu0
        %v2300 = vpop.f32.mrf.mxu0
        %2301 = vdwg.mxu0
        %v2303 = vsel %vm1188, %v2204, 0
        %v2306 = vsel %vm1188, %v2208, 0
        %2308 = vmatprep.subr.bf16.mxu0 0
        %2309 = vmatpush1.bf16.xpose.msra.mxu0 0
        %2310 = vmatprep.subr.bf16.mxu0 0
        %2311 = vmatpush1.bf16.xpose.msra.mxu0 0
        %2312 = vmatprep.subr.bf16.mxu0 0
        %2313 = vmatpush1.bf16.xpose.msra.mxu0 0
        %2314 = vmatprep.subr.bf16.mxu0 0
        %2315 = vmatpush1.bf16.xpose.msra.mxu0 0
        %2316 = vmatprep.subr.bf16.mxu0 0
        %2317 = vmatpush1.bf16.xpose.msra.mxu0 0
        %2318 = vmatprep.subr.bf16.mxu0 0
        %2319 = vmatpush1.bf16.xpose.msra.mxu0 0
        %2320 = vmatprep.subr.bf16.mxu0 0
        %2321 = vmatpush1.bf16.xpose.msra.mxu0 0
        %2322 = vmatprep.subr.bf16.mxu0 0
        %2323 = vmatpush1.bf16.xpose.msra.mxu0 %v2306
        %2324 = vmatprep.subr.bf16.mxu0 0
        %2325 = vmatpush2.bf16.xpose.msra.mxu0 0
        %2326 = vmatprep.subr.bf16.mxu0 0
        %2327 = vmatpush2.bf16.xpose.msra.mxu0 0
        %2328 = vmatprep.subr.bf16.mxu0 0
        %2329 = vmatpush2.bf16.xpose.msra.mxu0 0
        %2330 = vmatprep.subr.bf16.mxu0 0
        %2331 = vmatpush2.bf16.xpose.msra.mxu0 0
        %2332 = vmatprep.subr.bf16.mxu0 0
        %2333 = vmatpush2.bf16.xpose.msra.mxu0 0
        %2334 = vmatprep.subr.bf16.mxu0 0
        %2335 = vmatpush2.bf16.xpose.msra.mxu0 0
        %2336 = vmatprep.subr.bf16.mxu0 0
        %2337 = vmatpush2.bf16.xpose.msra.mxu0 0
        %2338 = vmatprep.subr.bf16.mxu0 0
        %2339 = vmatpush2.bf16.xpose.msra.mxu0 0
        %2340 = vmatprep.mubr.bf16.mxu0 0
        %2341 = vmatmul.mubr.bf16.gmra.mxu0 %v2303
        %v2342 = vpop.f32.mrf.mxu0
        %v2343 = vadd.f32 0.0, %v2342
        %v2344 = vpop.f32.mrf.mxu0
        %v2345 = vpop.f32.mrf.mxu0
        %v2346 = vpop.f32.mrf.mxu0
        %2347 = vdwg.mxu0
        %v2349 = vsel %vm1188, %v2205, 0
        %v2352 = vsel %vm1188, %v2209, 0
        %2354 = vmatprep.subr.bf16.mxu0 0
        %2355 = vmatpush1.bf16.xpose.msra.mxu0 0
        %2356 = vmatprep.subr.bf16.mxu0 0
        %2357 = vmatpush1.bf16.xpose.msra.mxu0 0
        %2358 = vmatprep.subr.bf16.mxu0 0
        %2359 = vmatpush1.bf16.xpose.msra.mxu0 0
        %2360 = vmatprep.subr.bf16.mxu0 0
        %2361 = vmatpush1.bf16.xpose.msra.mxu0 0
        %2362 = vmatprep.subr.bf16.mxu0 0
        %2363 = vmatpush1.bf16.xpose.msra.mxu0 0
        %2364 = vmatprep.subr.bf16.mxu0 0
        %2365 = vmatpush1.bf16.xpose.msra.mxu0 0
        %2366 = vmatprep.subr.bf16.mxu0 0
        %2367 = vmatpush1.bf16.xpose.msra.mxu0 0
        %2368 = vmatprep.subr.bf16.mxu0 0
        %2369 = vmatpush1.bf16.xpose.msra.mxu0 %v2352
        %2370 = vmatprep.subr.bf16.mxu0 0
        %2371 = vmatpush2.bf16.xpose.msra.mxu0 0
        %2372 = vmatprep.subr.bf16.mxu0 0
        %2373 = vmatpush2.bf16.xpose.msra.mxu0 0
        %2374 = vmatprep.subr.bf16.mxu0 0
        %2375 = vmatpush2.bf16.xpose.msra.mxu0 0
        %2376 = vmatprep.subr.bf16.mxu0 0
        %2377 = vmatpush2.bf16.xpose.msra.mxu0 0
        %2378 = vmatprep.subr.bf16.mxu0 0
        %2379 = vmatpush2.bf16.xpose.msra.mxu0 0
        %2380 = vmatprep.subr.bf16.mxu0 0
        %2381 = vmatpush2.bf16.xpose.msra.mxu0 0
        %2382 = vmatprep.subr.bf16.mxu0 0
        %2383 = vmatpush2.bf16.xpose.msra.mxu0 0
        %2384 = vmatprep.subr.bf16.mxu0 0
        %2385 = vmatpush2.bf16.xpose.msra.mxu0 0
        %2386 = vmatprep.mubr.bf16.mxu0 0
        %2387 = vmatmul.mubr.bf16.gmra.mxu0 %v2349
        %v2388 = vpop.f32.mrf.mxu0
        %v2389 = vadd.f32 0.0, %v2388
        %v2390 = vpop.f32.mrf.mxu0
        %v2391 = vpop.f32.mrf.mxu0
        %v2392 = vpop.f32.mrf.mxu0
        %2393 = vdwg.mxu0
        %v2394 = vsel %vm1373, %v2251, -inf
        %2395 = vmax.xlane.f32.xlu0 %v2394
        %v2396 = vpop.xlane.xlu0 %2395
        %v2397 = vsel %vm1373, %v2297, -inf
        %2398 = vmax.xlane.f32.xlu0 %v2397
        %v2399 = vpop.xlane.xlu0 %2398
        %v2400 = vsel %vm1373, %v2343, -inf
        %2401 = vmax.xlane.f32.xlu0 %v2400
        %v2402 = vpop.xlane.xlu0 %2401
        %v2403 = vsel %vm1373, %v2389, -inf
        %2404 = vmax.xlane.f32.xlu0 %v2403
        %v2405 = vpop.xlane.xlu0 %2404
        %v2406 = vsub.f32 %v2251, %v2396
        %v2407 = vsub.f32 %v2297, %v2399
        %v2408 = vsub.f32 %v2343, %v2402
        %v2409 = vsub.f32 %v2389, %v2405
        %v2410 = vmul.f32 %v2406, 1.442695
        %v2411 = vpow.pop %v2410
        %v2412 = vmul.f32 %v2407, 1.442695
        %v2413 = vpow.pop %v2412
        %v2414 = vmul.f32 %v2408, 1.442695
        %v2415 = vpow.pop %v2414
        %v2416 = vmul.f32 %v2409, 1.442695
        %v2417 = vpow.pop %v2416
        %v2418 = vsel %vm1373, %v2411, 0.0
        %2419 = vadd.xlane.f32.xlu0 %v2418
        %v2420 = vpop.xlane.xlu0 %2419
        %v2421 = vsel %vm1373, %v2413, 0.0
        %2422 = vadd.xlane.f32.xlu0 %v2421
        %v2423 = vpop.xlane.xlu0 %2422
        %v2424 = vsel %vm1373, %v2415, 0.0
        %2425 = vadd.xlane.f32.xlu0 %v2424
        %v2426 = vpop.xlane.xlu0 %2425
        %v2427 = vsel %vm1373, %v2417, 0.0
        %2428 = vadd.xlane.f32.xlu0 %v2427
        %v2429 = vpop.xlane.xlu0 %2428
        %v2430 = vrcp.pop %v2420
        %v2431 = vrcp.pop %v2423
        %v2432 = vrcp.pop %v2426
        %v2433 = vrcp.pop %v2429
        %v2434 = vmul.f32 %v2411, %v2430
        %v2435 = vmul.f32 %v2413, %v2431
        %v2436 = vmul.f32 %v2415, %v2432
        %v2437 = vmul.f32 %v2417, %v2433
        %v2438 = vpack.c.bf16 %v2434, %v2434
        %v2439 = vpack.c.bf16 %v2435, %v2435
        %v2440 = vpack.c.bf16 %v2436, %v2436
        %v2441 = vpack.c.bf16 %v2437, %v2437
        %v2442 = vpack.c.bf16 %v2198, %v2198
        %v2443 = vpack.c.bf16 %v2199, %v2199
        %v2444 = vpack.c.bf16 %v2200, %v2200
        %v2445 = vpack.c.bf16 %v2201, %v2201
        %v2447 = vsel %vm1373, %v2438, 0
        %v2450 = vsel %vm1429, %v2442, 0
        %2452 = vmatprep.subr.bf16.mxu0 0
        %2453 = vmatpush1.bf16.msra.mxu0 0
        %2454 = vmatprep.subr.bf16.mxu0 0
        %2455 = vmatpush1.bf16.msra.mxu0 0
        %2456 = vmatprep.subr.bf16.mxu0 0
        %2457 = vmatpush1.bf16.msra.mxu0 0
        %2458 = vmatprep.subr.bf16.mxu0 0
        %2459 = vmatpush1.bf16.msra.mxu0 0
        %2460 = vmatprep.subr.bf16.mxu0 0
        %2461 = vmatpush1.bf16.msra.mxu0 0
        %2462 = vmatprep.subr.bf16.mxu0 0
        %2463 = vmatpush1.bf16.msra.mxu0 0
        %2464 = vmatprep.subr.bf16.mxu0 0
        %2465 = vmatpush1.bf16.msra.mxu0 0
        %2466 = vmatprep.subr.bf16.mxu0 0
        %2467 = vmatpush1.bf16.msra.mxu0 %v2450
        %2468 = vmatprep.subr.bf16.mxu0 0
        %2469 = vmatpush2.bf16.msra.mxu0 0
        %2470 = vmatprep.subr.bf16.mxu0 0
        %2471 = vmatpush2.bf16.msra.mxu0 0
        %2472 = vmatprep.subr.bf16.mxu0 0
        %2473 = vmatpush2.bf16.msra.mxu0 0
        %2474 = vmatprep.subr.bf16.mxu0 0
        %2475 = vmatpush2.bf16.msra.mxu0 0
        %2476 = vmatprep.subr.bf16.mxu0 0
        %2477 = vmatpush2.bf16.msra.mxu0 0
        %2478 = vmatprep.subr.bf16.mxu0 0
        %2479 = vmatpush2.bf16.msra.mxu0 0
        %2480 = vmatprep.subr.bf16.mxu0 0
        %2481 = vmatpush2.bf16.msra.mxu0 0
        %2482 = vmatprep.subr.bf16.mxu0 0
        %2483 = vmatpush2.bf16.msra.mxu0 0
        %2484 = vmatprep.mubr.bf16.mxu0 0
        %2485 = vmatmul.mubr.bf16.gmra.mxu0 %v2447
        %v2486 = vpop.f32.mrf.mxu0
        %v2487 = vadd.f32 0.0, %v2486
        %v2488 = vpop.f32.mrf.mxu0
        %v2489 = vpop.f32.mrf.mxu0
        %v2490 = vpop.f32.mrf.mxu0
        %2491 = vdwg.mxu0
        %v2493 = vsel %vm1373, %v2439, 0
        %v2496 = vsel %vm1429, %v2443, 0
        %2498 = vmatprep.subr.bf16.mxu0 0
        %2499 = vmatpush1.bf16.msra.mxu0 0
        %2500 = vmatprep.subr.bf16.mxu0 0
        %2501 = vmatpush1.bf16.msra.mxu0 0
        %2502 = vmatprep.subr.bf16.mxu0 0
        %2503 = vmatpush1.bf16.msra.mxu0 0
        %2504 = vmatprep.subr.bf16.mxu0 0
        %2505 = vmatpush1.bf16.msra.mxu0 0
        %2506 = vmatprep.subr.bf16.mxu0 0
        %2507 = vmatpush1.bf16.msra.mxu0 0
        %2508 = vmatprep.subr.bf16.mxu0 0
        %2509 = vmatpush1.bf16.msra.mxu0 0
        %2510 = vmatprep.subr.bf16.mxu0 0
        %2511 = vmatpush1.bf16.msra.mxu0 0
        %2512 = vmatprep.subr.bf16.mxu0 0
        %2513 = vmatpush1.bf16.msra.mxu0 %v2496
        %2514 = vmatprep.subr.bf16.mxu0 0
        %2515 = vmatpush2.bf16.msra.mxu0 0
        %2516 = vmatprep.subr.bf16.mxu0 0
        %2517 = vmatpush2.bf16.msra.mxu0 0
        %2518 = vmatprep.subr.bf16.mxu0 0
        %2519 = vmatpush2.bf16.msra.mxu0 0
        %2520 = vmatprep.subr.bf16.mxu0 0
        %2521 = vmatpush2.bf16.msra.mxu0 0
        %2522 = vmatprep.subr.bf16.mxu0 0
        %2523 = vmatpush2.bf16.msra.mxu0 0
        %2524 = vmatprep.subr.bf16.mxu0 0
        %2525 = vmatpush2.bf16.msra.mxu0 0
        %2526 = vmatprep.subr.bf16.mxu0 0
        %2527 = vmatpush2.bf16.msra.mxu0 0
        %2528 = vmatprep.subr.bf16.mxu0 0
        %2529 = vmatpush2.bf16.msra.mxu0 0
        %2530 = vmatprep.mubr.bf16.mxu0 0
        %2531 = vmatmul.mubr.bf16.gmra.mxu0 %v2493
        %v2532 = vpop.f32.mrf.mxu0
        %v2533 = vadd.f32 0.0, %v2532
        %v2534 = vpop.f32.mrf.mxu0
        %v2535 = vpop.f32.mrf.mxu0
        %v2536 = vpop.f32.mrf.mxu0
        %2537 = vdwg.mxu0
        %v2539 = vsel %vm1373, %v2440, 0
        %v2542 = vsel %vm1429, %v2444, 0
        %2544 = vmatprep.subr.bf16.mxu0 0
        %2545 = vmatpush1.bf16.msra.mxu0 0
        %2546 = vmatprep.subr.bf16.mxu0 0
        %2547 = vmatpush1.bf16.msra.mxu0 0
        %2548 = vmatprep.subr.bf16.mxu0 0
        %2549 = vmatpush1.bf16.msra.mxu0 0
        %2550 = vmatprep.subr.bf16.mxu0 0
        %2551 = vmatpush1.bf16.msra.mxu0 0
        %2552 = vmatprep.subr.bf16.mxu0 0
        %2553 = vmatpush1.bf16.msra.mxu0 0
        %2554 = vmatprep.subr.bf16.mxu0 0
        %2555 = vmatpush1.bf16.msra.mxu0 0
        %2556 = vmatprep.subr.bf16.mxu0 0
        %2557 = vmatpush1.bf16.msra.mxu0 0
        %2558 = vmatprep.subr.bf16.mxu0 0
        %2559 = vmatpush1.bf16.msra.mxu0 %v2542
        %2560 = vmatprep.subr.bf16.mxu0 0
        %2561 = vmatpush2.bf16.msra.mxu0 0
        %2562 = vmatprep.subr.bf16.mxu0 0
        %2563 = vmatpush2.bf16.msra.mxu0 0
        %2564 = vmatprep.subr.bf16.mxu0 0
        %2565 = vmatpush2.bf16.msra.mxu0 0
        %2566 = vmatprep.subr.bf16.mxu0 0
        %2567 = vmatpush2.bf16.msra.mxu0 0
        %2568 = vmatprep.subr.bf16.mxu0 0
        %2569 = vmatpush2.bf16.msra.mxu0 0
        %2570 = vmatprep.subr.bf16.mxu0 0
        %2571 = vmatpush2.bf16.msra.mxu0 0
        %2572 = vmatprep.subr.bf16.mxu0 0
        %2573 = vmatpush2.bf16.msra.mxu0 0
        %2574 = vmatprep.subr.bf16.mxu0 0
        %2575 = vmatpush2.bf16.msra.mxu0 0
        %2576 = vmatprep.mubr.bf16.mxu0 0
        %2577 = vmatmul.mubr.bf16.gmra.mxu0 %v2539
        %v2578 = vpop.f32.mrf.mxu0
        %v2579 = vadd.f32 0.0, %v2578
        %v2580 = vpop.f32.mrf.mxu0
        %v2581 = vpop.f32.mrf.mxu0
        %v2582 = vpop.f32.mrf.mxu0
        %2583 = vdwg.mxu0
        %v2585 = vsel %vm1373, %v2441, 0
        %v2588 = vsel %vm1429, %v2445, 0
        %2590 = vmatprep.subr.bf16.mxu0 0
        %2591 = vmatpush1.bf16.msra.mxu0 0
        %2592 = vmatprep.subr.bf16.mxu0 0
        %2593 = vmatpush1.bf16.msra.mxu0 0
        %2594 = vmatprep.subr.bf16.mxu0 0
        %2595 = vmatpush1.bf16.msra.mxu0 0
        %2596 = vmatprep.subr.bf16.mxu0 0
        %2597 = vmatpush1.bf16.msra.mxu0 0
        %2598 = vmatprep.subr.bf16.mxu0 0
        %2599 = vmatpush1.bf16.msra.mxu0 0
        %2600 = vmatprep.subr.bf16.mxu0 0
        %2601 = vmatpush1.bf16.msra.mxu0 0
        %2602 = vmatprep.subr.bf16.mxu0 0
        %2603 = vmatpush1.bf16.msra.mxu0 0
        %2604 = vmatprep.subr.bf16.mxu0 0
        %2605 = vmatpush1.bf16.msra.mxu0 %v2588
        %2606 = vmatprep.subr.bf16.mxu0 0
        %2607 = vmatpush2.bf16.msra.mxu0 0
        %2608 = vmatprep.subr.bf16.mxu0 0
        %2609 = vmatpush2.bf16.msra.mxu0 0
        %2610 = vmatprep.subr.bf16.mxu0 0
        %2611 = vmatpush2.bf16.msra.mxu0 0
        %2612 = vmatprep.subr.bf16.mxu0 0
        %2613 = vmatpush2.bf16.msra.mxu0 0
        %2614 = vmatprep.subr.bf16.mxu0 0
        %2615 = vmatpush2.bf16.msra.mxu0 0
        %2616 = vmatprep.subr.bf16.mxu0 0
        %2617 = vmatpush2.bf16.msra.mxu0 0
        %2618 = vmatprep.subr.bf16.mxu0 0
        %2619 = vmatpush2.bf16.msra.mxu0 0
        %2620 = vmatprep.subr.bf16.mxu0 0
        %2621 = vmatpush2.bf16.msra.mxu0 0
        %2622 = vmatprep.mubr.bf16.mxu0 0
        %2623 = vmatmul.mubr.bf16.gmra.mxu0 %v2585
        %v2624 = vpop.f32.mrf.mxu0
        %v2625 = vadd.f32 0.0, %v2624
        %v2626 = vpop.f32.mrf.mxu0
        %v2627 = vpop.f32.mrf.mxu0
        %v2628 = vpop.f32.mrf.mxu0
        %2629 = vdwg.mxu0
        %v2630 = vcombine.low %v2487, %v2579
        %v2631 = vcombine.high %v2487, %v2579
        %v2633 = vunpack.c.l.s4 1983009808
        %v2634 = vunpack.c.0.s8 %v2633
        %v2635 = vlaneseq
        %v2636 = vshrl.u32 %v2635, 7
        %v2637 = vsub.s32 %v2634, %v2636
        %v2638 = vrot.slane %v2630, %v2637
        %v2640 = vunpack.c.l.s4 1983009808
        %v2641 = vunpack.c.0.s8 %v2640
        %v2642 = vlaneseq
        %v2643 = vshrl.u32 %v2642, 7
        %v2644 = vsub.s32 %v2641, %v2643
        %v2645 = vrot.slane %v2631, %v2644
        %v2646 = vcombine.low %v2533, %v2625
        %v2647 = vcombine.high %v2533, %v2625
        %v2649 = vunpack.c.l.s4 1983009808
        %v2650 = vunpack.c.0.s8 %v2649
        %v2651 = vlaneseq
        %v2652 = vshrl.u32 %v2651, 7
        %v2653 = vsub.s32 %v2650, %v2652
        %v2654 = vrot.slane %v2646, %v2653
        %v2656 = vunpack.c.l.s4 1983009808
        %v2657 = vunpack.c.0.s8 %v2656
        %v2658 = vlaneseq
        %v2659 = vshrl.u32 %v2658, 7
        %v2660 = vsub.s32 %v2657, %v2659
        %v2661 = vrot.slane %v2647, %v2660
        %v2662 = vcombine.low %v2638, %v2654
        %v2663 = vcombine.high %v2638, %v2654
        %v2665 = vunpack.c.l.s4 1934713408
        %v2666 = vunpack.c.0.s8 %v2665
        %v2667 = vlaneseq
        %v2668 = vshrl.u32 %v2667, 7
        %v2669 = vsub.s32 %v2666, %v2668
        %v2670 = vrot.slane %v2662, %v2669
        %v2672 = vunpack.c.l.s4 1934713408
        %v2673 = vunpack.c.0.s8 %v2672
        %v2674 = vlaneseq
        %v2675 = vshrl.u32 %v2674, 7
        %v2676 = vsub.s32 %v2673, %v2675
        %v2677 = vrot.slane %v2663, %v2676
        %v2678 = vcombine.low %v2645, %v2661
        %v2679 = vcombine.high %v2645, %v2661
        %v2681 = vunpack.c.l.s4 1934713408
        %v2682 = vunpack.c.0.s8 %v2681
        %v2683 = vlaneseq
        %v2684 = vshrl.u32 %v2683, 7
        %v2685 = vsub.s32 %v2682, %v2684
        %v2686 = vrot.slane %v2678, %v2685
        %v2688 = vunpack.c.l.s4 1934713408
        %v2689 = vunpack.c.0.s8 %v2688
        %v2690 = vlaneseq
        %v2691 = vshrl.u32 %v2690, 7
        %v2692 = vsub.s32 %v2689, %v2691
        %v2693 = vrot.slane %v2679, %v2692
        %v2694 = vcombine.high %v2670, 0.0
        %v2695 = vcombine.high %v2677, 0.0
        %v2696 = vcombine.high %v2686, 0.0
        %v2697 = vcombine.high %v2693, 0.0
        %v2698 = vcombine.low %v2670, %v2677
        %v2700 = vunpack.c.l.s4 1983009808
        %v2701 = vunpack.c.0.s8 %v2700
        %v2702 = vlaneseq
        %v2703 = vshrl.u32 %v2702, 7
        %v2704 = vsub.s32 %v2701, %v2703
        %v2705 = vrot.slane %v2698, %v2704
        %v2706 = vcombine.low %v2694, %v2695
        %v2708 = vunpack.c.l.s4 1983009808
        %v2709 = vunpack.c.0.s8 %v2708
        %v2710 = vlaneseq
        %v2711 = vshrl.u32 %v2710, 7
        %v2712 = vsub.s32 %v2709, %v2711
        %v2713 = vrot.slane %v2706, %v2712
        %v2714 = vcombine.low %v2686, %v2693
        %v2716 = vunpack.c.l.s4 1983009808
        %v2717 = vunpack.c.0.s8 %v2716
        %v2718 = vlaneseq
        %v2719 = vshrl.u32 %v2718, 7
        %v2720 = vsub.s32 %v2717, %v2719
        %v2721 = vrot.slane %v2714, %v2720
        %v2722 = vcombine.low %v2696, %v2697
        %v2724 = vunpack.c.l.s4 1983009808
        %v2725 = vunpack.c.0.s8 %v2724
        %v2726 = vlaneseq
        %v2727 = vshrl.u32 %v2726, 7
        %v2728 = vsub.s32 %v2725, %v2727
        %v2729 = vrot.slane %v2722, %v2728
        %v2730 = vcombine.low %v2705, %v2713
        %v2731 = vcombine.high %v2705, %v2713
        %v2733 = vunpack.c.l.s4 1934713408
        %v2734 = vunpack.c.0.s8 %v2733
        %v2735 = vlaneseq
        %v2736 = vshrl.u32 %v2735, 7
        %v2737 = vsub.s32 %v2734, %v2736
        %v2738 = vrot.slane %v2730, %v2737
        %v2740 = vunpack.c.l.s4 1934713408
        %v2741 = vunpack.c.0.s8 %v2740
        %v2742 = vlaneseq
        %v2743 = vshrl.u32 %v2742, 7
        %v2744 = vsub.s32 %v2741, %v2743
        %v2745 = vrot.slane %v2731, %v2744
        %v2746 = vcombine.low %v2721, %v2729
        %v2747 = vcombine.high %v2721, %v2729
        %v2749 = vunpack.c.l.s4 1934713408
        %v2750 = vunpack.c.0.s8 %v2749
        %v2751 = vlaneseq
        %v2752 = vshrl.u32 %v2751, 7
        %v2753 = vsub.s32 %v2750, %v2752
        %v2754 = vrot.slane %v2746, %v2753
        %v2756 = vunpack.c.l.s4 1934713408
        %v2757 = vunpack.c.0.s8 %v2756
        %v2758 = vlaneseq
        %v2759 = vshrl.u32 %v2758, 7
        %v2760 = vsub.s32 %v2757, %v2759
        %v2761 = vrot.slane %v2747, %v2760
        %v2762 = vcombine.low %v2738, %v2754
        %v2763 = vcombine.high %v2738, %v2754
        %v2764 = vcombine.low %v2745, %v2761
        %v2765 = vcombine.high %v2745, %v2761
        %2767 = vrot.lane.b32.xlu0 %v2763, 32
        %v2768 = vpop.permute.xlu0 %2767
        %2771 = vrot.lane.b32.xlu0 %v2764, 64
        %v2772 = vpop.permute.xlu0 %2771
        %2775 = vrot.lane.b32.xlu0 %v2765, 96
        %v2776 = vpop.permute.xlu0 %2775
        %v2778 = vsel %vm1188, %v2762, %v2768
        %v2779 = vsel %vm1760, %v2778, %v2772
        %v2780 = vsel %vm1762, %v2779, %v2776
        %v2781 = vpack.c.bf16 %v2780, %v1763
        %v2782 = vld [vmem:[%s449] sm:$0xf]
        %v2783 = vld [vmem:[%s449 + $0x4] sm:$0xf]
        %v2784 = vld [vmem:[%s449 + $0x8] sm:$0xf]
        %v2785 = vld [vmem:[%s449 + $0xc] sm:$0xf]
        %v2786 = vld [vmem:[%s449 + $0x10] sm:$0xf]
        %v2787 = vld [vmem:[%s449 + $0x14] sm:$0xf]
        %v2788 = vld [vmem:[%s449 + $0x18] sm:$0xf]
        %v2789 = vld [vmem:[%s449 + $0x1c] sm:$0xf]
        %v2790 = vld [vmem:[%s449 + $0x20] sm:$0xf]
        %v2791 = vld [vmem:[%s449 + $0x24] sm:$0xf]
        %v2792 = vld [vmem:[%s449 + $0x28] sm:$0xf]
        %v2793 = vld [vmem:[%s449 + $0x2c] sm:$0xf]
        %v2794 = vld [vmem:[%s449 + $0x30] sm:$0xf]
        %v2795 = vld [vmem:[%s449 + $0x34] sm:$0xf]
        %v2796 = vld [vmem:[%s449 + $0x38] sm:$0xf]
        %v2797 = vld [vmem:[%s449 + $0x3c] sm:$0xf]
        %v2798 = vlaneseq
        %v2799 = vshrl.u32 %v2798, 7
        %v2800 = vsub.s32 3, %v2799
        %v2801 = vrot.slane %v477, %v2800
        %v2818 = vunpack.c.l.b16 %v2782
        %v2819 = vunpack.c.l.b16 %v2783
        %v2820 = vunpack.c.l.b16 %v2784
        %v2821 = vunpack.c.l.b16 %v2785
        %v2822 = vunpack.c.l.b16 %v2786
        %v2823 = vunpack.c.l.b16 %v2787
        %v2824 = vunpack.c.l.b16 %v2788
        %v2825 = vunpack.c.l.b16 %v2789
        %v2826 = vunpack.c.l.b16 %v2790
        %v2827 = vunpack.c.l.b16 %v2791
        %v2828 = vunpack.c.l.b16 %v2792
        %v2829 = vunpack.c.l.b16 %v2793
        %v2830 = vunpack.c.l.b16 %v2794
        %v2831 = vunpack.c.l.b16 %v2795
        %v2832 = vunpack.c.l.b16 %v2796
        %v2833 = vunpack.c.l.b16 %v2797
        %v2834 = vpack.c.b16 %v2819, %v2818
        %v2835 = vpack.c.b16 %v2821, %v2820
        %v2836 = vpack.c.b16 %v2823, %v2822
        %v2837 = vpack.c.b16 %v2825, %v2824
        %v2838 = vpack.c.b16 %v2827, %v2826
        %v2839 = vpack.c.b16 %v2829, %v2828
        %v2840 = vpack.c.b16 %v2831, %v2830
        %v2841 = vpack.c.b16 %v2833, %v2832
        %2850 = vmatprep.subr.bf16.mxu0 0
        %2851 = vmatpush1.bf16.msra.mxu0 %v2841
        %2852 = vmatprep.subr.bf16.mxu0 0
        %2853 = vmatpush1.bf16.msra.mxu0 %v2840
        %2854 = vmatprep.subr.bf16.mxu0 0
        %2855 = vmatpush1.bf16.msra.mxu0 %v2839
        %2856 = vmatprep.subr.bf16.mxu0 0
        %2857 = vmatpush1.bf16.msra.mxu0 %v2838
        %2858 = vmatprep.subr.bf16.mxu0 0
        %2859 = vmatpush1.bf16.msra.mxu0 %v2837
        %2860 = vmatprep.subr.bf16.mxu0 0
        %2861 = vmatpush1.bf16.msra.mxu0 %v2836
        %2862 = vmatprep.subr.bf16.mxu0 0
        %2863 = vmatpush1.bf16.msra.mxu0 %v2835
        %2864 = vmatprep.subr.bf16.mxu0 0
        %2865 = vmatpush1.bf16.msra.mxu0 %v2834
        %2866 = vmatprep.subr.bf16.mxu0 0
        %2867 = vmatpush2.bf16.msra.mxu0 0
        %2868 = vmatprep.subr.bf16.mxu0 0
        %2869 = vmatpush2.bf16.msra.mxu0 0
        %2870 = vmatprep.subr.bf16.mxu0 0
        %2871 = vmatpush2.bf16.msra.mxu0 0
        %2872 = vmatprep.subr.bf16.mxu0 0
        %2873 = vmatpush2.bf16.msra.mxu0 0
        %2874 = vmatprep.subr.bf16.mxu0 0
        %2875 = vmatpush2.bf16.msra.mxu0 0
        %2876 = vmatprep.subr.bf16.mxu0 0
        %2877 = vmatpush2.bf16.msra.mxu0 0
        %2878 = vmatprep.subr.bf16.mxu0 0
        %2879 = vmatpush2.bf16.msra.mxu0 0
        %2880 = vmatprep.subr.bf16.mxu0 0
        %2881 = vmatpush2.bf16.msra.mxu0 0
        %2882 = vmatprep.mubr.bf16.mxu0 0
        %2883 = vmatmul.mubr.bf16.gmra.mxu0 %v2781
        %v2884 = vpop.f32.mrf.mxu0
        %v2885 = vadd.f32 %v2801, %v2884
        %v2886 = vpop.f32.mrf.mxu0
        %v2887 = vpop.f32.mrf.mxu0
        %v2888 = vadd.f32 %v2801, %v2887
        %v2889 = vpop.f32.mrf.mxu0
        %2890 = vdwg.mxu0
        %v2891 = vadd.f32 %v475, %v2885
        %v2892 = vadd.f32 %v476, %v2888
        %2893 = vadd.xlane.f32.xlu0 %v2891
        %v2894 = vpop.xlane.xlu0 %2893
        %2895 = vadd.xlane.f32.xlu0 %v2892
        %v2896 = vpop.xlane.xlu0 %2895
        %v2897 = vrcp.pop 128.0
        %v2898 = vmul.f32 %v2894, %v2897
        %v2899 = vmul.f32 %v2896, %v2897
        %v2900 = vsub.f32 %v2891, %v2898
        %v2901 = vsub.f32 %v2892, %v2899
        %v2902 = vmul.f32 %v2900, %v2900
        %v2903 = vmul.f32 %v2901, %v2901
        %2904 = vadd.xlane.f32.xlu0 %v2902
        %v2905 = vpop.xlane.xlu0 %2904
        %2906 = vadd.xlane.f32.xlu0 %v2903
        %v2907 = vpop.xlane.xlu0 %2906
        %v2908 = vmul.f32 %v2905, %v2897
        %v2909 = vmul.f32 %v2907, %v2897
        %v2910 = vadd.f32 %v2908, 1e-05
        %v2911 = vadd.f32 %v2909, 1e-05
        %v2912 = vrsqrt.pop %v2910
        %v2913 = vrsqrt.pop %v2911
        %v2914 = vmul.f32 %v2900, %v2912
        %v2915 = vmul.f32 %v2901, %v2913
        %v2916 = vlaneseq
        %v2917 = vshrl.u32 %v2916, 7
        %v2918 = vsub.s32 4, %v2917
        %v2919 = vrot.slane %v477, %v2918
        %v2920 = vmul.f32 %v2914, %v2919
        %v2921 = vmul.f32 %v2915, %v2919
        %v2922 = vlaneseq
        %v2923 = vshrl.u32 %v2922, 7
        %v2924 = vsub.s32 5, %v2923
        %v2925 = vrot.slane %v477, %v2924
        %v2926 = vadd.f32 %v2920, %v2925
        %v2927 = vadd.f32 %v2921, %v2925
        %v2928 = vpack.c.bf16 %v2927, %v2926
        %v2929 = vld [vmem:[%s454] sm:$0xf]
        %v2930 = vld [vmem:[%s454 + $0x4] sm:$0xf]
        %v2931 = vld [vmem:[%s454 + $0x8] sm:$0xf]
        %v2932 = vld [vmem:[%s454 + $0xc] sm:$0xf]
        %v2933 = vld [vmem:[%s454 + $0x10] sm:$0xf]
        %v2934 = vld [vmem:[%s454 + $0x14] sm:$0xf]
        %v2935 = vld [vmem:[%s454 + $0x18] sm:$0xf]
        %v2936 = vld [vmem:[%s454 + $0x1c] sm:$0xf]
        %v2937 = vld [vmem:[%s454 + $0x20] sm:$0xf]
        %v2938 = vld [vmem:[%s454 + $0x24] sm:$0xf]
        %v2939 = vld [vmem:[%s454 + $0x28] sm:$0xf]
        %v2940 = vld [vmem:[%s454 + $0x2c] sm:$0xf]
        %v2941 = vld [vmem:[%s454 + $0x30] sm:$0xf]
        %v2942 = vld [vmem:[%s454 + $0x34] sm:$0xf]
        %v2943 = vld [vmem:[%s454 + $0x38] sm:$0xf]
        %v2944 = vld [vmem:[%s454 + $0x3c] sm:$0xf]
        %v2945 = vlaneseq
        %v2946 = vshrl.u32 %v2945, 7
        %v2947 = vsub.s32 6, %v2946
        %v2948 = vrot.slane %v477, %v2947
        %v2965 = vunpack.c.l.b16 %v2929
        %v2966 = vunpack.c.l.b16 %v2930
        %v2967 = vunpack.c.l.b16 %v2931
        %v2968 = vunpack.c.l.b16 %v2932
        %v2969 = vunpack.c.l.b16 %v2933
        %v2970 = vunpack.c.l.b16 %v2934
        %v2971 = vunpack.c.l.b16 %v2935
        %v2972 = vunpack.c.l.b16 %v2936
        %v2973 = vunpack.c.l.b16 %v2937
        %v2974 = vunpack.c.l.b16 %v2938
        %v2975 = vunpack.c.l.b16 %v2939
        %v2976 = vunpack.c.l.b16 %v2940
        %v2977 = vunpack.c.l.b16 %v2941
        %v2978 = vunpack.c.l.b16 %v2942
        %v2979 = vunpack.c.l.b16 %v2943
        %v2980 = vunpack.c.l.b16 %v2944
        %v2981 = vpack.c.b16 %v2966, %v2965
        %v2982 = vpack.c.b16 %v2968, %v2967
        %v2983 = vpack.c.b16 %v2970, %v2969
        %v2984 = vpack.c.b16 %v2972, %v2971
        %v2985 = vpack.c.b16 %v2974, %v2973
        %v2986 = vpack.c.b16 %v2976, %v2975
        %v2987 = vpack.c.b16 %v2978, %v2977
        %v2988 = vpack.c.b16 %v2980, %v2979
        %2997 = vmatprep.subr.bf16.mxu0 0
        %2998 = vmatpush1.bf16.msra.mxu0 %v2988
        %2999 = vmatprep.subr.bf16.mxu0 0
        %3000 = vmatpush1.bf16.msra.mxu0 %v2987
        %3001 = vmatprep.subr.bf16.mxu0 0
        %3002 = vmatpush1.bf16.msra.mxu0 %v2986
        %3003 = vmatprep.subr.bf16.mxu0 0
        %3004 = vmatpush1.bf16.msra.mxu0 %v2985
        %3005 = vmatprep.subr.bf16.mxu0 0
        %3006 = vmatpush1.bf16.msra.mxu0 %v2984
        %3007 = vmatprep.subr.bf16.mxu0 0
        %3008 = vmatpush1.bf16.msra.mxu0 %v2983
        %3009 = vmatprep.subr.bf16.mxu0 0
        %3010 = vmatpush1.bf16.msra.mxu0 %v2982
        %3011 = vmatprep.subr.bf16.mxu0 0
        %3012 = vmatpush1.bf16.msra.mxu0 %v2981
        %3013 = vmatprep.subr.bf16.mxu0 0
        %3014 = vmatpush2.bf16.msra.mxu0 0
        %3015 = vmatprep.subr.bf16.mxu0 0
        %3016 = vmatpush2.bf16.msra.mxu0 0
        %3017 = vmatprep.subr.bf16.mxu0 0
        %3018 = vmatpush2.bf16.msra.mxu0 0
        %3019 = vmatprep.subr.bf16.mxu0 0
        %3020 = vmatpush2.bf16.msra.mxu0 0
        %3021 = vmatprep.subr.bf16.mxu0 0
        %3022 = vmatpush2.bf16.msra.mxu0 0
        %3023 = vmatprep.subr.bf16.mxu0 0
        %3024 = vmatpush2.bf16.msra.mxu0 0
        %3025 = vmatprep.subr.bf16.mxu0 0
        %3026 = vmatpush2.bf16.msra.mxu0 0
        %3027 = vmatprep.subr.bf16.mxu0 0
        %3028 = vmatpush2.bf16.msra.mxu0 0
        %3029 = vmatprep.mubr.bf16.mxu0 0
        %3030 = vmatmul.mubr.bf16.gmra.mxu0 %v2928
        %v3031 = vpop.f32.mrf.mxu0
        %v3032 = vadd.f32 %v2948, %v3031
        %v3033 = vpop.f32.mrf.mxu0
        %v3034 = vpop.f32.mrf.mxu0
        %v3035 = vadd.f32 %v2948, %v3034
        %v3036 = vpop.f32.mrf.mxu0
        %3037 = vdwg.mxu0
        %v3038 = vmax.f32 %v3032, 0.0
        %v3039 = vmax.f32 %v3035, 0.0
        %v3040 = vpack.c.bf16 %v3039, %v3038
        %v3041 = vld [vmem:[%s459] sm:$0xf]
        %v3042 = vld [vmem:[%s459 + $0x4] sm:$0xf]
        %v3043 = vld [vmem:[%s459 + $0x8] sm:$0xf]
        %v3044 = vld [vmem:[%s459 + $0xc] sm:$0xf]
        %v3045 = vld [vmem:[%s459 + $0x10] sm:$0xf]
        %v3046 = vld [vmem:[%s459 + $0x14] sm:$0xf]
        %v3047 = vld [vmem:[%s459 + $0x18] sm:$0xf]
        %v3048 = vld [vmem:[%s459 + $0x1c] sm:$0xf]
        %v3049 = vld [vmem:[%s459 + $0x20] sm:$0xf]
        %v3050 = vld [vmem:[%s459 + $0x24] sm:$0xf]
        %v3051 = vld [vmem:[%s459 + $0x28] sm:$0xf]
        %v3052 = vld [vmem:[%s459 + $0x2c] sm:$0xf]
        %v3053 = vld [vmem:[%s459 + $0x30] sm:$0xf]
        %v3054 = vld [vmem:[%s459 + $0x34] sm:$0xf]
        %v3055 = vld [vmem:[%s459 + $0x38] sm:$0xf]
        %v3056 = vld [vmem:[%s459 + $0x3c] sm:$0xf]
        %v3057 = vlaneseq
        %v3058 = vshrl.u32 %v3057, 7
        %v3059 = vsub.s32 7, %v3058
        %v3060 = vrot.slane %v477, %v3059
        %v3077 = vunpack.c.l.b16 %v3041
        %v3078 = vunpack.c.l.b16 %v3042
        %v3079 = vunpack.c.l.b16 %v3043
        %v3080 = vunpack.c.l.b16 %v3044
        %v3081 = vunpack.c.l.b16 %v3045
        %v3082 = vunpack.c.l.b16 %v3046
        %v3083 = vunpack.c.l.b16 %v3047
        %v3084 = vunpack.c.l.b16 %v3048
        %v3085 = vunpack.c.l.b16 %v3049
        %v3086 = vunpack.c.l.b16 %v3050
        %v3087 = vunpack.c.l.b16 %v3051
        %v3088 = vunpack.c.l.b16 %v3052
        %v3089 = vunpack.c.l.b16 %v3053
        %v3090 = vunpack.c.l.b16 %v3054
        %v3091 = vunpack.c.l.b16 %v3055
        %v3092 = vunpack.c.l.b16 %v3056
        %v3093 = vpack.c.b16 %v3078, %v3077
        %v3094 = vpack.c.b16 %v3080, %v3079
        %v3095 = vpack.c.b16 %v3082, %v3081
        %v3096 = vpack.c.b16 %v3084, %v3083
        %v3097 = vpack.c.b16 %v3086, %v3085
        %v3098 = vpack.c.b16 %v3088, %v3087
        %v3099 = vpack.c.b16 %v3090, %v3089
        %v3100 = vpack.c.b16 %v3092, %v3091
        %3109 = vmatprep.subr.bf16.mxu0 0
        %3110 = vmatpush1.bf16.msra.mxu0 %v3100
        %3111 = vmatprep.subr.bf16.mxu0 0
        %3112 = vmatpush1.bf16.msra.mxu0 %v3099
        %3113 = vmatprep.subr.bf16.mxu0 0
        %3114 = vmatpush1.bf16.msra.mxu0 %v3098
        %3115 = vmatprep.subr.bf16.mxu0 0
        %3116 = vmatpush1.bf16.msra.mxu0 %v3097
        %3117 = vmatprep.subr.bf16.mxu0 0
        %3118 = vmatpush1.bf16.msra.mxu0 %v3096
        %3119 = vmatprep.subr.bf16.mxu0 0
        %3120 = vmatpush1.bf16.msra.mxu0 %v3095
        %3121 = vmatprep.subr.bf16.mxu0 0
        %3122 = vmatpush1.bf16.msra.mxu0 %v3094
        %3123 = vmatprep.subr.bf16.mxu0 0
        %3124 = vmatpush1.bf16.msra.mxu0 %v3093
        %3125 = vmatprep.subr.bf16.mxu0 0
        %3126 = vmatpush2.bf16.msra.mxu0 0
        %3127 = vmatprep.subr.bf16.mxu0 0
        %3128 = vmatpush2.bf16.msra.mxu0 0
        %3129 = vmatprep.subr.bf16.mxu0 0
        %3130 = vmatpush2.bf16.msra.mxu0 0
        %3131 = vmatprep.subr.bf16.mxu0 0
        %3132 = vmatpush2.bf16.msra.mxu0 0
        %3133 = vmatprep.subr.bf16.mxu0 0
        %3134 = vmatpush2.bf16.msra.mxu0 0
        %3135 = vmatprep.subr.bf16.mxu0 0
        %3136 = vmatpush2.bf16.msra.mxu0 0
        %3137 = vmatprep.subr.bf16.mxu0 0
        %3138 = vmatpush2.bf16.msra.mxu0 0
        %3139 = vmatprep.subr.bf16.mxu0 0
        %3140 = vmatpush2.bf16.msra.mxu0 0
        %3141 = vmatprep.mubr.bf16.mxu0 0
        %3142 = vmatmul.mubr.bf16.gmra.mxu0 %v3040
        %v3143 = vpop.f32.mrf.mxu0
        %v3144 = vadd.f32 %v3060, %v3143
        %v3145 = vpop.f32.mrf.mxu0
        %v3146 = vpop.f32.mrf.mxu0
        %v3147 = vadd.f32 %v3060, %v3146
        %v3148 = vpop.f32.mrf.mxu0
        %3149 = vdwg.mxu0
        %v3150 = vadd.f32 %v2926, %v3144
        %v3151 = vadd.f32 %v2927, %v3147
        %3152 = vadd.xlane.f32.xlu0 %v3150
        %v3153 = vpop.xlane.xlu0 %3152
        %3154 = vadd.xlane.f32.xlu0 %v3151
        %v3155 = vpop.xlane.xlu0 %3154
        %v3156 = vmul.f32 %v3153, %v2897
        %v3157 = vmul.f32 %v3155, %v2897
        %v3158 = vsub.f32 %v3150, %v3156
        %v3159 = vsub.f32 %v3151, %v3157
        %v3160 = vmul.f32 %v3158, %v3158
        %v3161 = vmul.f32 %v3159, %v3159
        %3162 = vadd.xlane.f32.xlu0 %v3160
        %v3163 = vpop.xlane.xlu0 %3162
        %3164 = vadd.xlane.f32.xlu0 %v3161
        %v3165 = vpop.xlane.xlu0 %3164
        %v3166 = vmul.f32 %v3163, %v2897
        %v3167 = vmul.f32 %v3165, %v2897
        %v3168 = vadd.f32 %v3166, 1e-05
        %v3169 = vadd.f32 %v3167, 1e-05
        %v3170 = vrsqrt.pop %v3168
        %v3171 = vrsqrt.pop %v3169
        %v3172 = vmul.f32 %v3158, %v3170
        %v3173 = vmul.f32 %v3159, %v3171
        %v3174 = vlaneseq
        %v3175 = vshrl.u32 %v3174, 7
        %v3176 = vsub.s32 0, %v3175
        %v3177 = vrot.slane %v478, %v3176
        %v3178 = vmul.f32 %v3172, %v3177
        %v3179 = vmul.f32 %v3173, %v3177
        %v3180 = vlaneseq
        %v3181 = vshrl.u32 %v3180, 7
        %v3182 = vsub.s32 1, %v3181
        %v3183 = vrot.slane %v478, %v3182
        %v3184 = vadd.f32 %v3178, %v3183
        %v3185 = vadd.f32 %v3179, %v3183
        %3186 = vst [vmem:[#allocation2] sm:$0xff] %v3184
        %3187 = vst [vmem:[#allocation2 + $0x8] sm:$0xff] %v3185
        %p3188 = scmp.eq.s32.totalorder %s27, 5
        // Predicated region
        $region65: #{transformer_forward.1} parent=59 // pred_check
          %p3189 = pneg %p3188
        $region66: #{transformer_forward.1} parent=59 // pred_check_branch
          %3191 = sbr.rel (%p3189) target = $region68
        $region67: #{transformer_forward.1} parent=59 // pred_region
          %v3192 = vpack.c.bf16 %v3185, %v3184
          %v3193 = vld [vmem:[%s6] sm:$0xf]
          %v3194 = vld [vmem:[%s6 + $0x4] sm:$0xf]
          %v3195 = vld [vmem:[%s6 + $0x8] sm:$0xf]
          %v3196 = vld [vmem:[%s6 + $0xc] sm:$0xf]
          %v3197 = vld [vmem:[%s6 + $0x10] sm:$0xf]
          %v3198 = vld [vmem:[%s6 + $0x14] sm:$0xf]
          %v3199 = vld [vmem:[%s6 + $0x18] sm:$0xf]
          %v3200 = vld [vmem:[%s6 + $0x1c] sm:$0xf]
          %v3201 = vld [vmem:[%s6 + $0x20] sm:$0xf]
          %v3202 = vld [vmem:[%s6 + $0x24] sm:$0xf]
          %v3203 = vld [vmem:[%s6 + $0x28] sm:$0xf]
          %v3204 = vld [vmem:[%s6 + $0x2c] sm:$0xf]
          %v3205 = vld [vmem:[%s6 + $0x30] sm:$0xf]
          %v3206 = vld [vmem:[%s6 + $0x34] sm:$0xf]
          %v3207 = vld [vmem:[%s6 + $0x38] sm:$0xf]
          %v3208 = vld [vmem:[%s6 + $0x3c] sm:$0xf]
          %v3209 = vld [vmem:[%s7] sm:$0x1]
          %v3211 = vlaneseq
          %v3212 = vshrl.u32 %v3211, 7
          %v3213 = vsub.s32 0, %v3212
          %v3214 = vrot.slane %v3209, %v3213
          %v3232 = vunpack.c.l.b16 %v3193
          %v3233 = vunpack.c.l.b16 %v3194
          %v3234 = vunpack.c.l.b16 %v3195
          %v3235 = vunpack.c.l.b16 %v3196
          %v3236 = vunpack.c.l.b16 %v3197
          %v3237 = vunpack.c.l.b16 %v3198
          %v3238 = vunpack.c.l.b16 %v3199
          %v3239 = vunpack.c.l.b16 %v3200
          %v3240 = vunpack.c.l.b16 %v3201
          %v3241 = vunpack.c.l.b16 %v3202
          %v3242 = vunpack.c.l.b16 %v3203
          %v3243 = vunpack.c.l.b16 %v3204
          %v3244 = vunpack.c.l.b16 %v3205
          %v3245 = vunpack.c.l.b16 %v3206
          %v3246 = vunpack.c.l.b16 %v3207
          %v3247 = vunpack.c.l.b16 %v3208
          %v3248 = vpack.c.b16 %v3233, %v3232
          %v3249 = vpack.c.b16 %v3235, %v3234
          %v3250 = vpack.c.b16 %v3237, %v3236
          %v3251 = vpack.c.b16 %v3239, %v3238
          %v3252 = vpack.c.b16 %v3241, %v3240
          %v3253 = vpack.c.b16 %v3243, %v3242
          %v3254 = vpack.c.b16 %v3245, %v3244
          %v3255 = vpack.c.b16 %v3247, %v3246
          %3264 = vmatprep.subr.bf16.mxu0 0
          %3265 = vmatpush1.bf16.msra.mxu0 %v3255
          %3266 = vmatprep.subr.bf16.mxu0 0
          %3267 = vmatpush1.bf16.msra.mxu0 %v3254
          %3268 = vmatprep.subr.bf16.mxu0 0
          %3269 = vmatpush1.bf16.msra.mxu0 %v3253
          %3270 = vmatprep.subr.bf16.mxu0 0
          %3271 = vmatpush1.bf16.msra.mxu0 %v3252
          %3272 = vmatprep.subr.bf16.mxu0 0
          %3273 = vmatpush1.bf16.msra.mxu0 %v3251
          %3274 = vmatprep.subr.bf16.mxu0 0
          %3275 = vmatpush1.bf16.msra.mxu0 %v3250
          %3276 = vmatprep.subr.bf16.mxu0 0
          %3277 = vmatpush1.bf16.msra.mxu0 %v3249
          %3278 = vmatprep.subr.bf16.mxu0 0
          %3279 = vmatpush1.bf16.msra.mxu0 %v3248
          %3280 = vmatprep.subr.bf16.mxu0 0
          %3281 = vmatpush2.bf16.msra.mxu0 0
          %3282 = vmatprep.subr.bf16.mxu0 0
          %3283 = vmatpush2.bf16.msra.mxu0 0
          %3284 = vmatprep.subr.bf16.mxu0 0
          %3285 = vmatpush2.bf16.msra.mxu0 0
          %3286 = vmatprep.subr.bf16.mxu0 0
          %3287 = vmatpush2.bf16.msra.mxu0 0
          %3288 = vmatprep.subr.bf16.mxu0 0
          %3289 = vmatpush2.bf16.msra.mxu0 0
          %3290 = vmatprep.subr.bf16.mxu0 0
          %3291 = vmatpush2.bf16.msra.mxu0 0
          %3292 = vmatprep.subr.bf16.mxu0 0
          %3293 = vmatpush2.bf16.msra.mxu0 0
          %3294 = vmatprep.subr.bf16.mxu0 0
          %3295 = vmatpush2.bf16.msra.mxu0 0
          %3296 = vmatprep.mubr.bf16.mxu0 0
          %3297 = vmatmul.mubr.bf16.gmra.mxu0 %v3192
          %v3298 = vpop.f32.mrf.mxu0
          %v3299 = vadd.f32 %v3214, %v3298
          %v3300 = vpop.f32.mrf.mxu0
          %v3301 = vpop.f32.mrf.mxu0
          %v3302 = vadd.f32 %v3214, %v3301
          %v3303 = vpop.f32.mrf.mxu0
          %3304 = vdwg.mxu0
          %v3305 = vmax.f32 %v3299, 0.0
          %v3306 = vmax.f32 %v3302, 0.0
          %v3307 = vpack.c.bf16 %v3306, %v3305
          %v3308 = vld [vmem:[%s8] sm:$0xf]
          %v3309 = vld [vmem:[%s8 + $0x4] sm:$0xf]
          %v3310 = vld [vmem:[%s8 + $0x8] sm:$0xf]
          %v3311 = vld [vmem:[%s8 + $0xc] sm:$0xf]
          %v3312 = vld [vmem:[%s8 + $0x10] sm:$0xf]
          %v3313 = vld [vmem:[%s8 + $0x14] sm:$0xf]
          %v3314 = vld [vmem:[%s8 + $0x18] sm:$0xf]
          %v3315 = vld [vmem:[%s8 + $0x1c] sm:$0xf]
          %v3316 = vld [vmem:[%s8 + $0x20] sm:$0xf]
          %v3317 = vld [vmem:[%s8 + $0x24] sm:$0xf]
          %v3318 = vld [vmem:[%s8 + $0x28] sm:$0xf]
          %v3319 = vld [vmem:[%s8 + $0x2c] sm:$0xf]
          %v3320 = vld [vmem:[%s8 + $0x30] sm:$0xf]
          %v3321 = vld [vmem:[%s8 + $0x34] sm:$0xf]
          %v3322 = vld [vmem:[%s8 + $0x38] sm:$0xf]
          %v3323 = vld [vmem:[%s8 + $0x3c] sm:$0xf]
          %v3324 = vld [vmem:[%s9] sm:$0x1]
          %v3326 = vlaneseq
          %v3327 = vshrl.u32 %v3326, 7
          %v3328 = vsub.s32 0, %v3327
          %v3329 = vrot.slane %v3324, %v3328
          %v3347 = vunpack.c.l.b16 %v3308
          %v3348 = vunpack.c.l.b16 %v3309
          %v3349 = vunpack.c.l.b16 %v3310
          %v3350 = vunpack.c.l.b16 %v3311
          %v3351 = vunpack.c.l.b16 %v3312
          %v3352 = vunpack.c.l.b16 %v3313
          %v3353 = vunpack.c.l.b16 %v3314
          %v3354 = vunpack.c.l.b16 %v3315
          %v3355 = vunpack.c.l.b16 %v3316
          %v3356 = vunpack.c.l.b16 %v3317
          %v3357 = vunpack.c.l.b16 %v3318
          %v3358 = vunpack.c.l.b16 %v3319
          %v3359 = vunpack.c.l.b16 %v3320
          %v3360 = vunpack.c.l.b16 %v3321
          %v3361 = vunpack.c.l.b16 %v3322
          %v3362 = vunpack.c.l.b16 %v3323
          %v3363 = vpack.c.b16 %v3348, %v3347
          %v3364 = vpack.c.b16 %v3350, %v3349
          %v3365 = vpack.c.b16 %v3352, %v3351
          %v3366 = vpack.c.b16 %v3354, %v3353
          %v3367 = vpack.c.b16 %v3356, %v3355
          %v3368 = vpack.c.b16 %v3358, %v3357
          %v3369 = vpack.c.b16 %v3360, %v3359
          %v3370 = vpack.c.b16 %v3362, %v3361
          %3379 = vmatprep.subr.bf16.mxu0 0
          %3380 = vmatpush1.bf16.msra.mxu0 %v3370
          %3381 = vmatprep.subr.bf16.mxu0 0
          %3382 = vmatpush1.bf16.msra.mxu0 %v3369
          %3383 = vmatprep.subr.bf16.mxu0 0
          %3384 = vmatpush1.bf16.msra.mxu0 %v3368
          %3385 = vmatprep.subr.bf16.mxu0 0
          %3386 = vmatpush1.bf16.msra.mxu0 %v3367
          %3387 = vmatprep.subr.bf16.mxu0 0
          %3388 = vmatpush1.bf16.msra.mxu0 %v3366
          %3389 = vmatprep.subr.bf16.mxu0 0
          %3390 = vmatpush1.bf16.msra.mxu0 %v3365
          %3391 = vmatprep.subr.bf16.mxu0 0
          %3392 = vmatpush1.bf16.msra.mxu0 %v3364
          %3393 = vmatprep.subr.bf16.mxu0 0
          %3394 = vmatpush1.bf16.msra.mxu0 %v3363
          %3395 = vmatprep.subr.bf16.mxu0 0
          %3396 = vmatpush2.bf16.msra.mxu0 0
          %3397 = vmatprep.subr.bf16.mxu0 0
          %3398 = vmatpush2.bf16.msra.mxu0 0
          %3399 = vmatprep.subr.bf16.mxu0 0
          %3400 = vmatpush2.bf16.msra.mxu0 0
          %3401 = vmatprep.subr.bf16.mxu0 0
          %3402 = vmatpush2.bf16.msra.mxu0 0
          %3403 = vmatprep.subr.bf16.mxu0 0
          %3404 = vmatpush2.bf16.msra.mxu0 0
          %3405 = vmatprep.subr.bf16.mxu0 0
          %3406 = vmatpush2.bf16.msra.mxu0 0
          %3407 = vmatprep.subr.bf16.mxu0 0
          %3408 = vmatpush2.bf16.msra.mxu0 0
          %3409 = vmatprep.subr.bf16.mxu0 0
          %3410 = vmatpush2.bf16.msra.mxu0 0
          %3411 = vmatprep.mubr.bf16.mxu0 0
          %3412 = vmatmul.mubr.bf16.gmra.mxu0 %v3307
          %v3413 = vpop.f32.mrf.mxu0
          %v3414 = vadd.f32 %v3329, %v3413
          %v3415 = vpop.f32.mrf.mxu0
          %v3416 = vpop.f32.mrf.mxu0
          %v3417 = vadd.f32 %v3329, %v3416
          %v3418 = vpop.f32.mrf.mxu0
          %3419 = vdwg.mxu0
          %3420 = vst [vmem:[#allocation3] sm:$0xff] %v3414
          %3421 = vst [vmem:[#allocation3 + $0x8] sm:$0xff] %v3417
        $region68: #{transformer_forward.1} parent=59 // pred_fallthru
          _
        // Predicated region
        $region69: #{transformer_forward.1} parent=59 // pred_check
          %p3422 = pneg %p292
        $region70: #{transformer_forward.1} parent=59 // pred_check_branch
          %3424 = sbr.rel (%p3422) target = $region72
        $region71: #{transformer_forward.1} parent=59 // pred_region
          %s3425 = smul.u32 2, %s26
          %s3427 = ssub.s32 256, 256
          %3428 = vsyncadd [#allocation4], %s3427
          %s3429 = smul.addr %s3425, 128
          %s3430 = scalar_lea.hbm %s10, %s3429
          %s3431 = sshll.u32 [#allocation3], 4
          %s3432 = int_to_ptr.vmem [resolvable:$true] %s3431
          %3437 = dma.vmem_to_hbm [thread:$0]  %s3432, 256, %s3430, [#allocation4], 128, 128, 8
        $region72: #{transformer_forward.1} parent=59 // pred_fallthru
          _
        // Predicated region
        $region73: #{transformer_forward.1} parent=59 // pred_check
          %p3438 = pneg %p292
        $region74: #{transformer_forward.1} parent=59 // pred_check_branch
          %3440 = sbr.rel (%p3438) target = $region76
        $region75: #{transformer_forward.1} parent=59 // pred_region
          %3441 = dma.done [#allocation4], 256
        $region76: #{transformer_forward.1} parent=59 // pred_fallthru
          _
      $region60: #{transformer_forward.1} parent=5 // pred_fallthru
        _
      %p3442 = scmp.le.s32.totalorder 2, %s17
      // Predicated region
      $region77: #{transformer_forward.1} parent=5 // pred_check
        %p3443 = pneg %p3442
      $region78: #{transformer_forward.1} parent=5 // pred_check_branch
        %3445 = sbr.rel (%p3443) target = $region80
      $region79: #{transformer_forward.1} parent=5 // pred_region
        %s3446 = ssub.s32 %s17, 2
      $region80: #{transformer_forward.1} parent=5 // pred_fallthru
        _
    $region6: #{transformer_forward.1} parent=1 // loop_footer
      %s21 = sadd.s32 1, %s17
    $region7: #{transformer_forward.1} parent=1 // loop_footer_branch
      %16 = sbr.rel target = $region3
    $region8: #{transformer_forward.1} parent=1 // loop_exit
      _
    %3447 = vsyncpa [#allocation4], 1
    %s3448 = scalar_lea.sflag [#allocation4], 1
    %3449 = vsyncpa %s3448, 1

// kernel: transformer_forward.1
$region0: #{transformer_forward.1}
  #allocation0 [shape = 'u32[]', space=smem, size = 0x4, offset = 0x4, fixed_abs, tag = 'smem constant byte address 0x4 - core index']
  #allocation1 [shape = 'u32[144,128]{1,0:T(1,128)}', space=vmem, size = 0x12000, scoped, tag = 'internal scratch']
  #allocation2 [shape = 'f32[16,128]{1,0:T(8,128)}', space=vmem, size = 0x2000, scoped, tag = 'scratch operand']
  %s0 = inlined_call_operand.vmem [shape: f32[2,8,128], index: 0, kind: input, shape index: {}]
  %s1 = inlined_call_operand.vmem [shape: bf16[6,128,384], index: 1, kind: input, shape index: {}]
  %s2 = inlined_call_operand.vmem [shape: bf16[6,128,128], index: 2, kind: input, shape index: {}]
  %s3 = inlined_call_operand.vmem [shape: bf16[6,128,128], index: 3, kind: input, shape index: {}]
  %s4 = inlined_call_operand.vmem [shape: bf16[6,128,128], index: 4, kind: input, shape index: {}]
  %s5 = inlined_call_operand.vmem [shape: f32[6,10,128], index: 5, kind: input, shape index: {}]
  %s6 = inlined_call_operand.vmem [shape: bf16[128,128], index: 6, kind: input, shape index: {}]
  %s7 = inlined_call_operand.vmem [shape: f32[1,128], index: 7, kind: input, shape index: {}]
  %s8 = inlined_call_operand.vmem [shape: bf16[128,128], index: 8, kind: input, shape index: {}]
  %s9 = inlined_call_operand.vmem [shape: f32[1,128], index: 9, kind: input, shape index: {}]
  %s10 = inlined_call_operand.hbm [shape: f32[2,8,128], index: 10, kind: output, shape index: {}]
  %s11 = sld [smem:[#allocation0]]
  $region81: #{transformer_forward.1} parent=0
    _
  %s13 = ssub.s32 1, %s11
  %s14 = scalar_select 0, %s13, %s11
  $region1: #{transformer_forward.1} parent=0
    #allocation3 [shape = 'u8[8192]{0}', space=vmem, size = 0x2000, scoped, tag = 'output window, operand 0, single buffered']
    #allocation4 [shape = 's32[2]{0}', space=sflag, size = 0x8, scoped, tag = 'scoped memory for transformer_forward.1']
    %15 = vsyncpa [#allocation4], 0
    loop: start=0, step=1, limit=8
    $region2: #{transformer_forward.1} parent=1 // loop_pre_header
      _
    $region3: #{transformer_forward.1} parent=1 // loop_header
      %s17 = sphi 0, %s21
      %p18 = scmp.ge.s32.totalorder %s17, 8
      %s24 = sphi 0, %s36
      %s25 = sphi 0, %s32
      %s26 = sphi 0, %s24
      %s27 = sphi 0, %s25
      %s28 = sphi 0, %s26
      %s29 = sphi 0, %s27
      %s39 = sphi 0, %s41
      %s42 = sphi 0, %s39
      %s43 = sphi 0, %s42
      %s59 = sphi 0, %s43
      %s65 = sphi 0, %s67
      %s68 = sphi 0, %s65
      %s69 = sphi 0, %s68
      %s85 = sphi 0, %s69
      %s91 = sphi 0, %s93
      %s94 = sphi 0, %s91
      %s95 = sphi 0, %s94
      %s111 = sphi 0, %s95
      %s117 = sphi 0, %s119
      %s120 = sphi 0, %s117
      %s121 = sphi 0, %s120
      %s137 = sphi 0, %s121
      %s143 = sphi 0, %s145
      %s146 = sphi 0, %s143
      %s147 = sphi 0, %s146
      %s163 = sphi 0, %s147
      %s169 = sphi 0, %s171
      %s172 = sphi 0, %s169
      %s173 = sphi 0, %s172
      %s189 = sphi 0, %s173
      %s193 = sphi 0, %s193
      %s195 = sphi 0, %s193
      %s196 = sphi 0, %s195
      %s210 = sphi 0, %s196
      %s214 = sphi 0, %s214
      %s216 = sphi 0, %s214
      %s217 = sphi 0, %s216
      %s231 = sphi 0, %s217
      %s235 = sphi 0, %s235
      %s237 = sphi 0, %s235
      %s238 = sphi 0, %s237
      %s252 = sphi 0, %s238
      %s256 = sphi 0, %s256
      %s258 = sphi 0, %s256
      %s259 = sphi 0, %s258
      %s273 = sphi 0, %s259
      %s279 = sphi 0, %s281
      %s282 = sphi 0, %s279
      %s283 = sphi 0, %s282
      %s299 = sphi 0, %s283
    $region4: #{transformer_forward.1} parent=1 // loop_header_branch
      %20 = sbr.rel (%p18) target = $region8
    $region5: #{transformer_forward.1} parent=1 // loop_body
      %s22 = ssub.s32 %s17, 1
      %s23 = ssub.s32 %s17, 2
      %s30 = sadd.s32 1, %s25
      %p31 = scmp.ge.s32.totalorder %s30, 6
      %s32 = scalar_select %p31, 0, %s30
      %s33 = sadd.s32 1, %s24
      %s34 = scalar_select %p31, %s33, %s24
      %p35 = scmp.ge.s32.totalorder %s34, 1
      %s36 = scalar_select %p35, 0, %s34
      %s37 = ssub.s32 %s24, %s36
      %p38 = scmp.eq.s32.totalorder %s37, 0
      %s40 = sadd.s32 %s39, 1
      %s41 = scalar_select %p38, %s39, %s40
      %p44 = pneg %p38
      %p45 = scmp.eq.s32.totalorder %s17, 5
      %p46 = por %p44, %p45
      %p47 = scmp.ne.s32.totalorder %s39, %s42
      %p48 = scmp.eq.s32.totalorder %s17, 0
      %p49 = por %p47, %p48
      %p50 = scmp.ne.s32.totalorder %s39, %s42
      %p51 = scmp.eq.s32.totalorder %s22, 5
      %p52 = por %p50, %p51
      %p53 = scmp.ne.s32.totalorder %s42, %s43
      %p54 = scmp.eq.s32.totalorder %s22, 0
      %p55 = por %p53, %p54
      %p56 = scmp.ne.s32.totalorder %s42, %s43
      %p57 = scmp.eq.s32.totalorder %s23, 5
      %p58 = por %p56, %p57
      %p60 = scmp.ne.s32.totalorder %s43, %s59
      %p61 = scmp.eq.s32.totalorder %s23, 0
      %p62 = por %p60, %p61
      %s63 = ssub.s32 %s25, %s32
      %p64 = scmp.eq.s32.totalorder %s63, 0
      %s66 = sadd.s32 %s65, 1
      %s67 = scalar_select %p64, %s65, %s66
      %p70 = pneg %p64
      %p71 = scmp.eq.s32.totalorder %s17, 5
      %p72 = por %p70, %p71
      %p73 = scmp.ne.s32.totalorder %s65, %s68
      %p74 = scmp.eq.s32.totalorder %s17, 0
      %p75 = por %p73, %p74
      %p76 = scmp.ne.s32.totalorder %s65, %s68
      %p77 = scmp.eq.s32.totalorder %s22, 5
      %p78 = por %p76, %p77
      %p79 = scmp.ne.s32.totalorder %s68, %s69
      %p80 = scmp.eq.s32.totalorder %s22, 0
      %p81 = por %p79, %p80
      %p82 = scmp.ne.s32.totalorder %s68, %s69
      %p83 = scmp.eq.s32.totalorder %s23, 5
      %p84 = por %p82, %p83
      %p86 = scmp.ne.s32.totalorder %s69, %s85
      %p87 = scmp.eq.s32.totalorder %s23, 0
      %p88 = por %p86, %p87
      %s89 = ssub.s32 %s25, %s32
      %p90 = scmp.eq.s32.totalorder %s89, 0
      %s92 = sadd.s32 %s91, 1
      %s93 = scalar_select %p90, %s91, %s92
      %p96 = pneg %p90
      %p97 = scmp.eq.s32.totalorder %s17, 5
      %p98 = por %p96, %p97
      %p99 = scmp.ne.s32.totalorder %s91, %s94
      %p100 = scmp.eq.s32.totalorder %s17, 0
      %p101 = por %p99, %p100
      %p102 = scmp.ne.s32.totalorder %s91, %s94
      %p103 = scmp.eq.s32.totalorder %s22, 5
      %p104 = por %p102, %p103
      %p105 = scmp.ne.s32.totalorder %s94, %s95
      %p106 = scmp.eq.s32.totalorder %s22, 0
      %p107 = por %p105, %p106
      %p108 = scmp.ne.s32.totalorder %s94, %s95
      %p109 = scmp.eq.s32.totalorder %s23, 5
      %p110 = por %p108, %p109
      %p112 = scmp.ne.s32.totalorder %s95, %s111
      %p113 = scmp.eq.s32.totalorder %s23, 0
      %p114 = por %p112, %p113
      %s115 = ssub.s32 %s25, %s32
      %p116 = scmp.eq.s32.totalorder %s115, 0
      %s118 = sadd.s32 %s117, 1
      %s119 = scalar_select %p116, %s117, %s118
      %p122 = pneg %p116
      %p123 = scmp.eq.s32.totalorder %s17, 5
      %p124 = por %p122, %p123
      %p125 = scmp.ne.s32.totalorder %s117, %s120
      %p126 = scmp.eq.s32.totalorder %s17, 0
      %p127 = por %p125, %p126
      %p128 = scmp.ne.s32.totalorder %s117, %s120
      %p129 = scmp.eq.s32.totalorder %s22, 5
      %p130 = por %p128, %p129
      %p131 = scmp.ne.s32.totalorder %s120, %s121
      %p132 = scmp.eq.s32.totalorder %s22, 0
      %p133 = por %p131, %p132
      %p134 = scmp.ne.s32.totalorder %s120, %s121
      %p135 = scmp.eq.s32.totalorder %s23, 5
      %p136 = por %p134, %p135
      %p138 = scmp.ne.s32.totalorder %s121, %s137
      %p139 = scmp.eq.s32.totalorder %s23, 0
      %p140 = por %p138, %p139
      %s141 = ssub.s32 %s25, %s32
      %p142 = scmp.eq.s32.totalorder %s141, 0
      %s144 = sadd.s32 %s143, 1
      %s145 = scalar_select %p142, %s143, %s144
      %p148 = pneg %p142
      %p149 = scmp.eq.s32.totalorder %s17, 5
      %p150 = por %p148, %p149
      %p151 = scmp.ne.s32.totalorder %s143, %s146
      %p152 = scmp.eq.s32.totalorder %s17, 0
      %p153 = por %p151, %p152
      %p154 = scmp.ne.s32.totalorder %s143, %s146
      %p155 = scmp.eq.s32.totalorder %s22, 5
      %p156 = por %p154, %p155
      %p157 = scmp.ne.s32.totalorder %s146, %s147
      %p158 = scmp.eq.s32.totalorder %s22, 0
      %p159 = por %p157, %p158
      %p160 = scmp.ne.s32.totalorder %s146, %s147
      %p161 = scmp.eq.s32.totalorder %s23, 5
      %p162 = por %p160, %p161
      %p164 = scmp.ne.s32.totalorder %s147, %s163
      %p165 = scmp.eq.s32.totalorder %s23, 0
      %p166 = por %p164, %p165
      %s167 = ssub.s32 %s25, %s32
      %p168 = scmp.eq.s32.totalorder %s167, 0
      %s170 = sadd.s32 %s169, 1
      %s171 = scalar_select %p168, %s169, %s170
      %p174 = pneg %p168
      %p175 = scmp.eq.s32.totalorder %s17, 5
      %p176 = por %p174, %p175
      %p177 = scmp.ne.s32.totalorder %s169, %s172
      %p178 = scmp.eq.s32.totalorder %s17, 0
      %p179 = por %p177, %p178
      %p180 = scmp.ne.s32.totalorder %s169, %s172
      %p181 = scmp.eq.s32.totalorder %s22, 5
      %p182 = por %p180, %p181
      %p183 = scmp.ne.s32.totalorder %s172, %s173
      %p184 = scmp.eq.s32.totalorder %s22, 0
      %p185 = por %p183, %p184
      %p186 = scmp.ne.s32.totalorder %s172, %s173
      %p187 = scmp.eq.s32.totalorder %s23, 5
      %p188 = por %p186, %p187
      %p190 = scmp.ne.s32.totalorder %s173, %s189
      %p191 = scmp.eq.s32.totalorder %s23, 0
      %p192 = por %p190, %p191
      %s194 = sadd.s32 %s193, 1
      %p197 = scmp.eq.s32.totalorder %s17, 5
      %p198 = scmp.ne.s32.totalorder %s193, %s195
      %p199 = scmp.eq.s32.totalorder %s17, 0
      %p200 = por %p198, %p199
      %p201 = scmp.ne.s32.totalorder %s193, %s195
      %p202 = scmp.eq.s32.totalorder %s22, 5
      %p203 = por %p201, %p202
      %p204 = scmp.ne.s32.totalorder %s195, %s196
      %p205 = scmp.eq.s32.totalorder %s22, 0
      %p206 = por %p204, %p205
      %p207 = scmp.ne.s32.totalorder %s195, %s196
      %p208 = scmp.eq.s32.totalorder %s23, 5
      %p209 = por %p207, %p208
      %p211 = scmp.ne.s32.totalorder %s196, %s210
      %p212 = scmp.eq.s32.totalorder %s23, 0
      %p213 = por %p211, %p212
      %s215 = sadd.s32 %s214, 1
      %p218 = scmp.eq.s32.totalorder %s17, 5
      %p219 = scmp.ne.s32.totalorder %s214, %s216
      %p220 = scmp.eq.s32.totalorder %s17, 0
      %p221 = por %p219, %p220
      %p222 = scmp.ne.s32.totalorder %s214, %s216
      %p223 = scmp.eq.s32.totalorder %s22, 5
      %p224 = por %p222, %p223
      %p225 = scmp.ne.s32.totalorder %s216, %s217
      %p226 = scmp.eq.s32.totalorder %s22, 0
      %p227 = por %p225, %p226
      %p228 = scmp.ne.s32.totalorder %s216, %s217
      %p229 = scmp.eq.s32.totalorder %s23, 5
      %p230 = por %p228, %p229
      %p232 = scmp.ne.s32.totalorder %s217, %s231
      %p233 = scmp.eq.s32.totalorder %s23, 0
      %p234 = por %p232, %p233
      %s236 = sadd.s32 %s235, 1
      %p239 = scmp.eq.s32.totalorder %s17, 5
      %p240 = scmp.ne.s32.totalorder %s235, %s237
      %p241 = scmp.eq.s32.totalorder %s17, 0
      %p242 = por %p240, %p241
      %p243 = scmp.ne.s32.totalorder %s235, %s237
      %p244 = scmp.eq.s32.totalorder %s22, 5
      %p245 = por %p243, %p244
      %p246 = scmp.ne.s32.totalorder %s237, %s238
      %p247 = scmp.eq.s32.totalorder %s22, 0
      %p248 = por %p246, %p247
      %p249 = scmp.ne.s32.totalorder %s237, %s238
      %p250 = scmp.eq.s32.totalorder %s23, 5
      %p251 = por %p249, %p250
      %p253 = scmp.ne.s32.totalorder %s238, %s252
      %p254 = scmp.eq.s32.totalorder %s23, 0
      %p255 = por %p253, %p254
      %s257 = sadd.s32 %s256, 1
      %p260 = scmp.eq.s32.totalorder %s17, 5
      %p261 = scmp.ne.s32.totalorder %s256, %s258
      %p262 = scmp.eq.s32.totalorder %s17, 0
      %p263 = por %p261, %p262
      %p264 = scmp.ne.s32.totalorder %s256, %s258
      %p265 = scmp.eq.s32.totalorder %s22, 5
      %p266 = por %p264, %p265
      %p267 = scmp.ne.s32.totalorder %s258, %s259
      %p268 = scmp.eq.s32.totalorder %s22, 0
      %p269 = por %p267, %p268
      %p270 = scmp.ne.s32.totalorder %s258, %s259
      %p271 = scmp.eq.s32.totalorder %s23, 5
      %p272 = por %p270, %p271
      %p274 = scmp.ne.s32.totalorder %s259, %s273
      %p275 = scmp.eq.s32.totalorder %s23, 0
      %p276 = por %p274, %p275
      %s277 = ssub.s32 %s24, %s36
      %p278 = scmp.eq.s32.totalorder %s277, 0
      %s280 = sadd.s32 %s279, 1
      %s281 = scalar_select %p278, %s279, %s280
      %p284 = pneg %p278
      %p285 = scmp.eq.s32.totalorder %s17, 5
      %p286 = por %p284, %p285
      %p287 = scmp.ne.s32.totalorder %s279, %s282
      %p288 = scmp.eq.s32.totalorder %s17, 0
      %p289 = por %p287, %p288
      %p290 = scmp.ne.s32.totalorder %s279, %s282
      %p291 = scmp.eq.s32.totalorder %s22, 5
      %p292 = por %p290, %p291
      %p293 = scmp.ne.s32.totalorder %s282, %s283
      %p294 = scmp.eq.s32.totalorder %s22, 0
      %p295 = por %p293, %p294
      %p296 = scmp.ne.s32.totalorder %s282, %s283
      %p297 = scmp.eq.s32.totalorder %s23, 5
      %p298 = por %p296, %p297
      %p300 = scmp.ne.s32.totalorder %s283, %s299
      %p301 = scmp.eq.s32.totalorder %s23, 0
      %p302 = por %p300, %p301
      %p303 = scmp.le.s32.totalorder 1, %s17
      %p304 = scmp.lt.s32.totalorder %s17, 7
      %p305 = pnand %p303, %p304
      %p306 = pneg %p305
      // Predicated region
      $region9: #{transformer_forward.1} parent=5 // pred_check
        _
      $region10: #{transformer_forward.1} parent=5 // pred_check_branch
        %308 = sbr.rel (%p305) target = $region12
      $region11: #{transformer_forward.1} parent=5 // pred_region
        %s309 = ssub.s32 %s17, 1
        // Predicated region
        $region13: #{transformer_forward.1} parent=11 // pred_check
          %p310 = pneg %p55
        $region14: #{transformer_forward.1} parent=11 // pred_check_branch
          %312 = sbr.rel (%p310) target = $region16
        $region15: #{transformer_forward.1} parent=11 // pred_region
          %s313 = smul.u32 2, %s26
          %p314 = scmp.lt.s32.totalorder %s313, 1
          %s315 = scalar_select %p314, %s313, 1
          %s316 = smul.addr %s315, 8
          %s317 = scalar_lea.vmem %s0, %s316
          %s318 = smul.u32 2, %s26
        $region16: #{transformer_forward.1} parent=11 // pred_fallthru
          _
        // Predicated region
        $region17: #{transformer_forward.1} parent=11 // pred_check
          %p319 = pneg %p206
        $region18: #{transformer_forward.1} parent=11 // pred_check_branch
          %321 = sbr.rel (%p319) target = $region20
        $region19: #{transformer_forward.1} parent=11 // pred_region
          _
        $region20: #{transformer_forward.1} parent=11 // pred_fallthru
          _
        // Predicated region
        $region21: #{transformer_forward.1} parent=11 // pred_check
          %p322 = pneg %p227
        $region22: #{transformer_forward.1} parent=11 // pred_check_branch
          %324 = sbr.rel (%p322) target = $region24
        $region23: #{transformer_forward.1} parent=11 // pred_region
          _
        $region24: #{transformer_forward.1} parent=11 // pred_fallthru
          _
        // Predicated region
        $region25: #{transformer_forward.1} parent=11 // pred_check
          %p325 = pneg %p248
        $region26: #{transformer_forward.1} parent=11 // pred_check_branch
          %327 = sbr.rel (%p325) target = $region28
        $region27: #{transformer_forward.1} parent=11 // pred_region
          _
        $region28: #{transformer_forward.1} parent=11 // pred_fallthru
          _
        // Predicated region
        $region29: #{transformer_forward.1} parent=11 // pred_check
          %p328 = pneg %p269
        $region30: #{transformer_forward.1} parent=11 // pred_check_branch
          %330 = sbr.rel (%p328) target = $region32
        $region31: #{transformer_forward.1} parent=11 // pred_region
          _
        $region32: #{transformer_forward.1} parent=11 // pred_fallthru
          _
      $region12: #{transformer_forward.1} parent=5 // pred_fallthru
        _
      %p331 = scmp.lt.s32.totalorder %s17, 6
      // Predicated region
      $region33: #{transformer_forward.1} parent=5 // pred_check
        %p332 = pneg %p331
      $region34: #{transformer_forward.1} parent=5 // pred_check_branch
        %334 = sbr.rel (%p332) target = $region36
      $region35: #{transformer_forward.1} parent=5 // pred_region
        // Predicated region
        $region37: #{transformer_forward.1} parent=35 // pred_check
          %p335 = pneg %p75
        $region38: #{transformer_forward.1} parent=35 // pred_check_branch
          %337 = sbr.rel (%p335) target = $region40
        $region39: #{transformer_forward.1} parent=35 // pred_region
          %p338 = scmp.lt.s32.totalorder %s25, 5
          %s339 = scalar_select %p338, %s25, 5
          %s340 = smul.addr %s339, 48
          %s341 = smul.addr %s340, 4
          %s342 = scalar_lea.vmem %s1, %s341
        $region40: #{transformer_forward.1} parent=35 // pred_fallthru
          _
        // Predicated region
        $region41: #{transformer_forward.1} parent=35 // pred_check
          %p343 = pneg %p101
        $region42: #{transformer_forward.1} parent=35 // pred_check_branch
          %345 = sbr.rel (%p343) target = $region44
        $region43: #{transformer_forward.1} parent=35 // pred_region
          %p346 = scmp.lt.s32.totalorder %s25, 5
          %s347 = scalar_select %p346, %s25, 5
          %s348 = smul.addr %s347, 16
          %s349 = smul.addr %s348, 4
          %s350 = scalar_lea.vmem %s2, %s349
        $region44: #{transformer_forward.1} parent=35 // pred_fallthru
          _
        // Predicated region
        $region45: #{transformer_forward.1} parent=35 // pred_check
          %p351 = pneg %p127
        $region46: #{transformer_forward.1} parent=35 // pred_check_branch
          %353 = sbr.rel (%p351) target = $region48
        $region47: #{transformer_forward.1} parent=35 // pred_region
          %p354 = scmp.lt.s32.totalorder %s25, 5
          %s355 = scalar_select %p354, %s25, 5
          %s356 = smul.addr %s355, 16
          %s357 = smul.addr %s356, 4
          %s358 = scalar_lea.vmem %s3, %s357
        $region48: #{transformer_forward.1} parent=35 // pred_fallthru
          _
        // Predicated region
        $region49: #{transformer_forward.1} parent=35 // pred_check
          %p359 = pneg %p153
        $region50: #{transformer_forward.1} parent=35 // pred_check_branch
          %361 = sbr.rel (%p359) target = $region52
        $region51: #{transformer_forward.1} parent=35 // pred_region
          %p362 = scmp.lt.s32.totalorder %s25, 5
          %s363 = scalar_select %p362, %s25, 5
          %s364 = smul.addr %s363, 16
          %s365 = smul.addr %s364, 4
          %s366 = scalar_lea.vmem %s4, %s365
        $region52: #{transformer_forward.1} parent=35 // pred_fallthru
          _
        // Predicated region
        $region53: #{transformer_forward.1} parent=35 // pred_check
          %p367 = pneg %p179
        $region54: #{transformer_forward.1} parent=35 // pred_check_branch
          %369 = sbr.rel (%p367) target = $region56
        $region55: #{transformer_forward.1} parent=35 // pred_region
          %p370 = scmp.lt.s32.totalorder %s25, 5
          %s371 = scalar_select %p370, %s25, 5
          %s372 = smul.addr %s371, 2
          %s373 = smul.addr %s372, 8
          %s374 = scalar_lea.vmem %s5, %s373
        $region56: #{transformer_forward.1} parent=35 // pred_fallthru
          _
      $region36: #{transformer_forward.1} parent=5 // pred_fallthru
        _
      %p375 = scmp.le.s32.totalorder 1, %s17
      %p376 = scmp.lt.s32.totalorder %s17, 7
      %p377 = pnand %p375, %p376
      %p378 = pneg %p377
      // Predicated region
      $region57: #{transformer_forward.1} parent=5 // pred_check
        _
      $region58: #{transformer_forward.1} parent=5 // pred_check_branch
        %380 = sbr.rel (%p377) target = $region60
      $region59: #{transformer_forward.1} parent=5 // pred_region
        %s381 = ssub.s32 %s17, 1
        %s382 = smul.u32 2, %s26
        %p383 = scmp.lt.s32.totalorder %s382, 1
        %s384 = scalar_select %p383, %s382, 1
        %s385 = smul.addr %s384, 8
        %s386 = scalar_lea.vmem %s0, %s385
        %p387 = pneg %p55
        %p388 = pneg %p52
        %p389 = scmp.lt.s32.totalorder %s27, 5
        %s390 = scalar_select %p389, %s27, 5
        %s391 = smul.addr %s390, 48
        %s392 = smul.addr %s391, 4
        %s393 = scalar_lea.vmem %s1, %s392
        %p394 = pneg %p81
        %p395 = pneg %p78
        %p396 = scmp.lt.s32.totalorder %s27, 5
        %s397 = scalar_select %p396, %s27, 5
        %s398 = smul.addr %s397, 16
        %s399 = smul.addr %s398, 4
        %s400 = scalar_lea.vmem %s2, %s399
        %p401 = pneg %p107
        %p402 = pneg %p104
        %p403 = scmp.lt.s32.totalorder %s27, 5
        %s404 = scalar_select %p403, %s27, 5
        %s405 = smul.addr %s404, 16
        %s406 = smul.addr %s405, 4
        %s407 = scalar_lea.vmem %s3, %s406
        %p408 = pneg %p133
        %p409 = pneg %p130
        %p410 = scmp.lt.s32.totalorder %s27, 5
        %s411 = scalar_select %p410, %s27, 5
        %s412 = smul.addr %s411, 16
        %s413 = smul.addr %s412, 4
        %s414 = scalar_lea.vmem %s4, %s413
        %p415 = pneg %p159
        %p416 = pneg %p156
        %p417 = scmp.lt.s32.totalorder %s27, 5
        %s418 = scalar_select %p417, %s27, 5
        %s419 = smul.addr %s418, 2
        %s420 = smul.addr %s419, 8
        %s421 = scalar_lea.vmem %s5, %s420
        %p422 = pneg %p185
        %p423 = pneg %p182
        %p424 = pneg %p206
        %p425 = pneg %p203
        %p426 = pneg %p227
        %p427 = pneg %p224
        %p428 = pneg %p248
        %p429 = pneg %p245
        %p430 = pneg %p269
        %p431 = pneg %p266
        %p432 = pneg %p295
        %p433 = pneg %p292
        %s434 = smul.u32 2, %s26
        %p435 = scmp.lt.s32.totalorder %s434, 1
        %s436 = scalar_select %p435, %s434, 1
        %s437 = smul.addr %s436, 8
        %s438 = scalar_lea.vmem %s0, %s437
        %s439 = smul.u32 2, %s26
        %p440 = scmp.lt.s32.totalorder %s27, 5
        %s441 = scalar_select %p440, %s27, 5
        %s442 = smul.addr %s441, 48
        %s443 = smul.addr %s442, 4
        %s444 = scalar_lea.vmem %s1, %s443
        %p445 = scmp.lt.s32.totalorder %s27, 5
        %s446 = scalar_select %p445, %s27, 5
        %s447 = smul.addr %s446, 16
        %s448 = smul.addr %s447, 4
        %s449 = scalar_lea.vmem %s2, %s448
        %p450 = scmp.lt.s32.totalorder %s27, 5
        %s451 = scalar_select %p450, %s27, 5
        %s452 = smul.addr %s451, 16
        %s453 = smul.addr %s452, 4
        %s454 = scalar_lea.vmem %s3, %s453
        %p455 = scmp.lt.s32.totalorder %s27, 5
        %s456 = scalar_select %p455, %s27, 5
        %s457 = smul.addr %s456, 16
        %s458 = smul.addr %s457, 4
        %s459 = scalar_lea.vmem %s4, %s458
        %p460 = scmp.lt.s32.totalorder %s27, 5
        %s461 = scalar_select %p460, %s27, 5
        %s462 = smul.addr %s461, 2
        %s463 = smul.addr %s462, 8
        %s464 = scalar_lea.vmem %s5, %s463
        %s465 = smul.u32 2, %s26
        %p467 = scmp.eq.s32.totalorder %s27, 0
        // Predicated region
        $region61: #{transformer_forward.1} parent=59 // pred_check
          %p468 = pneg %p467
        $region62: #{transformer_forward.1} parent=59 // pred_check_branch
          %470 = sbr.rel (%p468) target = $region64
        $region63: #{transformer_forward.1} parent=59 // pred_region
          %v471 = vld [vmem:[%s438] sm:$0xff]
          %v472 = vld [vmem:[%s438 + $0x8] sm:$0xff]
          %473 = vst [vmem:[#allocation2] sm:$0xff] %v471
          %474 = vst [vmem:[#allocation2 + $0x8] sm:$0xff] %v472
        $region64: #{transformer_forward.1} parent=59 // pred_fallthru
          _
        %v475 = vld [vmem:[#allocation2] sm:$0xff]
        %v476 = vld [vmem:[#allocation2 + $0x8] sm:$0xff]
        %v477 = vld [vmem:[%s464] sm:$0xff]
        %v478 = vld [vmem:[%s464 + $0x8] sm:$0x3]
        %v479 = vpack.c.bf16 %v476, %v475
        %v480 = vld [vmem:[%s444] sm:$0xff]
        %v481 = vld [vmem:[%s444 + $0x8] sm:$0xf]
        %v482 = vld [vmem:[%s444 + $0xc] sm:$0xff]
        %v483 = vld [vmem:[%s444 + $0x14] sm:$0xf]
        %v484 = vld [vmem:[%s444 + $0x18] sm:$0xff]
        %v485 = vld [vmem:[%s444 + $0x20] sm:$0xf]
        %v486 = vld [vmem:[%s444 + $0x24] sm:$0xff]
        %v487 = vld [vmem:[%s444 + $0x2c] sm:$0xf]
        %v488 = vld [vmem:[%s444 + $0x30] sm:$0xff]
        %v489 = vld [vmem:[%s444 + $0x38] sm:$0xf]
        %v490 = vld [vmem:[%s444 + $0x3c] sm:$0xff]
        %v491 = vld [vmem:[%s444 + $0x44] sm:$0xf]
        %v492 = vld [vmem:[%s444 + $0x48] sm:$0xff]
        %v493 = vld [vmem:[%s444 + $0x50] sm:$0xf]
        %v494 = vld [vmem:[%s444 + $0x54] sm:$0xff]
        %v495 = vld [vmem:[%s444 + $0x5c] sm:$0xf]
        %v496 = vld [vmem:[%s444 + $0x60] sm:$0xff]
        %v497 = vld [vmem:[%s444 + $0x68] sm:$0xf]
        %v498 = vld [vmem:[%s444 + $0x6c] sm:$0xff]
        %v499 = vld [vmem:[%s444 + $0x74] sm:$0xf]
        %v500 = vld [vmem:[%s444 + $0x78] sm:$0xff]
        %v501 = vld [vmem:[%s444 + $0x80] sm:$0xf]
        %v502 = vld [vmem:[%s444 + $0x84] sm:$0xff]
        %v503 = vld [vmem:[%s444 + $0x8c] sm:$0xf]
        %v504 = vld [vmem:[%s444 + $0x90] sm:$0xff]
        %v505 = vld [vmem:[%s444 + $0x98] sm:$0xf]
        %v506 = vld [vmem:[%s444 + $0x9c] sm:$0xff]
        %v507 = vld [vmem:[%s444 + $0xa4] sm:$0xf]
        %v508 = vld [vmem:[%s444 + $0xa8] sm:$0xff]
        %v509 = vld [vmem:[%s444 + $0xb0] sm:$0xf]
        %v510 = vld [vmem:[%s444 + $0xb4] sm:$0xff]
        %v511 = vld [vmem:[%s444 + $0xbc] sm:$0xf]
        %v544 = vunpack.c.l.b16 %v480
        %v545 = vunpack.c.h.b16 %v480
        %v546 = vunpack.c.l.b16 %v481
        %v547 = vunpack.c.l.b16 %v482
        %v548 = vunpack.c.h.b16 %v482
        %v549 = vunpack.c.l.b16 %v483
        %v550 = vunpack.c.l.b16 %v484
        %v551 = vunpack.c.h.b16 %v484
        %v552 = vunpack.c.l.b16 %v485
        %v553 = vunpack.c.l.b16 %v486
        %v554 = vunpack.c.h.b16 %v486
        %v555 = vunpack.c.l.b16 %v487
        %v556 = vunpack.c.l.b16 %v488
        %v557 = vunpack.c.h.b16 %v488
        %v558 = vunpack.c.l.b16 %v489
        %v559 = vunpack.c.l.b16 %v490
        %v560 = vunpack.c.h.b16 %v490
        %v561 = vunpack.c.l.b16 %v491
        %v562 = vunpack.c.l.b16 %v492
        %v563 = vunpack.c.h.b16 %v492
        %v564 = vunpack.c.l.b16 %v493
        %v565 = vunpack.c.l.b16 %v494
        %v566 = vunpack.c.h.b16 %v494
        %v567 = vunpack.c.l.b16 %v495
        %v568 = vunpack.c.l.b16 %v496
        %v569 = vunpack.c.h.b16 %v496
        %v570 = vunpack.c.l.b16 %v497
        %v571 = vunpack.c.l.b16 %v498
        %v572 = vunpack.c.h.b16 %v498
        %v573 = vunpack.c.l.b16 %v499
        %v574 = vunpack.c.l.b16 %v500
        %v575 = vunpack.c.h.b16 %v500
        %v576 = vunpack.c.l.b16 %v501
        %v577 = vunpack.c.l.b16 %v502
        %v578 = vunpack.c.h.b16 %v502
        %v579 = vunpack.c.l.b16 %v503
        %v580 = vunpack.c.l.b16 %v504
        %v581 = vunpack.c.h.b16 %v504
        %v582 = vunpack.c.l.b16 %v505
        %v583 = vunpack.c.l.b16 %v506
        %v584 = vunpack.c.h.b16 %v506
        %v585 = vunpack.c.l.b16 %v507
        %v586 = vunpack.c.l.b16 %v508
        %v587 = vunpack.c.h.b16 %v508
        %v588 = vunpack.c.l.b16 %v509
        %v589 = vunpack.c.l.b16 %v510
        %v590 = vunpack.c.h.b16 %v510
        %v591 = vunpack.c.l.b16 %v511
        %v592 = vpack.c.b16 %v547, %v544
        %v593 = vpack.c.b16 %v548, %v545
        %v594 = vpack.c.b16 %v549, %v546
        %v595 = vpack.c.b16 %v553, %v550
        %v596 = vpack.c.b16 %v554, %v551
        %v597 = vpack.c.b16 %v555, %v552
        %v598 = vpack.c.b16 %v559, %v556
        %v599 = vpack.c.b16 %v560, %v557
        %v600 = vpack.c.b16 %v561, %v558
        %v601 = vpack.c.b16 %v565, %v562
        %v602 = vpack.c.b16 %v566, %v563
        %v603 = vpack.c.b16 %v567, %v564
        %v604 = vpack.c.b16 %v571, %v568
        %v605 = vpack.c.b16 %v572, %v569
        %v606 = vpack.c.b16 %v573, %v570
        %v607 = vpack.c.b16 %v577, %v574
        %v608 = vpack.c.b16 %v578, %v575
        %v609 = vpack.c.b16 %v579, %v576
        %v610 = vpack.c.b16 %v583, %v580
        %v611 = vpack.c.b16 %v584, %v581
        %v612 = vpack.c.b16 %v585, %v582
        %v613 = vpack.c.b16 %v589, %v586
        %v614 = vpack.c.b16 %v590, %v587
        %v615 = vpack.c.b16 %v591, %v588
        %640 = vmatprep.subr.bf16.mxu0 %v614
        %641 = vmatpush1.bf16.msra.mxu0 %v613
        %642 = vmatprep.subr.bf16.mxu0 %v611
        %643 = vmatpush1.bf16.msra.mxu0 %v610
        %644 = vmatprep.subr.bf16.mxu0 %v608
        %645 = vmatpush1.bf16.msra.mxu0 %v607
        %646 = vmatprep.subr.bf16.mxu0 %v605
        %647 = vmatpush1.bf16.msra.mxu0 %v604
        %648 = vmatprep.subr.bf16.mxu0 %v602
        %649 = vmatpush1.bf16.msra.mxu0 %v601
        %650 = vmatprep.subr.bf16.mxu0 %v599
        %651 = vmatpush1.bf16.msra.mxu0 %v598
        %652 = vmatprep.subr.bf16.mxu0 %v596
        %653 = vmatpush1.bf16.msra.mxu0 %v595
        %654 = vmatprep.subr.bf16.mxu0 %v593
        %655 = vmatpush1.bf16.msra.mxu0 %v592
        %656 = vmatprep.subr.bf16.mxu0 0
        %657 = vmatpush2.bf16.msra.mxu0 0
        %658 = vmatprep.subr.bf16.mxu0 0
        %659 = vmatpush2.bf16.msra.mxu0 0
        %660 = vmatprep.subr.bf16.mxu0 0
        %661 = vmatpush2.bf16.msra.mxu0 0
        %662 = vmatprep.subr.bf16.mxu0 0
        %663 = vmatpush2.bf16.msra.mxu0 0
        %664 = vmatprep.subr.bf16.mxu0 0
        %665 = vmatpush2.bf16.msra.mxu0 0
        %666 = vmatprep.subr.bf16.mxu0 0
        %667 = vmatpush2.bf16.msra.mxu0 0
        %668 = vmatprep.subr.bf16.mxu0 0
        %669 = vmatpush2.bf16.msra.mxu0 0
        %670 = vmatprep.subr.bf16.mxu0 0
        %671 = vmatpush2.bf16.msra.mxu0 0
        %672 = vmatprep.mubr.bf16.mxu0 0
        %673 = vmatmul.mubr.bf16.gmra.mxu0 %v479
        %v674 = vpop.f32.mrf.mxu0
        %v675 = vadd.f32 0.0, %v674
        %v676 = vpop.f32.mrf.mxu0
        %v677 = vadd.f32 0.0, %v676
        %v678 = vpop.f32.mrf.mxu0
        %v679 = vadd.f32 0.0, %v678
        %v680 = vpop.f32.mrf.mxu0
        %v681 = vadd.f32 0.0, %v680
        %682 = vdwg.mxu0
        %683 = vmatprep.subr.bf16.mxu0 0
        %684 = vmatpush1.bf16.msra.mxu0 %v615
        %685 = vmatprep.subr.bf16.mxu0 0
        %686 = vmatpush1.bf16.msra.mxu0 %v612
        %687 = vmatprep.subr.bf16.mxu0 0
        %688 = vmatpush1.bf16.msra.mxu0 %v609
        %689 = vmatprep.subr.bf16.mxu0 0
        %690 = vmatpush1.bf16.msra.mxu0 %v606
        %691 = vmatprep.subr.bf16.mxu0 0
        %692 = vmatpush1.bf16.msra.mxu0 %v603
        %693 = vmatprep.subr.bf16.mxu0 0
        %694 = vmatpush1.bf16.msra.mxu0 %v600
        %695 = vmatprep.subr.bf16.mxu0 0
        %696 = vmatpush1.bf16.msra.mxu0 %v597
        %697 = vmatprep.subr.bf16.mxu0 0
        %698 = vmatpush1.bf16.msra.mxu0 %v594
        %699 = vmatprep.subr.bf16.mxu0 0
        %700 = vmatpush2.bf16.msra.mxu0 0
        %701 = vmatprep.subr.bf16.mxu0 0
        %702 = vmatpush2.bf16.msra.mxu0 0
        %703 = vmatprep.subr.bf16.mxu0 0
        %704 = vmatpush2.bf16.msra.mxu0 0
        %705 = vmatprep.subr.bf16.mxu0 0
        %706 = vmatpush2.bf16.msra.mxu0 0
        %707 = vmatprep.subr.bf16.mxu0 0
        %708 = vmatpush2.bf16.msra.mxu0 0
        %709 = vmatprep.subr.bf16.mxu0 0
        %710 = vmatpush2.bf16.msra.mxu0 0
        %711 = vmatprep.subr.bf16.mxu0 0
        %712 = vmatpush2.bf16.msra.mxu0 0
        %713 = vmatprep.subr.bf16.mxu0 0
        %714 = vmatpush2.bf16.msra.mxu0 0
        %715 = vmatprep.mubr.bf16.mxu0 0
        %716 = vmatmul.mubr.bf16.gmra.mxu0 %v479
        %v717 = vpop.f32.mrf.mxu0
        %v718 = vadd.f32 0.0, %v717
        %v719 = vpop.f32.mrf.mxu0
        %v720 = vpop.f32.mrf.mxu0
        %v721 = vadd.f32 0.0, %v720
        %v722 = vpop.f32.mrf.mxu0
        %723 = vdwg.mxu0
        %v724 = vlaneseq
        %v725 = vshrl.u32 %v724, 7
        %v726 = vsub.s32 0, %v725
        %v727 = vrot.slane %v477, %v726
        %v728 = vadd.f32 %v675, %v727
        %v729 = vadd.f32 %v679, %v727
        %v730 = vlaneseq
        %v731 = vshrl.u32 %v730, 7
        %v732 = vsub.s32 1, %v731
        %v733 = vrot.slane %v477, %v732
        %v734 = vadd.f32 %v677, %v733
        %v735 = vadd.f32 %v681, %v733
        %v736 = vlaneseq
        %v737 = vshrl.u32 %v736, 7
        %v738 = vsub.s32 2, %v737
        %v739 = vrot.slane %v477, %v738
        %v740 = vadd.f32 %v718, %v739
        %v741 = vadd.f32 %v721, %v739
        %743 = vrot.lane.b32.xlu0 %v728, 96
        %v744 = vpop.permute.xlu0 %743
        %746 = vrot.lane.b32.xlu0 %v728, 64
        %v747 = vpop.permute.xlu0 %746
        %749 = vrot.lane.b32.xlu0 %v728, 32
        %v750 = vpop.permute.xlu0 %749
        %753 = vrot.lane.b32.xlu0 %v734, 96
        %v754 = vpop.permute.xlu0 %753
        %756 = vrot.lane.b32.xlu0 %v734, 64
        %v757 = vpop.permute.xlu0 %756
        %759 = vrot.lane.b32.xlu0 %v734, 32
        %v760 = vpop.permute.xlu0 %759
        %763 = vrot.lane.b32.xlu0 %v740, 96
        %v764 = vpop.permute.xlu0 %763
        %766 = vrot.lane.b32.xlu0 %v740, 64
        %v767 = vpop.permute.xlu0 %766
        %769 = vrot.lane.b32.xlu0 %v740, 32
        %v770 = vpop.permute.xlu0 %769
        %v772 = vpack.c.bf16 %v728, %v728
        %v773 = vpack.c.bf16 %v744, %v744
        %v774 = vpack.c.bf16 %v747, %v747
        %v775 = vpack.c.bf16 %v750, %v750
        %v776 = vpack.c.bf16 %v734, %v734
        %v777 = vpack.c.bf16 %v754, %v754
        %v778 = vpack.c.bf16 %v757, %v757
        %v779 = vpack.c.bf16 %v760, %v760
        %vm780 = vcmask 261120
        %v782 = vsel %vm780, %v772, 0
        %v785 = vsel %vm780, %v776, 0
        %787 = vmatprep.subr.bf16.mxu0 0
        %788 = vmatpush1.bf16.xpose.msra.mxu0 0
        %789 = vmatprep.subr.bf16.mxu0 0
        %790 = vmatpush1.bf16.xpose.msra.mxu0 0
        %791 = vmatprep.subr.bf16.mxu0 0
        %792 = vmatpush1.bf16.xpose.msra.mxu0 0
        %793 = vmatprep.subr.bf16.mxu0 0
        %794 = vmatpush1.bf16.xpose.msra.mxu0 0
        %795 = vmatprep.subr.bf16.mxu0 0
        %796 = vmatpush1.bf16.xpose.msra.mxu0 0
        %797 = vmatprep.subr.bf16.mxu0 0
        %798 = vmatpush1.bf16.xpose.msra.mxu0 0
        %799 = vmatprep.subr.bf16.mxu0 0
        %800 = vmatpush1.bf16.xpose.msra.mxu0 0
        %801 = vmatprep.subr.bf16.mxu0 0
        %802 = vmatpush1.bf16.xpose.msra.mxu0 %v785
        %803 = vmatprep.subr.bf16.mxu0 0
        %804 = vmatpush2.bf16.xpose.msra.mxu0 0
        %805 = vmatprep.subr.bf16.mxu0 0
        %806 = vmatpush2.bf16.xpose.msra.mxu0 0
        %807 = vmatprep.subr.bf16.mxu0 0
        %808 = vmatpush2.bf16.xpose.msra.mxu0 0
        %809 = vmatprep.subr.bf16.mxu0 0
        %810 = vmatpush2.bf16.xpose.msra.mxu0 0
        %811 = vmatprep.subr.bf16.mxu0 0
        %812 = vmatpush2.bf16.xpose.msra.mxu0 0
        %813 = vmatprep.subr.bf16.mxu0 0
        %814 = vmatpush2.bf16.xpose.msra.mxu0 0
        %815 = vmatprep.subr.bf16.mxu0 0
        %816 = vmatpush2.bf16.xpose.msra.mxu0 0
        %817 = vmatprep.subr.bf16.mxu0 0
        %818 = vmatpush2.bf16.xpose.msra.mxu0 0
        %819 = vmatprep.mubr.bf16.mxu0 0
        %820 = vmatmul.mubr.bf16.gmra.mxu0 %v782
        %v821 = vpop.f32.mrf.mxu0
        %v822 = vadd.f32 0.0, %v821
        %v823 = vpop.f32.mrf.mxu0
        %v824 = vpop.f32.mrf.mxu0
        %v825 = vpop.f32.mrf.mxu0
        %826 = vdwg.mxu0
        %v828 = vsel %vm780, %v773, 0
        %v831 = vsel %vm780, %v777, 0
        %833 = vmatprep.subr.bf16.mxu0 0
        %834 = vmatpush1.bf16.xpose.msra.mxu0 0
        %835 = vmatprep.subr.bf16.mxu0 0
        %836 = vmatpush1.bf16.xpose.msra.mxu0 0
        %837 = vmatprep.subr.bf16.mxu0 0
        %838 = vmatpush1.bf16.xpose.msra.mxu0 0
        %839 = vmatprep.subr.bf16.mxu0 0
        %840 = vmatpush1.bf16.xpose.msra.mxu0 0
        %841 = vmatprep.subr.bf16.mxu0 0
        %842 = vmatpush1.bf16.xpose.msra.mxu0 0
        %843 = vmatprep.subr.bf16.mxu0 0
        %844 = vmatpush1.bf16.xpose.msra.mxu0 0
        %845 = vmatprep.subr.bf16.mxu0 0
        %846 = vmatpush1.bf16.xpose.msra.mxu0 0
        %847 = vmatprep.subr.bf16.mxu0 0
        %848 = vmatpush1.bf16.xpose.msra.mxu0 %v831
        %849 = vmatprep.subr.bf16.mxu0 0
        %850 = vmatpush2.bf16.xpose.msra.mxu0 0
        %851 = vmatprep.subr.bf16.mxu0 0
        %852 = vmatpush2.bf16.xpose.msra.mxu0 0
        %853 = vmatprep.subr.bf16.mxu0 0
        %854 = vmatpush2.bf16.xpose.msra.mxu0 0
        %855 = vmatprep.subr.bf16.mxu0 0
        %856 = vmatpush2.bf16.xpose.msra.mxu0 0
        %857 = vmatprep.subr.bf16.mxu0 0
        %858 = vmatpush2.bf16.xpose.msra.mxu0 0
        %859 = vmatprep.subr.bf16.mxu0 0
        %860 = vmatpush2.bf16.xpose.msra.mxu0 0
        %861 = vmatprep.subr.bf16.mxu0 0
        %862 = vmatpush2.bf16.xpose.msra.mxu0 0
        %863 = vmatprep.subr.bf16.mxu0 0
        %864 = vmatpush2.bf16.xpose.msra.mxu0 0
        %865 = vmatprep.mubr.bf16.mxu0 0
        %866 = vmatmul.mubr.bf16.gmra.mxu0 %v828
        %v867 = vpop.f32.mrf.mxu0
        %v868 = vadd.f32 0.0, %v867
        %v869 = vpop.f32.mrf.mxu0
        %v870 = vpop.f32.mrf.mxu0
        %v871 = vpop.f32.mrf.mxu0
        %872 = vdwg.mxu0
        %v874 = vsel %vm780, %v774, 0
        %v877 = vsel %vm780, %v778, 0
        %879 = vmatprep.subr.bf16.mxu0 0
        %880 = vmatpush1.bf16.xpose.msra.mxu0 0
        %881 = vmatprep.subr.bf16.mxu0 0
        %882 = vmatpush1.bf16.xpose.msra.mxu0 0
        %883 = vmatprep.subr.bf16.mxu0 0
        %884 = vmatpush1.bf16.xpose.msra.mxu0 0
        %885 = vmatprep.subr.bf16.mxu0 0
        %886 = vmatpush1.bf16.xpose.msra.mxu0 0
        %887 = vmatprep.subr.bf16.mxu0 0
        %888 = vmatpush1.bf16.xpose.msra.mxu0 0
        %889 = vmatprep.subr.bf16.mxu0 0
        %890 = vmatpush1.bf16.xpose.msra.mxu0 0
        %891 = vmatprep.subr.bf16.mxu0 0
        %892 = vmatpush1.bf16.xpose.msra.mxu0 0
        %893 = vmatprep.subr.bf16.mxu0 0
        %894 = vmatpush1.bf16.xpose.msra.mxu0 %v877
        %895 = vmatprep.subr.bf16.mxu0 0
        %896 = vmatpush2.bf16.xpose.msra.mxu0 0
        %897 = vmatprep.subr.bf16.mxu0 0
        %898 = vmatpush2.bf16.xpose.msra.mxu0 0
        %899 = vmatprep.subr.bf16.mxu0 0
        %900 = vmatpush2.bf16.xpose.msra.mxu0 0
        %901 = vmatprep.subr.bf16.mxu0 0
        %902 = vmatpush2.bf16.xpose.msra.mxu0 0
        %903 = vmatprep.subr.bf16.mxu0 0
        %904 = vmatpush2.bf16.xpose.msra.mxu0 0
        %905 = vmatprep.subr.bf16.mxu0 0
        %906 = vmatpush2.bf16.xpose.msra.mxu0 0
        %907 = vmatprep.subr.bf16.mxu0 0
        %908 = vmatpush2.bf16.xpose.msra.mxu0 0
        %909 = vmatprep.subr.bf16.mxu0 0
        %910 = vmatpush2.bf16.xpose.msra.mxu0 0
        %911 = vmatprep.mubr.bf16.mxu0 0
        %912 = vmatmul.mubr.bf16.gmra.mxu0 %v874
        %v913 = vpop.f32.mrf.mxu0
        %v914 = vadd.f32 0.0, %v913
        %v915 = vpop.f32.mrf.mxu0
        %v916 = vpop.f32.mrf.mxu0
        %v917 = vpop.f32.mrf.mxu0
        %918 = vdwg.mxu0
        %v920 = vsel %vm780, %v775, 0
        %v923 = vsel %vm780, %v779, 0
        %925 = vmatprep.subr.bf16.mxu0 0
        %926 = vmatpush1.bf16.xpose.msra.mxu0 0
        %927 = vmatprep.subr.bf16.mxu0 0
        %928 = vmatpush1.bf16.xpose.msra.mxu0 0
        %929 = vmatprep.subr.bf16.mxu0 0
        %930 = vmatpush1.bf16.xpose.msra.mxu0 0
        %931 = vmatprep.subr.bf16.mxu0 0
        %932 = vmatpush1.bf16.xpose.msra.mxu0 0
        %933 = vmatprep.subr.bf16.mxu0 0
        %934 = vmatpush1.bf16.xpose.msra.mxu0 0
        %935 = vmatprep.subr.bf16.mxu0 0
        %936 = vmatpush1.bf16.xpose.msra.mxu0 0
        %937 = vmatprep.subr.bf16.mxu0 0
        %938 = vmatpush1.bf16.xpose.msra.mxu0 0
        %939 = vmatprep.subr.bf16.mxu0 0
        %940 = vmatpush1.bf16.xpose.msra.mxu0 %v923
        %941 = vmatprep.subr.bf16.mxu0 0
        %942 = vmatpush2.bf16.xpose.msra.mxu0 0
        %943 = vmatprep.subr.bf16.mxu0 0
        %944 = vmatpush2.bf16.xpose.msra.mxu0 0
        %945 = vmatprep.subr.bf16.mxu0 0
        %946 = vmatpush2.bf16.xpose.msra.mxu0 0
        %947 = vmatprep.subr.bf16.mxu0 0
        %948 = vmatpush2.bf16.xpose.msra.mxu0 0
        %949 = vmatprep.subr.bf16.mxu0 0
        %950 = vmatpush2.bf16.xpose.msra.mxu0 0
        %951 = vmatprep.subr.bf16.mxu0 0
        %952 = vmatpush2.bf16.xpose.msra.mxu0 0
        %953 = vmatprep.subr.bf16.mxu0 0
        %954 = vmatpush2.bf16.xpose.msra.mxu0 0
        %955 = vmatprep.subr.bf16.mxu0 0
        %956 = vmatpush2.bf16.xpose.msra.mxu0 0
        %957 = vmatprep.mubr.bf16.mxu0 0
        %958 = vmatmul.mubr.bf16.gmra.mxu0 %v920
        %v959 = vpop.f32.mrf.mxu0
        %v960 = vadd.f32 0.0, %v959
        %v961 = vpop.f32.mrf.mxu0
        %v962 = vpop.f32.mrf.mxu0
        %v963 = vpop.f32.mrf.mxu0
        %964 = vdwg.mxu0
        %vm965 = vcmask 64512
        %v966 = vsel %vm965, %v822, -inf
        %967 = vmax.xlane.f32.xlu0 %v966
        %v968 = vpop.xlane.xlu0 %967
        %v969 = vsel %vm965, %v868, -inf
        %970 = vmax.xlane.f32.xlu0 %v969
        %v971 = vpop.xlane.xlu0 %970
        %v972 = vsel %vm965, %v914, -inf
        %973 = vmax.xlane.f32.xlu0 %v972
        %v974 = vpop.xlane.xlu0 %973
        %v975 = vsel %vm965, %v960, -inf
        %976 = vmax.xlane.f32.xlu0 %v975
        %v977 = vpop.xlane.xlu0 %976
        %v978 = vsub.f32 %v822, %v968
        %v979 = vsub.f32 %v868, %v971
        %v980 = vsub.f32 %v914, %v974
        %v981 = vsub.f32 %v960, %v977
        %v982 = vmul.f32 %v978, 1.442695
        %v983 = vpow.pop %v982
        %v984 = vmul.f32 %v979, 1.442695
        %v985 = vpow.pop %v984
        %v986 = vmul.f32 %v980, 1.442695
        %v987 = vpow.pop %v986
        %v988 = vmul.f32 %v981, 1.442695
        %v989 = vpow.pop %v988
        %v990 = vsel %vm965, %v983, 0.0
        %991 = vadd.xlane.f32.xlu0 %v990
        %v992 = vpop.xlane.xlu0 %991
        %v993 = vsel %vm965, %v985, 0.0
        %994 = vadd.xlane.f32.xlu0 %v993
        %v995 = vpop.xlane.xlu0 %994
        %v996 = vsel %vm965, %v987, 0.0
        %997 = vadd.xlane.f32.xlu0 %v996
        %v998 = vpop.xlane.xlu0 %997
        %v999 = vsel %vm965, %v989, 0.0
        %1000 = vadd.xlane.f32.xlu0 %v999
        %v1001 = vpop.xlane.xlu0 %1000
        %v1002 = vrcp.pop %v992
        %v1003 = vrcp.pop %v995
        %v1004 = vrcp.pop %v998
        %v1005 = vrcp.pop %v1001
        %v1006 = vmul.f32 %v983, %v1002
        %v1007 = vmul.f32 %v985, %v1003
        %v1008 = vmul.f32 %v987, %v1004
        %v1009 = vmul.f32 %v989, %v1005
        %v1010 = vpack.c.bf16 %v1006, %v1006
        %v1011 = vpack.c.bf16 %v1007, %v1007
        %v1012 = vpack.c.bf16 %v1008, %v1008
        %v1013 = vpack.c.bf16 %v1009, %v1009
        %v1014 = vpack.c.bf16 %v740, %v740
        %v1015 = vpack.c.bf16 %v764, %v764
        %v1016 = vpack.c.bf16 %v767, %v767
        %v1017 = vpack.c.bf16 %v770, %v770
        %v1019 = vsel %vm965, %v1010, 0
        %vm1021 = vcmask 1043456
        %v1023 = vsel %vm1021, %v1014, 0
        %1025 = vmatprep.subr.bf16.mxu0 0
        %1026 = vmatpush1.bf16.msra.mxu0 0
        %1027 = vmatprep.subr.bf16.mxu0 0
        %1028 = vmatpush1.bf16.msra.mxu0 0
        %1029 = vmatprep.subr.bf16.mxu0 0
        %1030 = vmatpush1.bf16.msra.mxu0 0
        %1031 = vmatprep.subr.bf16.mxu0 0
        %1032 = vmatpush1.bf16.msra.mxu0 0
        %1033 = vmatprep.subr.bf16.mxu0 0
        %1034 = vmatpush1.bf16.msra.mxu0 0
        %1035 = vmatprep.subr.bf16.mxu0 0
        %1036 = vmatpush1.bf16.msra.mxu0 0
        %1037 = vmatprep.subr.bf16.mxu0 0
        %1038 = vmatpush1.bf16.msra.mxu0 0
        %1039 = vmatprep.subr.bf16.mxu0 0
        %1040 = vmatpush1.bf16.msra.mxu0 %v1023
        %1041 = vmatprep.subr.bf16.mxu0 0
        %1042 = vmatpush2.bf16.msra.mxu0 0
        %1043 = vmatprep.subr.bf16.mxu0 0
        %1044 = vmatpush2.bf16.msra.mxu0 0
        %1045 = vmatprep.subr.bf16.mxu0 0
        %1046 = vmatpush2.bf16.msra.mxu0 0
        %1047 = vmatprep.subr.bf16.mxu0 0
        %1048 = vmatpush2.bf16.msra.mxu0 0
        %1049 = vmatprep.subr.bf16.mxu0 0
        %1050 = vmatpush2.bf16.msra.mxu0 0
        %1051 = vmatprep.subr.bf16.mxu0 0
        %1052 = vmatpush2.bf16.msra.mxu0 0
        %1053 = vmatprep.subr.bf16.mxu0 0
        %1054 = vmatpush2.bf16.msra.mxu0 0
        %1055 = vmatprep.subr.bf16.mxu0 0
        %1056 = vmatpush2.bf16.msra.mxu0 0
        %1057 = vmatprep.mubr.bf16.mxu0 0
        %1058 = vmatmul.mubr.bf16.gmra.mxu0 %v1019
        %v1059 = vpop.f32.mrf.mxu0
        %v1060 = vadd.f32 0.0, %v1059
        %v1061 = vpop.f32.mrf.mxu0
        %v1062 = vpop.f32.mrf.mxu0
        %v1063 = vpop.f32.mrf.mxu0
        %1064 = vdwg.mxu0
        %v1066 = vsel %vm965, %v1011, 0
        %v1069 = vsel %vm1021, %v1015, 0
        %1071 = vmatprep.subr.bf16.mxu0 0
        %1072 = vmatpush1.bf16.msra.mxu0 0
        %1073 = vmatprep.subr.bf16.mxu0 0
        %1074 = vmatpush1.bf16.msra.mxu0 0
        %1075 = vmatprep.subr.bf16.mxu0 0
        %1076 = vmatpush1.bf16.msra.mxu0 0
        %1077 = vmatprep.subr.bf16.mxu0 0
        %1078 = vmatpush1.bf16.msra.mxu0 0
        %1079 = vmatprep.subr.bf16.mxu0 0
        %1080 = vmatpush1.bf16.msra.mxu0 0
        %1081 = vmatprep.subr.bf16.mxu0 0
        %1082 = vmatpush1.bf16.msra.mxu0 0
        %1083 = vmatprep.subr.bf16.mxu0 0
        %1084 = vmatpush1.bf16.msra.mxu0 0
        %1085 = vmatprep.subr.bf16.mxu0 0
        %1086 = vmatpush1.bf16.msra.mxu0 %v1069
        %1087 = vmatprep.subr.bf16.mxu0 0
        %1088 = vmatpush2.bf16.msra.mxu0 0
        %1089 = vmatprep.subr.bf16.mxu0 0
        %1090 = vmatpush2.bf16.msra.mxu0 0
        %1091 = vmatprep.subr.bf16.mxu0 0
        %1092 = vmatpush2.bf16.msra.mxu0 0
        %1093 = vmatprep.subr.bf16.mxu0 0
        %1094 = vmatpush2.bf16.msra.mxu0 0
        %1095 = vmatprep.subr.bf16.mxu0 0
        %1096 = vmatpush2.bf16.msra.mxu0 0
        %1097 = vmatprep.subr.bf16.mxu0 0
        %1098 = vmatpush2.bf16.msra.mxu0 0
        %1099 = vmatprep.subr.bf16.mxu0 0
        %1100 = vmatpush2.bf16.msra.mxu0 0
        %1101 = vmatprep.subr.bf16.mxu0 0
        %1102 = vmatpush2.bf16.msra.mxu0 0
        %1103 = vmatprep.mubr.bf16.mxu0 0
        %1104 = vmatmul.mubr.bf16.gmra.mxu0 %v1066
        %v1105 = vpop.f32.mrf.mxu0
        %v1106 = vadd.f32 0.0, %v1105
        %v1107 = vpop.f32.mrf.mxu0
        %v1108 = vpop.f32.mrf.mxu0
        %v1109 = vpop.f32.mrf.mxu0
        %1110 = vdwg.mxu0
        %v1112 = vsel %vm965, %v1012, 0
        %v1115 = vsel %vm1021, %v1016, 0
        %1117 = vmatprep.subr.bf16.mxu0 0
        %1118 = vmatpush1.bf16.msra.mxu0 0
        %1119 = vmatprep.subr.bf16.mxu0 0
        %1120 = vmatpush1.bf16.msra.mxu0 0
        %1121 = vmatprep.subr.bf16.mxu0 0
        %1122 = vmatpush1.bf16.msra.mxu0 0
        %1123 = vmatprep.subr.bf16.mxu0 0
        %1124 = vmatpush1.bf16.msra.mxu0 0
        %1125 = vmatprep.subr.bf16.mxu0 0
        %1126 = vmatpush1.bf16.msra.mxu0 0
        %1127 = vmatprep.subr.bf16.mxu0 0
        %1128 = vmatpush1.bf16.msra.mxu0 0
        %1129 = vmatprep.subr.bf16.mxu0 0
        %1130 = vmatpush1.bf16.msra.mxu0 0
        %1131 = vmatprep.subr.bf16.mxu0 0
        %1132 = vmatpush1.bf16.msra.mxu0 %v1115
        %1133 = vmatprep.subr.bf16.mxu0 0
        %1134 = vmatpush2.bf16.msra.mxu0 0
        %1135 = vmatprep.subr.bf16.mxu0 0
        %1136 = vmatpush2.bf16.msra.mxu0 0
        %1137 = vmatprep.subr.bf16.mxu0 0
        %1138 = vmatpush2.bf16.msra.mxu0 0
        %1139 = vmatprep.subr.bf16.mxu0 0
        %1140 = vmatpush2.bf16.msra.mxu0 0
        %1141 = vmatprep.subr.bf16.mxu0 0
        %1142 = vmatpush2.bf16.msra.mxu0 0
        %1143 = vmatprep.subr.bf16.mxu0 0
        %1144 = vmatpush2.bf16.msra.mxu0 0
        %1145 = vmatprep.subr.bf16.mxu0 0
        %1146 = vmatpush2.bf16.msra.mxu0 0
        %1147 = vmatprep.subr.bf16.mxu0 0
        %1148 = vmatpush2.bf16.msra.mxu0 0
        %1149 = vmatprep.mubr.bf16.mxu0 0
        %1150 = vmatmul.mubr.bf16.gmra.mxu0 %v1112
        %v1151 = vpop.f32.mrf.mxu0
        %v1152 = vadd.f32 0.0, %v1151
        %v1153 = vpop.f32.mrf.mxu0
        %v1154 = vpop.f32.mrf.mxu0
        %v1155 = vpop.f32.mrf.mxu0
        %1156 = vdwg.mxu0
        %v1158 = vsel %vm965, %v1013, 0
        %v1161 = vsel %vm1021, %v1017, 0
        %1163 = vmatprep.subr.bf16.mxu0 0
        %1164 = vmatpush1.bf16.msra.mxu0 0
        %1165 = vmatprep.subr.bf16.mxu0 0
        %1166 = vmatpush1.bf16.msra.mxu0 0
        %1167 = vmatprep.subr.bf16.mxu0 0
        %1168 = vmatpush1.bf16.msra.mxu0 0
        %1169 = vmatprep.subr.bf16.mxu0 0
        %1170 = vmatpush1.bf16.msra.mxu0 0
        %1171 = vmatprep.subr.bf16.mxu0 0
        %1172 = vmatpush1.bf16.msra.mxu0 0
        %1173 = vmatprep.subr.bf16.mxu0 0
        %1174 = vmatpush1.bf16.msra.mxu0 0
        %1175 = vmatprep.subr.bf16.mxu0 0
        %1176 = vmatpush1.bf16.msra.mxu0 0
        %1177 = vmatprep.subr.bf16.mxu0 0
        %1178 = vmatpush1.bf16.msra.mxu0 %v1161
        %1179 = vmatprep.subr.bf16.mxu0 0
        %1180 = vmatpush2.bf16.msra.mxu0 0
        %1181 = vmatprep.subr.bf16.mxu0 0
        %1182 = vmatpush2.bf16.msra.mxu0 0
        %1183 = vmatprep.subr.bf16.mxu0 0
        %1184 = vmatpush2.bf16.msra.mxu0 0
        %1185 = vmatprep.subr.bf16.mxu0 0
        %1186 = vmatpush2.bf16.msra.mxu0 0
        %1187 = vmatprep.subr.bf16.mxu0 0
        %1188 = vmatpush2.bf16.msra.mxu0 0
        %1189 = vmatprep.subr.bf16.mxu0 0
        %1190 = vmatpush2.bf16.msra.mxu0 0
        %1191 = vmatprep.subr.bf16.mxu0 0
        %1192 = vmatpush2.bf16.msra.mxu0 0
        %1193 = vmatprep.subr.bf16.mxu0 0
        %1194 = vmatpush2.bf16.msra.mxu0 0
        %1195 = vmatprep.mubr.bf16.mxu0 0
        %1196 = vmatmul.mubr.bf16.gmra.mxu0 %v1158
        %v1197 = vpop.f32.mrf.mxu0
        %v1198 = vadd.f32 0.0, %v1197
        %v1199 = vpop.f32.mrf.mxu0
        %v1200 = vpop.f32.mrf.mxu0
        %v1201 = vpop.f32.mrf.mxu0
        %1202 = vdwg.mxu0
        %1204 = vrot.lane.b32.xlu0 %v1106, 32
        %v1205 = vpop.permute.xlu0 %1204
        %1208 = vrot.lane.b32.xlu0 %v1152, 64
        %v1209 = vpop.permute.xlu0 %1208
        %1212 = vrot.lane.b32.xlu0 %v1198, 96
        %v1213 = vpop.permute.xlu0 %1212
        %v1215 = vsel %vm780, %v1060, %v1205
        %vm1216 = vcmask 523264
        %v1217 = vsel %vm1216, %v1215, %v1209
        %vm1218 = vcmask 785408
        %v1219 = vsel %vm1218, %v1217, %v1213
        %1221 = vrot.lane.b32.xlu0 %v729, 96
        %v1222 = vpop.permute.xlu0 %1221
        %1224 = vrot.lane.b32.xlu0 %v729, 64
        %v1225 = vpop.permute.xlu0 %1224
        %1227 = vrot.lane.b32.xlu0 %v729, 32
        %v1228 = vpop.permute.xlu0 %1227
        %1231 = vrot.lane.b32.xlu0 %v735, 96
        %v1232 = vpop.permute.xlu0 %1231
        %1234 = vrot.lane.b32.xlu0 %v735, 64
        %v1235 = vpop.permute.xlu0 %1234
        %1237 = vrot.lane.b32.xlu0 %v735, 32
        %v1238 = vpop.permute.xlu0 %1237
        %1241 = vrot.lane.b32.xlu0 %v741, 96
        %v1242 = vpop.permute.xlu0 %1241
        %1244 = vrot.lane.b32.xlu0 %v741, 64
        %v1245 = vpop.permute.xlu0 %1244
        %1247 = vrot.lane.b32.xlu0 %v741, 32
        %v1248 = vpop.permute.xlu0 %1247
        %v1250 = vpack.c.bf16 %v729, %v729
        %v1251 = vpack.c.bf16 %v1222, %v1222
        %v1252 = vpack.c.bf16 %v1225, %v1225
        %v1253 = vpack.c.bf16 %v1228, %v1228
        %v1254 = vpack.c.bf16 %v735, %v735
        %v1255 = vpack.c.bf16 %v1232, %v1232
        %v1256 = vpack.c.bf16 %v1235, %v1235
        %v1257 = vpack.c.bf16 %v1238, %v1238
        %v1259 = vsel %vm780, %v1250, 0
        %v1262 = vsel %vm780, %v1254, 0
        %1264 = vmatprep.subr.bf16.mxu0 0
        %1265 = vmatpush1.bf16.xpose.msra.mxu0 0
        %1266 = vmatprep.subr.bf16.mxu0 0
        %1267 = vmatpush1.bf16.xpose.msra.mxu0 0
        %1268 = vmatprep.subr.bf16.mxu0 0
        %1269 = vmatpush1.bf16.xpose.msra.mxu0 0
        %1270 = vmatprep.subr.bf16.mxu0 0
        %1271 = vmatpush1.bf16.xpose.msra.mxu0 0
        %1272 = vmatprep.subr.bf16.mxu0 0
        %1273 = vmatpush1.bf16.xpose.msra.mxu0 0
        %1274 = vmatprep.subr.bf16.mxu0 0
        %1275 = vmatpush1.bf16.xpose.msra.mxu0 0
        %1276 = vmatprep.subr.bf16.mxu0 0
        %1277 = vmatpush1.bf16.xpose.msra.mxu0 0
        %1278 = vmatprep.subr.bf16.mxu0 0
        %1279 = vmatpush1.bf16.xpose.msra.mxu0 %v1262
        %1280 = vmatprep.subr.bf16.mxu0 0
        %1281 = vmatpush2.bf16.xpose.msra.mxu0 0
        %1282 = vmatprep.subr.bf16.mxu0 0
        %1283 = vmatpush2.bf16.xpose.msra.mxu0 0
        %1284 = vmatprep.subr.bf16.mxu0 0
        %1285 = vmatpush2.bf16.xpose.msra.mxu0 0
        %1286 = vmatprep.subr.bf16.mxu0 0
        %1287 = vmatpush2.bf16.xpose.msra.mxu0 0
        %1288 = vmatprep.subr.bf16.mxu0 0
        %1289 = vmatpush2.bf16.xpose.msra.mxu0 0
        %1290 = vmatprep.subr.bf16.mxu0 0
        %1291 = vmatpush2.bf16.xpose.msra.mxu0 0
        %1292 = vmatprep.subr.bf16.mxu0 0
        %1293 = vmatpush2.bf16.xpose.msra.mxu0 0
        %1294 = vmatprep.subr.bf16.mxu0 0
        %1295 = vmatpush2.bf16.xpose.msra.mxu0 0
        %1296 = vmatprep.mubr.bf16.mxu0 0
        %1297 = vmatmul.mubr.bf16.gmra.mxu0 %v1259
        %v1298 = vpop.f32.mrf.mxu0
        %v1299 = vadd.f32 0.0, %v1298
        %v1300 = vpop.f32.mrf.mxu0
        %v1301 = vpop.f32.mrf.mxu0
        %v1302 = vpop.f32.mrf.mxu0
        %1303 = vdwg.mxu0
        %v1305 = vsel %vm780, %v1251, 0
        %v1308 = vsel %vm780, %v1255, 0
        %1310 = vmatprep.subr.bf16.mxu0 0
        %1311 = vmatpush1.bf16.xpose.msra.mxu0 0
        %1312 = vmatprep.subr.bf16.mxu0 0
        %1313 = vmatpush1.bf16.xpose.msra.mxu0 0
        %1314 = vmatprep.subr.bf16.mxu0 0
        %1315 = vmatpush1.bf16.xpose.msra.mxu0 0
        %1316 = vmatprep.subr.bf16.mxu0 0
        %1317 = vmatpush1.bf16.xpose.msra.mxu0 0
        %1318 = vmatprep.subr.bf16.mxu0 0
        %1319 = vmatpush1.bf16.xpose.msra.mxu0 0
        %1320 = vmatprep.subr.bf16.mxu0 0
        %1321 = vmatpush1.bf16.xpose.msra.mxu0 0
        %1322 = vmatprep.subr.bf16.mxu0 0
        %1323 = vmatpush1.bf16.xpose.msra.mxu0 0
        %1324 = vmatprep.subr.bf16.mxu0 0
        %1325 = vmatpush1.bf16.xpose.msra.mxu0 %v1308
        %1326 = vmatprep.subr.bf16.mxu0 0
        %1327 = vmatpush2.bf16.xpose.msra.mxu0 0
        %1328 = vmatprep.subr.bf16.mxu0 0
        %1329 = vmatpush2.bf16.xpose.msra.mxu0 0
        %1330 = vmatprep.subr.bf16.mxu0 0
        %1331 = vmatpush2.bf16.xpose.msra.mxu0 0
        %1332 = vmatprep.subr.bf16.mxu0 0
        %1333 = vmatpush2.bf16.xpose.msra.mxu0 0
        %1334 = vmatprep.subr.bf16.mxu0 0
        %1335 = vmatpush2.bf16.xpose.msra.mxu0 0
        %1336 = vmatprep.subr.bf16.mxu0 0
        %1337 = vmatpush2.bf16.xpose.msra.mxu0 0
        %1338 = vmatprep.subr.bf16.mxu0 0
        %1339 = vmatpush2.bf16.xpose.msra.mxu0 0
        %1340 = vmatprep.subr.bf16.mxu0 0
        %1341 = vmatpush2.bf16.xpose.msra.mxu0 0
        %1342 = vmatprep.mubr.bf16.mxu0 0
        %1343 = vmatmul.mubr.bf16.gmra.mxu0 %v1305
        %v1344 = vpop.f32.mrf.mxu0
        %v1345 = vadd.f32 0.0, %v1344
        %v1346 = vpop.f32.mrf.mxu0
        %v1347 = vpop.f32.mrf.mxu0
        %v1348 = vpop.f32.mrf.mxu0
        %1349 = vdwg.mxu0
        %v1351 = vsel %vm780, %v1252, 0
        %v1354 = vsel %vm780, %v1256, 0
        %1356 = vmatprep.subr.bf16.mxu0 0
        %1357 = vmatpush1.bf16.xpose.msra.mxu0 0
        %1358 = vmatprep.subr.bf16.mxu0 0
        %1359 = vmatpush1.bf16.xpose.msra.mxu0 0
        %1360 = vmatprep.subr.bf16.mxu0 0
        %1361 = vmatpush1.bf16.xpose.msra.mxu0 0
        %1362 = vmatprep.subr.bf16.mxu0 0
        %1363 = vmatpush1.bf16.xpose.msra.mxu0 0
        %1364 = vmatprep.subr.bf16.mxu0 0
        %1365 = vmatpush1.bf16.xpose.msra.mxu0 0
        %1366 = vmatprep.subr.bf16.mxu0 0
        %1367 = vmatpush1.bf16.xpose.msra.mxu0 0
        %1368 = vmatprep.subr.bf16.mxu0 0
        %1369 = vmatpush1.bf16.xpose.msra.mxu0 0
        %1370 = vmatprep.subr.bf16.mxu0 0
        %1371 = vmatpush1.bf16.xpose.msra.mxu0 %v1354
        %1372 = vmatprep.subr.bf16.mxu0 0
        %1373 = vmatpush2.bf16.xpose.msra.mxu0 0
        %1374 = vmatprep.subr.bf16.mxu0 0
        %1375 = vmatpush2.bf16.xpose.msra.mxu0 0
        %1376 = vmatprep.subr.bf16.mxu0 0
        %1377 = vmatpush2.bf16.xpose.msra.mxu0 0
        %1378 = vmatprep.subr.bf16.mxu0 0
        %1379 = vmatpush2.bf16.xpose.msra.mxu0 0
        %1380 = vmatprep.subr.bf16.mxu0 0
        %1381 = vmatpush2.bf16.xpose.msra.mxu0 0
        %1382 = vmatprep.subr.bf16.mxu0 0
        %1383 = vmatpush2.bf16.xpose.msra.mxu0 0
        %1384 = vmatprep.subr.bf16.mxu0 0
        %1385 = vmatpush2.bf16.xpose.msra.mxu0 0
        %1386 = vmatprep.subr.bf16.mxu0 0
        %1387 = vmatpush2.bf16.xpose.msra.mxu0 0
        %1388 = vmatprep.mubr.bf16.mxu0 0
        %1389 = vmatmul.mubr.bf16.gmra.mxu0 %v1351
        %v1390 = vpop.f32.mrf.mxu0
        %v1391 = vadd.f32 0.0, %v1390
        %v1392 = vpop.f32.mrf.mxu0
        %v1393 = vpop.f32.mrf.mxu0
        %v1394 = vpop.f32.mrf.mxu0
        %1395 = vdwg.mxu0
        %v1397 = vsel %vm780, %v1253, 0
        %v1400 = vsel %vm780, %v1257, 0
        %1402 = vmatprep.subr.bf16.mxu0 0
        %1403 = vmatpush1.bf16.xpose.msra.mxu0 0
        %1404 = vmatprep.subr.bf16.mxu0 0
        %1405 = vmatpush1.bf16.xpose.msra.mxu0 0
        %1406 = vmatprep.subr.bf16.mxu0 0
        %1407 = vmatpush1.bf16.xpose.msra.mxu0 0
        %1408 = vmatprep.subr.bf16.mxu0 0
        %1409 = vmatpush1.bf16.xpose.msra.mxu0 0
        %1410 = vmatprep.subr.bf16.mxu0 0
        %1411 = vmatpush1.bf16.xpose.msra.mxu0 0
        %1412 = vmatprep.subr.bf16.mxu0 0
        %1413 = vmatpush1.bf16.xpose.msra.mxu0 0
        %1414 = vmatprep.subr.bf16.mxu0 0
        %1415 = vmatpush1.bf16.xpose.msra.mxu0 0
        %1416 = vmatprep.subr.bf16.mxu0 0
        %1417 = vmatpush1.bf16.xpose.msra.mxu0 %v1400
        %1418 = vmatprep.subr.bf16.mxu0 0
        %1419 = vmatpush2.bf16.xpose.msra.mxu0 0
        %1420 = vmatprep.subr.bf16.mxu0 0
        %1421 = vmatpush2.bf16.xpose.msra.mxu0 0
        %1422 = vmatprep.subr.bf16.mxu0 0
        %1423 = vmatpush2.bf16.xpose.msra.mxu0 0
        %1424 = vmatprep.subr.bf16.mxu0 0
        %1425 = vmatpush2.bf16.xpose.msra.mxu0 0
        %1426 = vmatprep.subr.bf16.mxu0 0
        %1427 = vmatpush2.bf16.xpose.msra.mxu0 0
        %1428 = vmatprep.subr.bf16.mxu0 0
        %1429 = vmatpush2.bf16.xpose.msra.mxu0 0
        %1430 = vmatprep.subr.bf16.mxu0 0
        %1431 = vmatpush2.bf16.xpose.msra.mxu0 0
        %1432 = vmatprep.subr.bf16.mxu0 0
        %1433 = vmatpush2.bf16.xpose.msra.mxu0 0
        %1434 = vmatprep.mubr.bf16.mxu0 0
        %1435 = vmatmul.mubr.bf16.gmra.mxu0 %v1397
        %v1436 = vpop.f32.mrf.mxu0
        %v1437 = vadd.f32 0.0, %v1436
        %v1438 = vpop.f32.mrf.mxu0
        %v1439 = vpop.f32.mrf.mxu0
        %v1440 = vpop.f32.mrf.mxu0
        %1441 = vdwg.mxu0
        %v1442 = vsel %vm965, %v1299, -inf
        %1443 = vmax.xlane.f32.xlu0 %v1442
        %v1444 = vpop.xlane.xlu0 %1443
        %v1445 = vsel %vm965, %v1345, -inf
        %1446 = vmax.xlane.f32.xlu0 %v1445
        %v1447 = vpop.xlane.xlu0 %1446
        %v1448 = vsel %vm965, %v1391, -inf
        %1449 = vmax.xlane.f32.xlu0 %v1448
        %v1450 = vpop.xlane.xlu0 %1449
        %v1451 = vsel %vm965, %v1437, -inf
        %1452 = vmax.xlane.f32.xlu0 %v1451
        %v1453 = vpop.xlane.xlu0 %1452
        %v1454 = vsub.f32 %v1299, %v1444
        %v1455 = vsub.f32 %v1345, %v1447
        %v1456 = vsub.f32 %v1391, %v1450
        %v1457 = vsub.f32 %v1437, %v1453
        %v1458 = vmul.f32 %v1454, 1.442695
        %v1459 = vpow.pop %v1458
        %v1460 = vmul.f32 %v1455, 1.442695
        %v1461 = vpow.pop %v1460
        %v1462 = vmul.f32 %v1456, 1.442695
        %v1463 = vpow.pop %v1462
        %v1464 = vmul.f32 %v1457, 1.442695
        %v1465 = vpow.pop %v1464
        %v1466 = vsel %vm965, %v1459, 0.0
        %1467 = vadd.xlane.f32.xlu0 %v1466
        %v1468 = vpop.xlane.xlu0 %1467
        %v1469 = vsel %vm965, %v1461, 0.0
        %1470 = vadd.xlane.f32.xlu0 %v1469
        %v1471 = vpop.xlane.xlu0 %1470
        %v1472 = vsel %vm965, %v1463, 0.0
        %1473 = vadd.xlane.f32.xlu0 %v1472
        %v1474 = vpop.xlane.xlu0 %1473
        %v1475 = vsel %vm965, %v1465, 0.0
        %1476 = vadd.xlane.f32.xlu0 %v1475
        %v1477 = vpop.xlane.xlu0 %1476
        %v1478 = vrcp.pop %v1468
        %v1479 = vrcp.pop %v1471
        %v1480 = vrcp.pop %v1474
        %v1481 = vrcp.pop %v1477
        %v1482 = vmul.f32 %v1459, %v1478
        %v1483 = vmul.f32 %v1461, %v1479
        %v1484 = vmul.f32 %v1463, %v1480
        %v1485 = vmul.f32 %v1465, %v1481
        %v1486 = vpack.c.bf16 %v1482, %v1482
        %v1487 = vpack.c.bf16 %v1483, %v1483
        %v1488 = vpack.c.bf16 %v1484, %v1484
        %v1489 = vpack.c.bf16 %v1485, %v1485
        %v1490 = vpack.c.bf16 %v741, %v741
        %v1491 = vpack.c.bf16 %v1242, %v1242
        %v1492 = vpack.c.bf16 %v1245, %v1245
        %v1493 = vpack.c.bf16 %v1248, %v1248
        %v1495 = vsel %vm965, %v1486, 0
        %v1498 = vsel %vm1021, %v1490, 0
        %1500 = vmatprep.subr.bf16.mxu0 0
        %1501 = vmatpush1.bf16.msra.mxu0 0
        %1502 = vmatprep.subr.bf16.mxu0 0
        %1503 = vmatpush1.bf16.msra.mxu0 0
        %1504 = vmatprep.subr.bf16.mxu0 0
        %1505 = vmatpush1.bf16.msra.mxu0 0
        %1506 = vmatprep.subr.bf16.mxu0 0
        %1507 = vmatpush1.bf16.msra.mxu0 0
        %1508 = vmatprep.subr.bf16.mxu0 0
        %1509 = vmatpush1.bf16.msra.mxu0 0
        %1510 = vmatprep.subr.bf16.mxu0 0
        %1511 = vmatpush1.bf16.msra.mxu0 0
        %1512 = vmatprep.subr.bf16.mxu0 0
        %1513 = vmatpush1.bf16.msra.mxu0 0
        %1514 = vmatprep.subr.bf16.mxu0 0
        %1515 = vmatpush1.bf16.msra.mxu0 %v1498
        %1516 = vmatprep.subr.bf16.mxu0 0
        %1517 = vmatpush2.bf16.msra.mxu0 0
        %1518 = vmatprep.subr.bf16.mxu0 0
        %1519 = vmatpush2.bf16.msra.mxu0 0
        %1520 = vmatprep.subr.bf16.mxu0 0
        %1521 = vmatpush2.bf16.msra.mxu0 0
        %1522 = vmatprep.subr.bf16.mxu0 0
        %1523 = vmatpush2.bf16.msra.mxu0 0
        %1524 = vmatprep.subr.bf16.mxu0 0
        %1525 = vmatpush2.bf16.msra.mxu0 0
        %1526 = vmatprep.subr.bf16.mxu0 0
        %1527 = vmatpush2.bf16.msra.mxu0 0
        %1528 = vmatprep.subr.bf16.mxu0 0
        %1529 = vmatpush2.bf16.msra.mxu0 0
        %1530 = vmatprep.subr.bf16.mxu0 0
        %1531 = vmatpush2.bf16.msra.mxu0 0
        %1532 = vmatprep.mubr.bf16.mxu0 0
        %1533 = vmatmul.mubr.bf16.gmra.mxu0 %v1495
        %v1534 = vpop.f32.mrf.mxu0
        %v1535 = vadd.f32 0.0, %v1534
        %v1536 = vpop.f32.mrf.mxu0
        %v1537 = vpop.f32.mrf.mxu0
        %v1538 = vpop.f32.mrf.mxu0
        %1539 = vdwg.mxu0
        %v1541 = vsel %vm965, %v1487, 0
        %v1544 = vsel %vm1021, %v1491, 0
        %1546 = vmatprep.subr.bf16.mxu0 0
        %1547 = vmatpush1.bf16.msra.mxu0 0
        %1548 = vmatprep.subr.bf16.mxu0 0
        %1549 = vmatpush1.bf16.msra.mxu0 0
        %1550 = vmatprep.subr.bf16.mxu0 0
        %1551 = vmatpush1.bf16.msra.mxu0 0
        %1552 = vmatprep.subr.bf16.mxu0 0
        %1553 = vmatpush1.bf16.msra.mxu0 0
        %1554 = vmatprep.subr.bf16.mxu0 0
        %1555 = vmatpush1.bf16.msra.mxu0 0
        %1556 = vmatprep.subr.bf16.mxu0 0
        %1557 = vmatpush1.bf16.msra.mxu0 0
        %1558 = vmatprep.subr.bf16.mxu0 0
        %1559 = vmatpush1.bf16.msra.mxu0 0
        %1560 = vmatprep.subr.bf16.mxu0 0
        %1561 = vmatpush1.bf16.msra.mxu0 %v1544
        %1562 = vmatprep.subr.bf16.mxu0 0
        %1563 = vmatpush2.bf16.msra.mxu0 0
        %1564 = vmatprep.subr.bf16.mxu0 0
        %1565 = vmatpush2.bf16.msra.mxu0 0
        %1566 = vmatprep.subr.bf16.mxu0 0
        %1567 = vmatpush2.bf16.msra.mxu0 0
        %1568 = vmatprep.subr.bf16.mxu0 0
        %1569 = vmatpush2.bf16.msra.mxu0 0
        %1570 = vmatprep.subr.bf16.mxu0 0
        %1571 = vmatpush2.bf16.msra.mxu0 0
        %1572 = vmatprep.subr.bf16.mxu0 0
        %1573 = vmatpush2.bf16.msra.mxu0 0
        %1574 = vmatprep.subr.bf16.mxu0 0
        %1575 = vmatpush2.bf16.msra.mxu0 0
        %1576 = vmatprep.subr.bf16.mxu0 0
        %1577 = vmatpush2.bf16.msra.mxu0 0
        %1578 = vmatprep.mubr.bf16.mxu0 0
        %1579 = vmatmul.mubr.bf16.gmra.mxu0 %v1541
        %v1580 = vpop.f32.mrf.mxu0
        %v1581 = vadd.f32 0.0, %v1580
        %v1582 = vpop.f32.mrf.mxu0
        %v1583 = vpop.f32.mrf.mxu0
        %v1584 = vpop.f32.mrf.mxu0
        %1585 = vdwg.mxu0
        %v1587 = vsel %vm965, %v1488, 0
        %v1590 = vsel %vm1021, %v1492, 0
        %1592 = vmatprep.subr.bf16.mxu0 0
        %1593 = vmatpush1.bf16.msra.mxu0 0
        %1594 = vmatprep.subr.bf16.mxu0 0
        %1595 = vmatpush1.bf16.msra.mxu0 0
        %1596 = vmatprep.subr.bf16.mxu0 0
        %1597 = vmatpush1.bf16.msra.mxu0 0
        %1598 = vmatprep.subr.bf16.mxu0 0
        %1599 = vmatpush1.bf16.msra.mxu0 0
        %1600 = vmatprep.subr.bf16.mxu0 0
        %1601 = vmatpush1.bf16.msra.mxu0 0
        %1602 = vmatprep.subr.bf16.mxu0 0
        %1603 = vmatpush1.bf16.msra.mxu0 0
        %1604 = vmatprep.subr.bf16.mxu0 0
        %1605 = vmatpush1.bf16.msra.mxu0 0
        %1606 = vmatprep.subr.bf16.mxu0 0
        %1607 = vmatpush1.bf16.msra.mxu0 %v1590
        %1608 = vmatprep.subr.bf16.mxu0 0
        %1609 = vmatpush2.bf16.msra.mxu0 0
        %1610 = vmatprep.subr.bf16.mxu0 0
        %1611 = vmatpush2.bf16.msra.mxu0 0
        %1612 = vmatprep.subr.bf16.mxu0 0
        %1613 = vmatpush2.bf16.msra.mxu0 0
        %1614 = vmatprep.subr.bf16.mxu0 0
        %1615 = vmatpush2.bf16.msra.mxu0 0
        %1616 = vmatprep.subr.bf16.mxu0 0
        %1617 = vmatpush2.bf16.msra.mxu0 0
        %1618 = vmatprep.subr.bf16.mxu0 0
        %1619 = vmatpush2.bf16.msra.mxu0 0
        %1620 = vmatprep.subr.bf16.mxu0 0
        %1621 = vmatpush2.bf16.msra.mxu0 0
        %1622 = vmatprep.subr.bf16.mxu0 0
        %1623 = vmatpush2.bf16.msra.mxu0 0
        %1624 = vmatprep.mubr.bf16.mxu0 0
        %1625 = vmatmul.mubr.bf16.gmra.mxu0 %v1587
        %v1626 = vpop.f32.mrf.mxu0
        %v1627 = vadd.f32 0.0, %v1626
        %v1628 = vpop.f32.mrf.mxu0
        %v1629 = vpop.f32.mrf.mxu0
        %v1630 = vpop.f32.mrf.mxu0
        %1631 = vdwg.mxu0
        %v1633 = vsel %vm965, %v1489, 0
        %v1636 = vsel %vm1021, %v1493, 0
        %1638 = vmatprep.subr.bf16.mxu0 0
        %1639 = vmatpush1.bf16.msra.mxu0 0
        %1640 = vmatprep.subr.bf16.mxu0 0
        %1641 = vmatpush1.bf16.msra.mxu0 0
        %1642 = vmatprep.subr.bf16.mxu0 0
        %1643 = vmatpush1.bf16.msra.mxu0 0
        %1644 = vmatprep.subr.bf16.mxu0 0
        %1645 = vmatpush1.bf16.msra.mxu0 0
        %1646 = vmatprep.subr.bf16.mxu0 0
        %1647 = vmatpush1.bf16.msra.mxu0 0
        %1648 = vmatprep.subr.bf16.mxu0 0
        %1649 = vmatpush1.bf16.msra.mxu0 0
        %1650 = vmatprep.subr.bf16.mxu0 0
        %1651 = vmatpush1.bf16.msra.mxu0 0
        %1652 = vmatprep.subr.bf16.mxu0 0
        %1653 = vmatpush1.bf16.msra.mxu0 %v1636
        %1654 = vmatprep.subr.bf16.mxu0 0
        %1655 = vmatpush2.bf16.msra.mxu0 0
        %1656 = vmatprep.subr.bf16.mxu0 0
        %1657 = vmatpush2.bf16.msra.mxu0 0
        %1658 = vmatprep.subr.bf16.mxu0 0
        %1659 = vmatpush2.bf16.msra.mxu0 0
        %1660 = vmatprep.subr.bf16.mxu0 0
        %1661 = vmatpush2.bf16.msra.mxu0 0
        %1662 = vmatprep.subr.bf16.mxu0 0
        %1663 = vmatpush2.bf16.msra.mxu0 0
        %1664 = vmatprep.subr.bf16.mxu0 0
        %1665 = vmatpush2.bf16.msra.mxu0 0
        %1666 = vmatprep.subr.bf16.mxu0 0
        %1667 = vmatpush2.bf16.msra.mxu0 0
        %1668 = vmatprep.subr.bf16.mxu0 0
        %1669 = vmatpush2.bf16.msra.mxu0 0
        %1670 = vmatprep.mubr.bf16.mxu0 0
        %1671 = vmatmul.mubr.bf16.gmra.mxu0 %v1633
        %v1672 = vpop.f32.mrf.mxu0
        %v1673 = vadd.f32 0.0, %v1672
        %v1674 = vpop.f32.mrf.mxu0
        %v1675 = vpop.f32.mrf.mxu0
        %v1676 = vpop.f32.mrf.mxu0
        %1677 = vdwg.mxu0
        %1679 = vrot.lane.b32.xlu0 %v1581, 32
        %v1680 = vpop.permute.xlu0 %1679
        %1683 = vrot.lane.b32.xlu0 %v1627, 64
        %v1684 = vpop.permute.xlu0 %1683
        %1687 = vrot.lane.b32.xlu0 %v1673, 96
        %v1688 = vpop.permute.xlu0 %1687
        %v1690 = vsel %vm780, %v1535, %v1680
        %v1691 = vsel %vm1216, %v1690, %v1684
        %v1692 = vsel %vm1218, %v1691, %v1688
        %v1693 = vpack.c.bf16 %v1692, %v1219
        %v1694 = vld [vmem:[%s449] sm:$0xf]
        %v1695 = vld [vmem:[%s449 + $0x4] sm:$0xf]
        %v1696 = vld [vmem:[%s449 + $0x8] sm:$0xf]
        %v1697 = vld [vmem:[%s449 + $0xc] sm:$0xf]
        %v1698 = vld [vmem:[%s449 + $0x10] sm:$0xf]
        %v1699 = vld [vmem:[%s449 + $0x14] sm:$0xf]
        %v1700 = vld [vmem:[%s449 + $0x18] sm:$0xf]
        %v1701 = vld [vmem:[%s449 + $0x1c] sm:$0xf]
        %v1702 = vld [vmem:[%s449 + $0x20] sm:$0xf]
        %v1703 = vld [vmem:[%s449 + $0x24] sm:$0xf]
        %v1704 = vld [vmem:[%s449 + $0x28] sm:$0xf]
        %v1705 = vld [vmem:[%s449 + $0x2c] sm:$0xf]
        %v1706 = vld [vmem:[%s449 + $0x30] sm:$0xf]
        %v1707 = vld [vmem:[%s449 + $0x34] sm:$0xf]
        %v1708 = vld [vmem:[%s449 + $0x38] sm:$0xf]
        %v1709 = vld [vmem:[%s449 + $0x3c] sm:$0xf]
        %v1710 = vlaneseq
        %v1711 = vshrl.u32 %v1710, 7
        %v1712 = vsub.s32 3, %v1711
        %v1713 = vrot.slane %v477, %v1712
        %v1730 = vunpack.c.l.b16 %v1694
        %v1731 = vunpack.c.l.b16 %v1695
        %v1732 = vunpack.c.l.b16 %v1696
        %v1733 = vunpack.c.l.b16 %v1697
        %v1734 = vunpack.c.l.b16 %v1698
        %v1735 = vunpack.c.l.b16 %v1699
        %v1736 = vunpack.c.l.b16 %v1700
        %v1737 = vunpack.c.l.b16 %v1701
        %v1738 = vunpack.c.l.b16 %v1702
        %v1739 = vunpack.c.l.b16 %v1703
        %v1740 = vunpack.c.l.b16 %v1704
        %v1741 = vunpack.c.l.b16 %v1705
        %v1742 = vunpack.c.l.b16 %v1706
        %v1743 = vunpack.c.l.b16 %v1707
        %v1744 = vunpack.c.l.b16 %v1708
        %v1745 = vunpack.c.l.b16 %v1709
        %v1746 = vpack.c.b16 %v1731, %v1730
        %v1747 = vpack.c.b16 %v1733, %v1732
        %v1748 = vpack.c.b16 %v1735, %v1734
        %v1749 = vpack.c.b16 %v1737, %v1736
        %v1750 = vpack.c.b16 %v1739, %v1738
        %v1751 = vpack.c.b16 %v1741, %v1740
        %v1752 = vpack.c.b16 %v1743, %v1742
        %v1753 = vpack.c.b16 %v1745, %v1744
        %1762 = vmatprep.subr.bf16.mxu0 0
        %1763 = vmatpush1.bf16.msra.mxu0 %v1753
        %1764 = vmatprep.subr.bf16.mxu0 0
        %1765 = vmatpush1.bf16.msra.mxu0 %v1752
        %1766 = vmatprep.subr.bf16.mxu0 0
        %1767 = vmatpush1.bf16.msra.mxu0 %v1751
        %1768 = vmatprep.subr.bf16.mxu0 0
        %1769 = vmatpush1.bf16.msra.mxu0 %v1750
        %1770 = vmatprep.subr.bf16.mxu0 0
        %1771 = vmatpush1.bf16.msra.mxu0 %v1749
        %1772 = vmatprep.subr.bf16.mxu0 0
        %1773 = vmatpush1.bf16.msra.mxu0 %v1748
        %1774 = vmatprep.subr.bf16.mxu0 0
        %1775 = vmatpush1.bf16.msra.mxu0 %v1747
        %1776 = vmatprep.subr.bf16.mxu0 0
        %1777 = vmatpush1.bf16.msra.mxu0 %v1746
        %1778 = vmatprep.subr.bf16.mxu0 0
        %1779 = vmatpush2.bf16.msra.mxu0 0
        %1780 = vmatprep.subr.bf16.mxu0 0
        %1781 = vmatpush2.bf16.msra.mxu0 0
        %1782 = vmatprep.subr.bf16.mxu0 0
        %1783 = vmatpush2.bf16.msra.mxu0 0
        %1784 = vmatprep.subr.bf16.mxu0 0
        %1785 = vmatpush2.bf16.msra.mxu0 0
        %1786 = vmatprep.subr.bf16.mxu0 0
        %1787 = vmatpush2.bf16.msra.mxu0 0
        %1788 = vmatprep.subr.bf16.mxu0 0
        %1789 = vmatpush2.bf16.msra.mxu0 0
        %1790 = vmatprep.subr.bf16.mxu0 0
        %1791 = vmatpush2.bf16.msra.mxu0 0
        %1792 = vmatprep.subr.bf16.mxu0 0
        %1793 = vmatpush2.bf16.msra.mxu0 0
        %1794 = vmatprep.mubr.bf16.mxu0 0
        %1795 = vmatmul.mubr.bf16.gmra.mxu0 %v1693
        %v1796 = vpop.f32.mrf.mxu0
        %v1797 = vadd.f32 %v1713, %v1796
        %v1798 = vpop.f32.mrf.mxu0
        %v1799 = vpop.f32.mrf.mxu0
        %v1800 = vadd.f32 %v1713, %v1799
        %v1801 = vpop.f32.mrf.mxu0
        %1802 = vdwg.mxu0
        %v1803 = vadd.f32 %v475, %v1797
        %v1804 = vadd.f32 %v476, %v1800
        %1805 = vadd.xlane.f32.xlu0 %v1803
        %v1806 = vpop.xlane.xlu0 %1805
        %1807 = vadd.xlane.f32.xlu0 %v1804
        %v1808 = vpop.xlane.xlu0 %1807
        %v1809 = vrcp.pop 128.0
        %v1810 = vmul.f32 %v1806, %v1809
        %v1811 = vmul.f32 %v1808, %v1809
        %v1812 = vsub.f32 %v1803, %v1810
        %v1813 = vsub.f32 %v1804, %v1811
        %v1814 = vmul.f32 %v1812, %v1812
        %v1815 = vmul.f32 %v1813, %v1813
        %1816 = vadd.xlane.f32.xlu0 %v1814
        %v1817 = vpop.xlane.xlu0 %1816
        %1818 = vadd.xlane.f32.xlu0 %v1815
        %v1819 = vpop.xlane.xlu0 %1818
        %v1820 = vmul.f32 %v1817, %v1809
        %v1821 = vmul.f32 %v1819, %v1809
        %v1822 = vadd.f32 %v1820, 1e-05
        %v1823 = vadd.f32 %v1821, 1e-05
        %v1824 = vrsqrt.pop %v1822
        %v1825 = vrsqrt.pop %v1823
        %v1826 = vmul.f32 %v1812, %v1824
        %v1827 = vmul.f32 %v1813, %v1825
        %v1828 = vlaneseq
        %v1829 = vshrl.u32 %v1828, 7
        %v1830 = vsub.s32 4, %v1829
        %v1831 = vrot.slane %v477, %v1830
        %v1832 = vmul.f32 %v1826, %v1831
        %v1833 = vmul.f32 %v1827, %v1831
        %v1834 = vlaneseq
        %v1835 = vshrl.u32 %v1834, 7
        %v1836 = vsub.s32 5, %v1835
        %v1837 = vrot.slane %v477, %v1836
        %v1838 = vadd.f32 %v1832, %v1837
        %v1839 = vadd.f32 %v1833, %v1837
        %v1840 = vpack.c.bf16 %v1839, %v1838
        %v1841 = vld [vmem:[%s454] sm:$0xf]
        %v1842 = vld [vmem:[%s454 + $0x4] sm:$0xf]
        %v1843 = vld [vmem:[%s454 + $0x8] sm:$0xf]
        %v1844 = vld [vmem:[%s454 + $0xc] sm:$0xf]
        %v1845 = vld [vmem:[%s454 + $0x10] sm:$0xf]
        %v1846 = vld [vmem:[%s454 + $0x14] sm:$0xf]
        %v1847 = vld [vmem:[%s454 + $0x18] sm:$0xf]
        %v1848 = vld [vmem:[%s454 + $0x1c] sm:$0xf]
        %v1849 = vld [vmem:[%s454 + $0x20] sm:$0xf]
        %v1850 = vld [vmem:[%s454 + $0x24] sm:$0xf]
        %v1851 = vld [vmem:[%s454 + $0x28] sm:$0xf]
        %v1852 = vld [vmem:[%s454 + $0x2c] sm:$0xf]
        %v1853 = vld [vmem:[%s454 + $0x30] sm:$0xf]
        %v1854 = vld [vmem:[%s454 + $0x34] sm:$0xf]
        %v1855 = vld [vmem:[%s454 + $0x38] sm:$0xf]
        %v1856 = vld [vmem:[%s454 + $0x3c] sm:$0xf]
        %v1857 = vlaneseq
        %v1858 = vshrl.u32 %v1857, 7
        %v1859 = vsub.s32 6, %v1858
        %v1860 = vrot.slane %v477, %v1859
        %v1877 = vunpack.c.l.b16 %v1841
        %v1878 = vunpack.c.l.b16 %v1842
        %v1879 = vunpack.c.l.b16 %v1843
        %v1880 = vunpack.c.l.b16 %v1844
        %v1881 = vunpack.c.l.b16 %v1845
        %v1882 = vunpack.c.l.b16 %v1846
        %v1883 = vunpack.c.l.b16 %v1847
        %v1884 = vunpack.c.l.b16 %v1848
        %v1885 = vunpack.c.l.b16 %v1849
        %v1886 = vunpack.c.l.b16 %v1850
        %v1887 = vunpack.c.l.b16 %v1851
        %v1888 = vunpack.c.l.b16 %v1852
        %v1889 = vunpack.c.l.b16 %v1853
        %v1890 = vunpack.c.l.b16 %v1854
        %v1891 = vunpack.c.l.b16 %v1855
        %v1892 = vunpack.c.l.b16 %v1856
        %v1893 = vpack.c.b16 %v1878, %v1877
        %v1894 = vpack.c.b16 %v1880, %v1879
        %v1895 = vpack.c.b16 %v1882, %v1881
        %v1896 = vpack.c.b16 %v1884, %v1883
        %v1897 = vpack.c.b16 %v1886, %v1885
        %v1898 = vpack.c.b16 %v1888, %v1887
        %v1899 = vpack.c.b16 %v1890, %v1889
        %v1900 = vpack.c.b16 %v1892, %v1891
        %1909 = vmatprep.subr.bf16.mxu0 0
        %1910 = vmatpush1.bf16.msra.mxu0 %v1900
        %1911 = vmatprep.subr.bf16.mxu0 0
        %1912 = vmatpush1.bf16.msra.mxu0 %v1899
        %1913 = vmatprep.subr.bf16.mxu0 0
        %1914 = vmatpush1.bf16.msra.mxu0 %v1898
        %1915 = vmatprep.subr.bf16.mxu0 0
        %1916 = vmatpush1.bf16.msra.mxu0 %v1897
        %1917 = vmatprep.subr.bf16.mxu0 0
        %1918 = vmatpush1.bf16.msra.mxu0 %v1896
        %1919 = vmatprep.subr.bf16.mxu0 0
        %1920 = vmatpush1.bf16.msra.mxu0 %v1895
        %1921 = vmatprep.subr.bf16.mxu0 0
        %1922 = vmatpush1.bf16.msra.mxu0 %v1894
        %1923 = vmatprep.subr.bf16.mxu0 0
        %1924 = vmatpush1.bf16.msra.mxu0 %v1893
        %1925 = vmatprep.subr.bf16.mxu0 0
        %1926 = vmatpush2.bf16.msra.mxu0 0
        %1927 = vmatprep.subr.bf16.mxu0 0
        %1928 = vmatpush2.bf16.msra.mxu0 0
        %1929 = vmatprep.subr.bf16.mxu0 0
        %1930 = vmatpush2.bf16.msra.mxu0 0
        %1931 = vmatprep.subr.bf16.mxu0 0
        %1932 = vmatpush2.bf16.msra.mxu0 0
        %1933 = vmatprep.subr.bf16.mxu0 0
        %1934 = vmatpush2.bf16.msra.mxu0 0
        %1935 = vmatprep.subr.bf16.mxu0 0
        %1936 = vmatpush2.bf16.msra.mxu0 0
        %1937 = vmatprep.subr.bf16.mxu0 0
        %1938 = vmatpush2.bf16.msra.mxu0 0
        %1939 = vmatprep.subr.bf16.mxu0 0
        %1940 = vmatpush2.bf16.msra.mxu0 0
        %1941 = vmatprep.mubr.bf16.mxu0 0
        %1942 = vmatmul.mubr.bf16.gmra.mxu0 %v1840
        %v1943 = vpop.f32.mrf.mxu0
        %v1944 = vadd.f32 %v1860, %v1943
        %v1945 = vpop.f32.mrf.mxu0
        %v1946 = vpop.f32.mrf.mxu0
        %v1947 = vadd.f32 %v1860, %v1946
        %v1948 = vpop.f32.mrf.mxu0
        %1949 = vdwg.mxu0
        %v1950 = vmax.f32 %v1944, 0.0
        %v1951 = vmax.f32 %v1947, 0.0
        %v1952 = vpack.c.bf16 %v1951, %v1950
        %v1953 = vld [vmem:[%s459] sm:$0xf]
        %v1954 = vld [vmem:[%s459 + $0x4] sm:$0xf]
        %v1955 = vld [vmem:[%s459 + $0x8] sm:$0xf]
        %v1956 = vld [vmem:[%s459 + $0xc] sm:$0xf]
        %v1957 = vld [vmem:[%s459 + $0x10] sm:$0xf]
        %v1958 = vld [vmem:[%s459 + $0x14] sm:$0xf]
        %v1959 = vld [vmem:[%s459 + $0x18] sm:$0xf]
        %v1960 = vld [vmem:[%s459 + $0x1c] sm:$0xf]
        %v1961 = vld [vmem:[%s459 + $0x20] sm:$0xf]
        %v1962 = vld [vmem:[%s459 + $0x24] sm:$0xf]
        %v1963 = vld [vmem:[%s459 + $0x28] sm:$0xf]
        %v1964 = vld [vmem:[%s459 + $0x2c] sm:$0xf]
        %v1965 = vld [vmem:[%s459 + $0x30] sm:$0xf]
        %v1966 = vld [vmem:[%s459 + $0x34] sm:$0xf]
        %v1967 = vld [vmem:[%s459 + $0x38] sm:$0xf]
        %v1968 = vld [vmem:[%s459 + $0x3c] sm:$0xf]
        %v1969 = vlaneseq
        %v1970 = vshrl.u32 %v1969, 7
        %v1971 = vsub.s32 7, %v1970
        %v1972 = vrot.slane %v477, %v1971
        %v1989 = vunpack.c.l.b16 %v1953
        %v1990 = vunpack.c.l.b16 %v1954
        %v1991 = vunpack.c.l.b16 %v1955
        %v1992 = vunpack.c.l.b16 %v1956
        %v1993 = vunpack.c.l.b16 %v1957
        %v1994 = vunpack.c.l.b16 %v1958
        %v1995 = vunpack.c.l.b16 %v1959
        %v1996 = vunpack.c.l.b16 %v1960
        %v1997 = vunpack.c.l.b16 %v1961
        %v1998 = vunpack.c.l.b16 %v1962
        %v1999 = vunpack.c.l.b16 %v1963
        %v2000 = vunpack.c.l.b16 %v1964
        %v2001 = vunpack.c.l.b16 %v1965
        %v2002 = vunpack.c.l.b16 %v1966
        %v2003 = vunpack.c.l.b16 %v1967
        %v2004 = vunpack.c.l.b16 %v1968
        %v2005 = vpack.c.b16 %v1990, %v1989
        %v2006 = vpack.c.b16 %v1992, %v1991
        %v2007 = vpack.c.b16 %v1994, %v1993
        %v2008 = vpack.c.b16 %v1996, %v1995
        %v2009 = vpack.c.b16 %v1998, %v1997
        %v2010 = vpack.c.b16 %v2000, %v1999
        %v2011 = vpack.c.b16 %v2002, %v2001
        %v2012 = vpack.c.b16 %v2004, %v2003
        %2021 = vmatprep.subr.bf16.mxu0 0
        %2022 = vmatpush1.bf16.msra.mxu0 %v2012
        %2023 = vmatprep.subr.bf16.mxu0 0
        %2024 = vmatpush1.bf16.msra.mxu0 %v2011
        %2025 = vmatprep.subr.bf16.mxu0 0
        %2026 = vmatpush1.bf16.msra.mxu0 %v2010
        %2027 = vmatprep.subr.bf16.mxu0 0
        %2028 = vmatpush1.bf16.msra.mxu0 %v2009
        %2029 = vmatprep.subr.bf16.mxu0 0
        %2030 = vmatpush1.bf16.msra.mxu0 %v2008
        %2031 = vmatprep.subr.bf16.mxu0 0
        %2032 = vmatpush1.bf16.msra.mxu0 %v2007
        %2033 = vmatprep.subr.bf16.mxu0 0
        %2034 = vmatpush1.bf16.msra.mxu0 %v2006
        %2035 = vmatprep.subr.bf16.mxu0 0
        %2036 = vmatpush1.bf16.msra.mxu0 %v2005
        %2037 = vmatprep.subr.bf16.mxu0 0
        %2038 = vmatpush2.bf16.msra.mxu0 0
        %2039 = vmatprep.subr.bf16.mxu0 0
        %2040 = vmatpush2.bf16.msra.mxu0 0
        %2041 = vmatprep.subr.bf16.mxu0 0
        %2042 = vmatpush2.bf16.msra.mxu0 0
        %2043 = vmatprep.subr.bf16.mxu0 0
        %2044 = vmatpush2.bf16.msra.mxu0 0
        %2045 = vmatprep.subr.bf16.mxu0 0
        %2046 = vmatpush2.bf16.msra.mxu0 0
        %2047 = vmatprep.subr.bf16.mxu0 0
        %2048 = vmatpush2.bf16.msra.mxu0 0
        %2049 = vmatprep.subr.bf16.mxu0 0
        %2050 = vmatpush2.bf16.msra.mxu0 0
        %2051 = vmatprep.subr.bf16.mxu0 0
        %2052 = vmatpush2.bf16.msra.mxu0 0
        %2053 = vmatprep.mubr.bf16.mxu0 0
        %2054 = vmatmul.mubr.bf16.gmra.mxu0 %v1952
        %v2055 = vpop.f32.mrf.mxu0
        %v2056 = vadd.f32 %v1972, %v2055
        %v2057 = vpop.f32.mrf.mxu0
        %v2058 = vpop.f32.mrf.mxu0
        %v2059 = vadd.f32 %v1972, %v2058
        %v2060 = vpop.f32.mrf.mxu0
        %2061 = vdwg.mxu0
        %v2062 = vadd.f32 %v1838, %v2056
        %v2063 = vadd.f32 %v1839, %v2059
        %2064 = vadd.xlane.f32.xlu0 %v2062
        %v2065 = vpop.xlane.xlu0 %2064
        %2066 = vadd.xlane.f32.xlu0 %v2063
        %v2067 = vpop.xlane.xlu0 %2066
        %v2068 = vmul.f32 %v2065, %v1809
        %v2069 = vmul.f32 %v2067, %v1809
        %v2070 = vsub.f32 %v2062, %v2068
        %v2071 = vsub.f32 %v2063, %v2069
        %v2072 = vmul.f32 %v2070, %v2070
        %v2073 = vmul.f32 %v2071, %v2071
        %2074 = vadd.xlane.f32.xlu0 %v2072
        %v2075 = vpop.xlane.xlu0 %2074
        %2076 = vadd.xlane.f32.xlu0 %v2073
        %v2077 = vpop.xlane.xlu0 %2076
        %v2078 = vmul.f32 %v2075, %v1809
        %v2079 = vmul.f32 %v2077, %v1809
        %v2080 = vadd.f32 %v2078, 1e-05
        %v2081 = vadd.f32 %v2079, 1e-05
        %v2082 = vrsqrt.pop %v2080
        %v2083 = vrsqrt.pop %v2081
        %v2084 = vmul.f32 %v2070, %v2082
        %v2085 = vmul.f32 %v2071, %v2083
        %v2086 = vlaneseq
        %v2087 = vshrl.u32 %v2086, 7
        %v2088 = vsub.s32 0, %v2087
        %v2089 = vrot.slane %v478, %v2088
        %v2090 = vmul.f32 %v2084, %v2089
        %v2091 = vmul.f32 %v2085, %v2089
        %v2092 = vlaneseq
        %v2093 = vshrl.u32 %v2092, 7
        %v2094 = vsub.s32 1, %v2093
        %v2095 = vrot.slane %v478, %v2094
        %v2096 = vadd.f32 %v2090, %v2095
        %v2097 = vadd.f32 %v2091, %v2095
        %2098 = vst [vmem:[#allocation2] sm:$0xff] %v2096
        %2099 = vst [vmem:[#allocation2 + $0x8] sm:$0xff] %v2097
        %p2100 = scmp.eq.s32.totalorder %s27, 5
        // Predicated region
        $region65: #{transformer_forward.1} parent=59 // pred_check
          %p2101 = pneg %p2100
        $region66: #{transformer_forward.1} parent=59 // pred_check_branch
          %2103 = sbr.rel (%p2101) target = $region68
        $region67: #{transformer_forward.1} parent=59 // pred_region
          %v2104 = vpack.c.bf16 %v2097, %v2096
          %v2105 = vld [vmem:[%s6] sm:$0xf]
          %v2106 = vld [vmem:[%s6 + $0x4] sm:$0xf]
          %v2107 = vld [vmem:[%s6 + $0x8] sm:$0xf]
          %v2108 = vld [vmem:[%s6 + $0xc] sm:$0xf]
          %v2109 = vld [vmem:[%s6 + $0x10] sm:$0xf]
          %v2110 = vld [vmem:[%s6 + $0x14] sm:$0xf]
          %v2111 = vld [vmem:[%s6 + $0x18] sm:$0xf]
          %v2112 = vld [vmem:[%s6 + $0x1c] sm:$0xf]
          %v2113 = vld [vmem:[%s6 + $0x20] sm:$0xf]
          %v2114 = vld [vmem:[%s6 + $0x24] sm:$0xf]
          %v2115 = vld [vmem:[%s6 + $0x28] sm:$0xf]
          %v2116 = vld [vmem:[%s6 + $0x2c] sm:$0xf]
          %v2117 = vld [vmem:[%s6 + $0x30] sm:$0xf]
          %v2118 = vld [vmem:[%s6 + $0x34] sm:$0xf]
          %v2119 = vld [vmem:[%s6 + $0x38] sm:$0xf]
          %v2120 = vld [vmem:[%s6 + $0x3c] sm:$0xf]
          %v2121 = vld [vmem:[%s7] sm:$0x1]
          %v2123 = vlaneseq
          %v2124 = vshrl.u32 %v2123, 7
          %v2125 = vsub.s32 0, %v2124
          %v2126 = vrot.slane %v2121, %v2125
          %v2144 = vunpack.c.l.b16 %v2105
          %v2145 = vunpack.c.l.b16 %v2106
          %v2146 = vunpack.c.l.b16 %v2107
          %v2147 = vunpack.c.l.b16 %v2108
          %v2148 = vunpack.c.l.b16 %v2109
          %v2149 = vunpack.c.l.b16 %v2110
          %v2150 = vunpack.c.l.b16 %v2111
          %v2151 = vunpack.c.l.b16 %v2112
          %v2152 = vunpack.c.l.b16 %v2113
          %v2153 = vunpack.c.l.b16 %v2114
          %v2154 = vunpack.c.l.b16 %v2115
          %v2155 = vunpack.c.l.b16 %v2116
          %v2156 = vunpack.c.l.b16 %v2117
          %v2157 = vunpack.c.l.b16 %v2118
          %v2158 = vunpack.c.l.b16 %v2119
          %v2159 = vunpack.c.l.b16 %v2120
          %v2160 = vpack.c.b16 %v2145, %v2144
          %v2161 = vpack.c.b16 %v2147, %v2146
          %v2162 = vpack.c.b16 %v2149, %v2148
          %v2163 = vpack.c.b16 %v2151, %v2150
          %v2164 = vpack.c.b16 %v2153, %v2152
          %v2165 = vpack.c.b16 %v2155, %v2154
          %v2166 = vpack.c.b16 %v2157, %v2156
          %v2167 = vpack.c.b16 %v2159, %v2158
          %2176 = vmatprep.subr.bf16.mxu0 0
          %2177 = vmatpush1.bf16.msra.mxu0 %v2167
          %2178 = vmatprep.subr.bf16.mxu0 0
          %2179 = vmatpush1.bf16.msra.mxu0 %v2166
          %2180 = vmatprep.subr.bf16.mxu0 0
          %2181 = vmatpush1.bf16.msra.mxu0 %v2165
          %2182 = vmatprep.subr.bf16.mxu0 0
          %2183 = vmatpush1.bf16.msra.mxu0 %v2164
          %2184 = vmatprep.subr.bf16.mxu0 0
          %2185 = vmatpush1.bf16.msra.mxu0 %v2163
          %2186 = vmatprep.subr.bf16.mxu0 0
          %2187 = vmatpush1.bf16.msra.mxu0 %v2162
          %2188 = vmatprep.subr.bf16.mxu0 0
          %2189 = vmatpush1.bf16.msra.mxu0 %v2161
          %2190 = vmatprep.subr.bf16.mxu0 0
          %2191 = vmatpush1.bf16.msra.mxu0 %v2160
          %2192 = vmatprep.subr.bf16.mxu0 0
          %2193 = vmatpush2.bf16.msra.mxu0 0
          %2194 = vmatprep.subr.bf16.mxu0 0
          %2195 = vmatpush2.bf16.msra.mxu0 0
          %2196 = vmatprep.subr.bf16.mxu0 0
          %2197 = vmatpush2.bf16.msra.mxu0 0
          %2198 = vmatprep.subr.bf16.mxu0 0
          %2199 = vmatpush2.bf16.msra.mxu0 0
          %2200 = vmatprep.subr.bf16.mxu0 0
          %2201 = vmatpush2.bf16.msra.mxu0 0
          %2202 = vmatprep.subr.bf16.mxu0 0
          %2203 = vmatpush2.bf16.msra.mxu0 0
          %2204 = vmatprep.subr.bf16.mxu0 0
          %2205 = vmatpush2.bf16.msra.mxu0 0
          %2206 = vmatprep.subr.bf16.mxu0 0
          %2207 = vmatpush2.bf16.msra.mxu0 0
          %2208 = vmatprep.mubr.bf16.mxu0 0
          %2209 = vmatmul.mubr.bf16.gmra.mxu0 %v2104
          %v2210 = vpop.f32.mrf.mxu0
          %v2211 = vadd.f32 %v2126, %v2210
          %v2212 = vpop.f32.mrf.mxu0
          %v2213 = vpop.f32.mrf.mxu0
          %v2214 = vadd.f32 %v2126, %v2213
          %v2215 = vpop.f32.mrf.mxu0
          %2216 = vdwg.mxu0
          %v2217 = vmax.f32 %v2211, 0.0
          %v2218 = vmax.f32 %v2214, 0.0
          %v2219 = vpack.c.bf16 %v2218, %v2217
          %v2220 = vld [vmem:[%s8] sm:$0xf]
          %v2221 = vld [vmem:[%s8 + $0x4] sm:$0xf]
          %v2222 = vld [vmem:[%s8 + $0x8] sm:$0xf]
          %v2223 = vld [vmem:[%s8 + $0xc] sm:$0xf]
          %v2224 = vld [vmem:[%s8 + $0x10] sm:$0xf]
          %v2225 = vld [vmem:[%s8 + $0x14] sm:$0xf]
          %v2226 = vld [vmem:[%s8 + $0x18] sm:$0xf]
          %v2227 = vld [vmem:[%s8 + $0x1c] sm:$0xf]
          %v2228 = vld [vmem:[%s8 + $0x20] sm:$0xf]
          %v2229 = vld [vmem:[%s8 + $0x24] sm:$0xf]
          %v2230 = vld [vmem:[%s8 + $0x28] sm:$0xf]
          %v2231 = vld [vmem:[%s8 + $0x2c] sm:$0xf]
          %v2232 = vld [vmem:[%s8 + $0x30] sm:$0xf]
          %v2233 = vld [vmem:[%s8 + $0x34] sm:$0xf]
          %v2234 = vld [vmem:[%s8 + $0x38] sm:$0xf]
          %v2235 = vld [vmem:[%s8 + $0x3c] sm:$0xf]
          %v2236 = vld [vmem:[%s9] sm:$0x1]
          %v2238 = vlaneseq
          %v2239 = vshrl.u32 %v2238, 7
          %v2240 = vsub.s32 0, %v2239
          %v2241 = vrot.slane %v2236, %v2240
          %v2259 = vunpack.c.l.b16 %v2220
          %v2260 = vunpack.c.l.b16 %v2221
          %v2261 = vunpack.c.l.b16 %v2222
          %v2262 = vunpack.c.l.b16 %v2223
          %v2263 = vunpack.c.l.b16 %v2224
          %v2264 = vunpack.c.l.b16 %v2225
          %v2265 = vunpack.c.l.b16 %v2226
          %v2266 = vunpack.c.l.b16 %v2227
          %v2267 = vunpack.c.l.b16 %v2228
          %v2268 = vunpack.c.l.b16 %v2229
          %v2269 = vunpack.c.l.b16 %v2230
          %v2270 = vunpack.c.l.b16 %v2231
          %v2271 = vunpack.c.l.b16 %v2232
          %v2272 = vunpack.c.l.b16 %v2233
          %v2273 = vunpack.c.l.b16 %v2234
          %v2274 = vunpack.c.l.b16 %v2235
          %v2275 = vpack.c.b16 %v2260, %v2259
          %v2276 = vpack.c.b16 %v2262, %v2261
          %v2277 = vpack.c.b16 %v2264, %v2263
          %v2278 = vpack.c.b16 %v2266, %v2265
          %v2279 = vpack.c.b16 %v2268, %v2267
          %v2280 = vpack.c.b16 %v2270, %v2269
          %v2281 = vpack.c.b16 %v2272, %v2271
          %v2282 = vpack.c.b16 %v2274, %v2273
          %2291 = vmatprep.subr.bf16.mxu0 0
          %2292 = vmatpush1.bf16.msra.mxu0 %v2282
          %2293 = vmatprep.subr.bf16.mxu0 0
          %2294 = vmatpush1.bf16.msra.mxu0 %v2281
          %2295 = vmatprep.subr.bf16.mxu0 0
          %2296 = vmatpush1.bf16.msra.mxu0 %v2280
          %2297 = vmatprep.subr.bf16.mxu0 0
          %2298 = vmatpush1.bf16.msra.mxu0 %v2279
          %2299 = vmatprep.subr.bf16.mxu0 0
          %2300 = vmatpush1.bf16.msra.mxu0 %v2278
          %2301 = vmatprep.subr.bf16.mxu0 0
          %2302 = vmatpush1.bf16.msra.mxu0 %v2277
          %2303 = vmatprep.subr.bf16.mxu0 0
          %2304 = vmatpush1.bf16.msra.mxu0 %v2276
          %2305 = vmatprep.subr.bf16.mxu0 0
          %2306 = vmatpush1.bf16.msra.mxu0 %v2275
          %2307 = vmatprep.subr.bf16.mxu0 0
          %2308 = vmatpush2.bf16.msra.mxu0 0
          %2309 = vmatprep.subr.bf16.mxu0 0
          %2310 = vmatpush2.bf16.msra.mxu0 0
          %2311 = vmatprep.subr.bf16.mxu0 0
          %2312 = vmatpush2.bf16.msra.mxu0 0
          %2313 = vmatprep.subr.bf16.mxu0 0
          %2314 = vmatpush2.bf16.msra.mxu0 0
          %2315 = vmatprep.subr.bf16.mxu0 0
          %2316 = vmatpush2.bf16.msra.mxu0 0
          %2317 = vmatprep.subr.bf16.mxu0 0
          %2318 = vmatpush2.bf16.msra.mxu0 0
          %2319 = vmatprep.subr.bf16.mxu0 0
          %2320 = vmatpush2.bf16.msra.mxu0 0
          %2321 = vmatprep.subr.bf16.mxu0 0
          %2322 = vmatpush2.bf16.msra.mxu0 0
          %2323 = vmatprep.mubr.bf16.mxu0 0
          %2324 = vmatmul.mubr.bf16.gmra.mxu0 %v2219
          %v2325 = vpop.f32.mrf.mxu0
          %v2326 = vadd.f32 %v2241, %v2325
          %v2327 = vpop.f32.mrf.mxu0
          %v2328 = vpop.f32.mrf.mxu0
          %v2329 = vadd.f32 %v2241, %v2328
          %v2330 = vpop.f32.mrf.mxu0
          %2331 = vdwg.mxu0
          %2332 = vst [vmem:[#allocation3] sm:$0xff] %v2326
          %2333 = vst [vmem:[#allocation3 + $0x8] sm:$0xff] %v2329
        $region68: #{transformer_forward.1} parent=59 // pred_fallthru
          _
        // Predicated region
        $region69: #{transformer_forward.1} parent=59 // pred_check
          %p2334 = pneg %p292
        $region70: #{transformer_forward.1} parent=59 // pred_check_branch
          %2336 = sbr.rel (%p2334) target = $region72
        $region71: #{transformer_forward.1} parent=59 // pred_region
          %s2337 = smul.u32 2, %s26
          %s2339 = ssub.s32 256, 256
          %2340 = vsyncadd [#allocation4], %s2339
          %s2341 = smul.addr %s2337, 128
          %s2342 = scalar_lea.hbm %s10, %s2341
          %s2343 = sshll.u32 [#allocation3], 4
          %s2344 = int_to_ptr.vmem [resolvable:$true] %s2343
          %2349 = dma.vmem_to_hbm [thread:$0]  %s2344, 256, %s2342, [#allocation4], 128, 128, 8
        $region72: #{transformer_forward.1} parent=59 // pred_fallthru
          _
        // Predicated region
        $region73: #{transformer_forward.1} parent=59 // pred_check
          %p2350 = pneg %p292
        $region74: #{transformer_forward.1} parent=59 // pred_check_branch
          %2352 = sbr.rel (%p2350) target = $region76
        $region75: #{transformer_forward.1} parent=59 // pred_region
          %2353 = dma.done [#allocation4], 256
        $region76: #{transformer_forward.1} parent=59 // pred_fallthru
          _
      $region60: #{transformer_forward.1} parent=5 // pred_fallthru
        _
      %p2354 = scmp.le.s32.totalorder 2, %s17
      // Predicated region
      $region77: #{transformer_forward.1} parent=5 // pred_check
        %p2355 = pneg %p2354
      $region78: #{transformer_forward.1} parent=5 // pred_check_branch
        %2357 = sbr.rel (%p2355) target = $region80
      $region79: #{transformer_forward.1} parent=5 // pred_region
        %s2358 = ssub.s32 %s17, 2
      $region80: #{transformer_forward.1} parent=5 // pred_fallthru
        _
    $region6: #{transformer_forward.1} parent=1 // loop_footer
      %s21 = sadd.s32 1, %s17
    $region7: #{transformer_forward.1} parent=1 // loop_footer_branch
      %16 = sbr.rel target = $region3
    $region8: #{transformer_forward.1} parent=1 // loop_exit
      _
    %2359 = vsyncpa [#allocation4], 1
    %s2360 = scalar_lea.sflag [#allocation4], 1
    %2361 = vsyncpa %s2360, 1

</llo_original>
